<compile_context>
chip_gen: v5e
topology: v5e:2x2
jax: 0.10.0
libtpu: 0.0.40
codegen_flags: <defaults>
</compile_context>

<pallas_src>
import functools

import jax
import jax.numpy as jnp
from jax.experimental import pallas as pl
from jax.experimental.pallas import tpu as pltpu

D_IN = 213
D_IN_PAD = 256          # K of the first matmul, padded to a lane multiple
D_HID = 512
D_OUT = 1
_MIN_TILE_B = 16        # keep bf16 x tiles sublane-aligned even for tiny batches


def _round_up(n, m):
    return ((n + m - 1) // m) * m


def _softplus(x):
    # torch.nn.functional.softplus(beta=1, threshold=20):
    #   x > 20 -> x, else log1p(exp(x)); clamp before exp to avoid overflow.
    safe = jnp.minimum(x, 20.0)
    return jnp.where(x > 20.0, x, jnp.log1p(jnp.exp(safe)))


def _mlp_kernel(x_ref,
                w1_ref, b1_ref,
                w2_ref, b2_ref,
                w3_ref, b3_ref,
                w4_ref, b4_ref,
                w5t_ref, b5_ref,
                o_ref):
    h = x_ref[...]                                            # bf16 (TB, 256)
    for w_ref, b_ref in ((w1_ref, b1_ref), (w2_ref, b2_ref),
                         (w3_ref, b3_ref), (w4_ref, b4_ref)):
        z = jnp.dot(h, w_ref[...],
                    preferred_element_type=jnp.float32) + b_ref[...]   # f32
        h = _softplus(z).astype(jnp.bfloat16)                 # bf16 (TB, 512)
    # Final (512 -> 1) layer on the VPU/XLU instead of an N=1 MXU matmul.
    y = jnp.sum(h.astype(jnp.float32) * w5t_ref[...], axis=-1, keepdims=True)
    o_ref[...] = (y + b5_ref[...]).astype(o_ref.dtype)        # (TB, 1)


def prepare_params(params):
    """Math-layout f32 params ([in, out] weights, (1, out) biases) -> kernel layout:
    pad K 213->256, bf16 MXU weights, last layer as a (1, 512) f32 row, f32 biases."""
    w1 = jnp.zeros((D_IN_PAD, D_HID), jnp.float32).at[:D_IN, :].set(params["w1"])
    prep = {
        "w1": w1.astype(jnp.bfloat16),
        "w2": params["w2"].astype(jnp.bfloat16),
        "w3": params["w3"].astype(jnp.bfloat16),
        "w4": params["w4"].astype(jnp.bfloat16),
        "w5t": params["w5"].reshape(D_HID, D_OUT).T.astype(jnp.float32),  # (1, 512)
        "b5": params["b5"].reshape(1, D_OUT).astype(jnp.float32),
    }
    for i in (1, 2, 3, 4):
        prep[f"b{i}"] = params[f"b{i}"].reshape(1, D_HID).astype(jnp.float32)
    return prep


@functools.partial(jax.jit, static_argnames=("block_b",))
def fcn_neural_func_forward(x, prep, block_b=512):
    """x: (B, 213) float32; prep: output of prepare_params(). Returns (B, 1) float32."""
    B = x.shape[0]
    # Tile the batch; don't blow a tiny batch up to the full production tile.
    bb = min(block_b, _round_up(B, _MIN_TILE_B))
    B_pad = _round_up(B, bb)
    grid = (B_pad // bb,)

    # Zero-pad batch to a tile multiple and features 213 -> 256; cast to bf16.
    xp = jnp.zeros((B_pad, D_IN_PAD), jnp.bfloat16)
    xp = xp.at[:B, :D_IN].set(x.astype(jnp.bfloat16))

    def const_spec(shape):
        # Weights/biases: one full block, identical for every grid step (stays resident).
        return pl.BlockSpec(shape, lambda i: (0, 0))

    in_specs = [
        pl.BlockSpec((bb, D_IN_PAD), lambda i: (i, 0)),           # x tile over batch
        const_spec((D_IN_PAD, D_HID)), const_spec((1, D_HID)),    # fc1
        const_spec((D_HID, D_HID)),    const_spec((1, D_HID)),    # fc2
        const_spec((D_HID, D_HID)),    const_spec((1, D_HID)),    # fc3
        const_spec((D_HID, D_HID)),    const_spec((1, D_HID)),    # fc4
        const_spec((1, D_HID)),        const_spec((1, D_OUT)),    # fc5 row + bias
    ]
    out_spec = pl.BlockSpec((bb, D_OUT), lambda i: (i, 0))

    out = pl.pallas_call(
        _mlp_kernel,
        out_shape=jax.ShapeDtypeStruct((B_pad, D_OUT), jnp.float32),
        grid_spec=pltpu.PrefetchScalarGridSpec(
            num_scalar_prefetch=0,
            grid=grid,
            in_specs=in_specs,
            out_specs=out_spec,
        ),
        compiler_params=pltpu.CompilerParams(
            dimension_semantics=("parallel",),
            vmem_limit_bytes=40 * 1024 * 1024,
        ),
    )(xp,
      prep["w1"], prep["b1"],
      prep["w2"], prep["b2"],
      prep["w3"], prep["b3"],
      prep["w4"], prep["b4"],
      prep["w5t"], prep["b5"])
    return out[:B]


def init_params(key):
    """PyTorch-Linear-style init (U[-1/sqrt(fan_in), 1/sqrt(fan_in)]).
    Weights stored as [in, out] (transposed relative to PyTorch), biases as (1, out)."""
    dims = [(D_IN, D_HID), (D_HID, D_HID), (D_HID, D_HID), (D_HID, D_HID), (D_HID, D_OUT)]
    params = {}
    for idx, (fan_in, fan_out) in enumerate(dims, start=1):
        key, kw, kb = jax.random.split(key, 3)
        bound = 1.0 / jnp.sqrt(float(fan_in))
        params[f"w{idx}"] = jax.random.uniform(
            kw, (fan_in, fan_out), jnp.float32, minval=-bound, maxval=bound)
        params[f"b{idx}"] = jax.random.uniform(
            kb, (1, fan_out), jnp.float32, minval=-bound, maxval=bound)
    return params


def _reference_forward(x, params):
    h = x
    for i in range(1, 5):
        h = jax.nn.softplus(h @ params[f"w{i}"] + params[f"b{i}"])
    return h @ params["w5"] + params["b5"]


if __name__ == "__main__":
    key = jax.random.PRNGKey(0)
    kx, kp = jax.random.split(key)

    B = 16
    x = jax.random.normal(kx, (B, D_IN), dtype=jnp.float32)
    params = init_params(kp)
    prep = prepare_params(params)

    out = fcn_neural_func_forward(x, prep, block_b=512)
    out = jax.block_until_ready(out)

    ref = _reference_forward(x, params)
    assert out.shape == (B, 1)
    max_err = float(jnp.max(jnp.abs(out - ref)))
    # bf16 MXU inputs (f32 accumulation) -> loose-but-safe tolerance vs f32 reference.
    assert jnp.allclose(out, ref, atol=5e-2, rtol=5e-2), (
        f"mismatch vs reference (max abs err {max_err})")

    print("KERNEL_OK")
</pallas_src>

<mosaic_0001>
module attributes {stable_mosaic.version = 11 : i64} {
  func.func @_mlp_kernel(%arg0: i32, %arg1: memref<16x256xbf16, #tpu.memory_space<vmem>>, %arg2: memref<256x512xbf16, #tpu.memory_space<vmem>>, %arg3: memref<1x512xf32, #tpu.memory_space<vmem>>, %arg4: memref<512x512xbf16, #tpu.memory_space<vmem>>, %arg5: memref<1x512xf32, #tpu.memory_space<vmem>>, %arg6: memref<512x512xbf16, #tpu.memory_space<vmem>>, %arg7: memref<1x512xf32, #tpu.memory_space<vmem>>, %arg8: memref<512x512xbf16, #tpu.memory_space<vmem>>, %arg9: memref<1x512xf32, #tpu.memory_space<vmem>>, %arg10: memref<1x512xf32, #tpu.memory_space<vmem>>, %arg11: memref<1x1xf32, #tpu.memory_space<vmem>>, %arg12: memref<16x1xf32, #tpu.memory_space<vmem>>) attributes {dimension_semantics = [#tpu.dimension_semantics<parallel>], iteration_bounds = array<i64: 1>, scalar_prefetch = 0 : i64, scratch_operands = 0 : i64, tpu.core_type = #tpu.core_type<tc>, window_params = [{transform_indices = @transform_0, window_bounds = array<i64: 16, 256>}, {pipeline_mode = #tpu.pipeline_mode<synchronous>, transform_indices = @transform_1, window_bounds = array<i64: 256, 512>}, {pipeline_mode = #tpu.pipeline_mode<synchronous>, transform_indices = @transform_2, window_bounds = array<i64: 1, 512>}, {pipeline_mode = #tpu.pipeline_mode<synchronous>, transform_indices = @transform_3, window_bounds = array<i64: 512, 512>}, {pipeline_mode = #tpu.pipeline_mode<synchronous>, transform_indices = @transform_4, window_bounds = array<i64: 1, 512>}, {pipeline_mode = #tpu.pipeline_mode<synchronous>, transform_indices = @transform_5, window_bounds = array<i64: 512, 512>}, {pipeline_mode = #tpu.pipeline_mode<synchronous>, transform_indices = @transform_6, window_bounds = array<i64: 1, 512>}, {pipeline_mode = #tpu.pipeline_mode<synchronous>, transform_indices = @transform_7, window_bounds = array<i64: 512, 512>}, {pipeline_mode = #tpu.pipeline_mode<synchronous>, transform_indices = @transform_8, window_bounds = array<i64: 1, 512>}, {pipeline_mode = #tpu.pipeline_mode<synchronous>, transform_indices = @transform_9, window_bounds = array<i64: 1, 512>}, {pipeline_mode = #tpu.pipeline_mode<synchronous>, transform_indices = @transform_10, window_bounds = array<i64: 1, 1>}, {transform_indices = @transform_11, window_bounds = array<i64: 16, 1>}]} {
    %c0 = arith.constant 0 : index
    %c0_0 = arith.constant 0 : index
    %0 = vector.load %arg1[%c0, %c0_0] : memref<16x256xbf16, #tpu.memory_space<vmem>>, vector<16x256xbf16>
    %c0_1 = arith.constant 0 : index
    %c0_2 = arith.constant 0 : index
    %1 = vector.load %arg2[%c0_1, %c0_2] : memref<256x512xbf16, #tpu.memory_space<vmem>>, vector<256x512xbf16>
    %cst = arith.constant dense<0.000000e+00> : vector<16x512xf32>
    %2 = tpu.matmul %0, %1, %cst {dimension_numbers = #tpu.dot_dimension_numbers<[1], [0], [0], [1], [0, 0, 1, 1], [], []>} : vector<16x256xbf16>, vector<256x512xbf16>, vector<16x512xf32> -> vector<16x512xf32>
    %c0_3 = arith.constant 0 : index
    %c0_4 = arith.constant 0 : index
    %3 = vector.load %arg3[%c0_3, %c0_4] : memref<1x512xf32, #tpu.memory_space<vmem>>, vector<1x512xf32>
    %4 = vector.broadcast %3 : vector<1x512xf32> to vector<16x512xf32>
    %5 = arith.addf %2, %4 : vector<16x512xf32>
    %cst_5 = arith.constant 2.000000e+01 : f32
    %6 = vector.broadcast %cst_5 : f32 to vector<16x512xf32>
    %7 = arith.minimumf %5, %6 : vector<16x512xf32>
    %cst_6 = arith.constant 2.000000e+01 : f32
    %8 = vector.broadcast %cst_6 : f32 to vector<16x512xf32>
    %9 = arith.cmpf ogt, %5, %8 : vector<16x512xf32>
    %10 = math.exp %7 : vector<16x512xf32>
    %11 = math.log1p %10 : vector<16x512xf32>
    %12 = arith.select %9, %5, %11 : vector<16x512xi1>, vector<16x512xf32>
    %13 = arith.truncf %12 : vector<16x512xf32> to vector<16x512xbf16>
    %c0_7 = arith.constant 0 : index
    %c0_8 = arith.constant 0 : index
    %14 = vector.load %arg4[%c0_7, %c0_8] : memref<512x512xbf16, #tpu.memory_space<vmem>>, vector<512x512xbf16>
    %cst_9 = arith.constant dense<0.000000e+00> : vector<16x512xf32>
    %15 = tpu.matmul %13, %14, %cst_9 {dimension_numbers = #tpu.dot_dimension_numbers<[1], [0], [0], [1], [0, 0, 1, 1], [], []>} : vector<16x512xbf16>, vector<512x512xbf16>, vector<16x512xf32> -> vector<16x512xf32>
    %c0_10 = arith.constant 0 : index
    %c0_11 = arith.constant 0 : index
    %16 = vector.load %arg5[%c0_10, %c0_11] : memref<1x512xf32, #tpu.memory_space<vmem>>, vector<1x512xf32>
    %17 = vector.broadcast %16 : vector<1x512xf32> to vector<16x512xf32>
    %18 = arith.addf %15, %17 : vector<16x512xf32>
    %cst_12 = arith.constant 2.000000e+01 : f32
    %19 = vector.broadcast %cst_12 : f32 to vector<16x512xf32>
    %20 = arith.minimumf %18, %19 : vector<16x512xf32>
    %cst_13 = arith.constant 2.000000e+01 : f32
    %21 = vector.broadcast %cst_13 : f32 to vector<16x512xf32>
    %22 = arith.cmpf ogt, %18, %21 : vector<16x512xf32>
    %23 = math.exp %20 : vector<16x512xf32>
    %24 = math.log1p %23 : vector<16x512xf32>
    %25 = arith.select %22, %18, %24 : vector<16x512xi1>, vector<16x512xf32>
    %26 = arith.truncf %25 : vector<16x512xf32> to vector<16x512xbf16>
    %c0_14 = arith.constant 0 : index
    %c0_15 = arith.constant 0 : index
    %27 = vector.load %arg6[%c0_14, %c0_15] : memref<512x512xbf16, #tpu.memory_space<vmem>>, vector<512x512xbf16>
    %cst_16 = arith.constant dense<0.000000e+00> : vector<16x512xf32>
    %28 = tpu.matmul %26, %27, %cst_16 {dimension_numbers = #tpu.dot_dimension_numbers<[1], [0], [0], [1], [0, 0, 1, 1], [], []>} : vector<16x512xbf16>, vector<512x512xbf16>, vector<16x512xf32> -> vector<16x512xf32>
    %c0_17 = arith.constant 0 : index
    %c0_18 = arith.constant 0 : index
    %29 = vector.load %arg7[%c0_17, %c0_18] : memref<1x512xf32, #tpu.memory_space<vmem>>, vector<1x512xf32>
    %30 = vector.broadcast %29 : vector<1x512xf32> to vector<16x512xf32>
    %31 = arith.addf %28, %30 : vector<16x512xf32>
    %cst_19 = arith.constant 2.000000e+01 : f32
    %32 = vector.broadcast %cst_19 : f32 to vector<16x512xf32>
    %33 = arith.minimumf %31, %32 : vector<16x512xf32>
    %cst_20 = arith.constant 2.000000e+01 : f32
    %34 = vector.broadcast %cst_20 : f32 to vector<16x512xf32>
    %35 = arith.cmpf ogt, %31, %34 : vector<16x512xf32>
    %36 = math.exp %33 : vector<16x512xf32>
    %37 = math.log1p %36 : vector<16x512xf32>
    %38 = arith.select %35, %31, %37 : vector<16x512xi1>, vector<16x512xf32>
    %39 = arith.truncf %38 : vector<16x512xf32> to vector<16x512xbf16>
    %c0_21 = arith.constant 0 : index
    %c0_22 = arith.constant 0 : index
    %40 = vector.load %arg8[%c0_21, %c0_22] : memref<512x512xbf16, #tpu.memory_space<vmem>>, vector<512x512xbf16>
    %cst_23 = arith.constant dense<0.000000e+00> : vector<16x512xf32>
    %41 = tpu.matmul %39, %40, %cst_23 {dimension_numbers = #tpu.dot_dimension_numbers<[1], [0], [0], [1], [0, 0, 1, 1], [], []>} : vector<16x512xbf16>, vector<512x512xbf16>, vector<16x512xf32> -> vector<16x512xf32>
    %c0_24 = arith.constant 0 : index
    %c0_25 = arith.constant 0 : index
    %42 = vector.load %arg9[%c0_24, %c0_25] : memref<1x512xf32, #tpu.memory_space<vmem>>, vector<1x512xf32>
    %43 = vector.broadcast %42 : vector<1x512xf32> to vector<16x512xf32>
    %44 = arith.addf %41, %43 : vector<16x512xf32>
    %cst_26 = arith.constant 2.000000e+01 : f32
    %45 = vector.broadcast %cst_26 : f32 to vector<16x512xf32>
    %46 = arith.minimumf %44, %45 : vector<16x512xf32>
    %cst_27 = arith.constant 2.000000e+01 : f32
    %47 = vector.broadcast %cst_27 : f32 to vector<16x512xf32>
    %48 = arith.cmpf ogt, %44, %47 : vector<16x512xf32>
    %49 = math.exp %46 : vector<16x512xf32>
    %50 = math.log1p %49 : vector<16x512xf32>
    %51 = arith.select %48, %44, %50 : vector<16x512xi1>, vector<16x512xf32>
    %52 = arith.truncf %51 : vector<16x512xf32> to vector<16x512xbf16>
    %53 = arith.extf %52 : vector<16x512xbf16> to vector<16x512xf32>
    %c0_28 = arith.constant 0 : index
    %c0_29 = arith.constant 0 : index
    %54 = vector.load %arg10[%c0_28, %c0_29] : memref<1x512xf32, #tpu.memory_space<vmem>>, vector<1x512xf32>
    %55 = vector.broadcast %54 : vector<1x512xf32> to vector<16x512xf32>
    %56 = arith.mulf %53, %55 : vector<16x512xf32>
    %cst_30 = arith.constant dense<0.000000e+00> : vector<16xf32>
    %57 = vector.multi_reduction <add>, %56, %cst_30 [1] : vector<16x512xf32> to vector<16xf32>
    %58 = vector.shape_cast %57 : vector<16xf32> to vector<16x1xf32>
    %c0_31 = arith.constant 0 : index
    %c0_32 = arith.constant 0 : index
    %59 = vector.load %arg11[%c0_31, %c0_32] : memref<1x1xf32, #tpu.memory_space<vmem>>, vector<1x1xf32>
    %60 = vector.broadcast %59 : vector<1x1xf32> to vector<16x1xf32>
    %61 = arith.addf %58, %60 : vector<16x1xf32>
    %c0_33 = arith.constant 0 : index
    %c0_34 = arith.constant 0 : index
    %62 = vector.load %arg12[%c0_33, %c0_34] : memref<16x1xf32, #tpu.memory_space<vmem>>, vector<16x1xf32>
    tpu.vector_store %arg12[%c0_33, %c0_34], %61 {strides = array<i32>} : memref<16x1xf32, #tpu.memory_space<vmem>>, vector<16x1xf32>,
    return
  }
  func.func @transform_0(%arg0: i32) -> (i32, i32) {
    %c0_i32 = arith.constant 0 : i32
    %c0_i32_0 = arith.constant 0 : i32
    return %arg0, %c0_i32 : i32, i32
  }
  func.func @transform_1(%arg0: i32) -> (i32, i32) {
    %c0_i32 = arith.constant 0 : i32
    %c0_i32_0 = arith.constant 0 : i32
    %c0_i32_1 = arith.constant 0 : i32
    return %c0_i32, %c0_i32_0 : i32, i32
  }
  func.func @transform_2(%arg0: i32) -> (i32, i32) {
    %c0_i32 = arith.constant 0 : i32
    %c0_i32_0 = arith.constant 0 : i32
    %c0_i32_1 = arith.constant 0 : i32
    return %c0_i32, %c0_i32_0 : i32, i32
  }
  func.func @transform_3(%arg0: i32) -> (i32, i32) {
    %c0_i32 = arith.constant 0 : i32
    %c0_i32_0 = arith.constant 0 : i32
    %c0_i32_1 = arith.constant 0 : i32
    return %c0_i32, %c0_i32_0 : i32, i32
  }
  func.func @transform_4(%arg0: i32) -> (i32, i32) {
    %c0_i32 = arith.constant 0 : i32
    %c0_i32_0 = arith.constant 0 : i32
    %c0_i32_1 = arith.constant 0 : i32
    return %c0_i32, %c0_i32_0 : i32, i32
  }
  func.func @transform_5(%arg0: i32) -> (i32, i32) {
    %c0_i32 = arith.constant 0 : i32
    %c0_i32_0 = arith.constant 0 : i32
    %c0_i32_1 = arith.constant 0 : i32
    return %c0_i32, %c0_i32_0 : i32, i32
  }
  func.func @transform_6(%arg0: i32) -> (i32, i32) {
    %c0_i32 = arith.constant 0 : i32
    %c0_i32_0 = arith.constant 0 : i32
    %c0_i32_1 = arith.constant 0 : i32
    return %c0_i32, %c0_i32_0 : i32, i32
  }
  func.func @transform_7(%arg0: i32) -> (i32, i32) {
    %c0_i32 = arith.constant 0 : i32
    %c0_i32_0 = arith.constant 0 : i32
    %c0_i32_1 = arith.constant 0 : i32
    return %c0_i32, %c0_i32_0 : i32, i32
  }
  func.func @transform_8(%arg0: i32) -> (i32, i32) {
    %c0_i32 = arith.constant 0 : i32
    %c0_i32_0 = arith.constant 0 : i32
    %c0_i32_1 = arith.constant 0 : i32
    return %c0_i32, %c0_i32_0 : i32, i32
  }
  func.func @transform_9(%arg0: i32) -> (i32, i32) {
    %c0_i32 = arith.constant 0 : i32
    %c0_i32_0 = arith.constant 0 : i32
    %c0_i32_1 = arith.constant 0 : i32
    return %c0_i32, %c0_i32_0 : i32, i32
  }
  func.func @transform_10(%arg0: i32) -> (i32, i32) {
    %c0_i32 = arith.constant 0 : i32
    %c0_i32_0 = arith.constant 0 : i32
    %c0_i32_1 = arith.constant 0 : i32
    return %c0_i32, %c0_i32_0 : i32, i32
  }
  func.func @transform_11(%arg0: i32) -> (i32, i32) {
    %c0_i32 = arith.constant 0 : i32
    %c0_i32_0 = arith.constant 0 : i32
    return %arg0, %c0_i32 : i32, i32
  }
}

</mosaic_0001>

<llo_original>
// kernel: fcn_neural_func_forward.1
$region0: #{fcn_neural_func_forward.1}
  #allocation0 [shape = 'u32[]', space=smem, size = 0x4, offset = 0x4, fixed_abs, tag = 'smem constant byte address 0x4 - core index']
  #allocation1 [shape = 'u32[72,128]{1,0:T(1,128)}', space=vmem, size = 0x9000, scoped, tag = 'internal scratch']
  #allocation2 [shape = 'f32[1,1]{1,0:T(1,128)S(1)}', space=vmem, size = 0x200, scoped, tag = 'scoped memory for fcn_neural_func_forward.1']
  %s0 = inlined_call_operand.vmem [shape: bf16[16,256], index: 0, kind: input, shape index: {}]
  %s1 = inlined_call_operand.hbm [shape: bf16[256,512], index: 1, kind: input, shape index: {}]
  %s2 = inlined_call_operand.vmem [shape: f32[1,512], index: 2, kind: input, shape index: {}]
  %s3 = inlined_call_operand.hbm [shape: bf16[512,512], index: 3, kind: input, shape index: {}]
  %s4 = inlined_call_operand.vmem [shape: f32[1,512], index: 4, kind: input, shape index: {}]
  %s5 = inlined_call_operand.hbm [shape: bf16[512,512], index: 5, kind: input, shape index: {}]
  %s6 = inlined_call_operand.vmem [shape: f32[1,512], index: 6, kind: input, shape index: {}]
  %s7 = inlined_call_operand.hbm [shape: bf16[512,512], index: 7, kind: input, shape index: {}]
  %s8 = inlined_call_operand.vmem [shape: f32[1,512], index: 8, kind: input, shape index: {}]
  %s9 = inlined_call_operand.vmem [shape: f32[1,512], index: 9, kind: input, shape index: {}]
  %s10 = inlined_call_operand.<no memory space> [shape: f32[1,1], index: 10, kind: input, shape index: {}]
  %s11 = inlined_call_operand.vmem [shape: f32[16,1], index: 11, kind: output, shape index: {}]
  %s12 = sld [smem:[#allocation0]]
  $region70: #{fcn_neural_func_forward.1} parent=0
    _
  %s14 = ssub.s32 1, %s12
  %s15 = scalar_select 0, %s14, %s12
  %v16 = vstv %s10
  %17 = vst [vmem:[#allocation2] sm:$0x1] %v16
  $region1: #{fcn_neural_func_forward.1} parent=0
    #allocation3 [shape = 'u8[262144]{0}', space=vmem, size = 0x40000, scoped, tag = 'input window, operand 1, single buffered']
    #allocation4 [shape = 's32[1]{0}', space=sflag, size = 0x4, scoped, tag = 'scoped memory for fcn_neural_func_forward.1']
    #allocation5 [shape = 'u8[524288]{0}', space=vmem, size = 0x80000, scoped, tag = 'input window, operand 3, single buffered']
    #allocation6 [shape = 's32[1]{0}', space=sflag, size = 0x4, scoped, tag = 'scoped memory for fcn_neural_func_forward.1']
    #allocation7 [shape = 'u8[524288]{0}', space=vmem, size = 0x80000, scoped, tag = 'input window, operand 5, single buffered']
    #allocation8 [shape = 'u8[524288]{0}', space=vmem, size = 0x80000, scoped, tag = 'input window, operand 7, single buffered']
    #allocation9 [shape = 's32[1]{0}', space=sflag, size = 0x4, scoped, tag = 'scoped memory for fcn_neural_func_forward.1']
    %18 = vsyncpa [#allocation4], 0
    %19 = vsyncpa [#allocation6], 0
    %20 = vsyncpa [#allocation9], 0
    // Predicated region
    $region2: #{fcn_neural_func_forward.1} parent=1 // pred_check
      _
    $region3: #{fcn_neural_func_forward.1} parent=1 // pred_check_branch
      %22 = sbr.rel (0) target = $region5
    $region4: #{fcn_neural_func_forward.1} parent=1 // pred_region
      _
    $region5: #{fcn_neural_func_forward.1} parent=1 // pred_fallthru
      _
    // Predicated region
    $region6: #{fcn_neural_func_forward.1} parent=1 // pred_check
      _
    $region7: #{fcn_neural_func_forward.1} parent=1 // pred_check_branch
      %24 = sbr.rel (0) target = $region9
    $region8: #{fcn_neural_func_forward.1} parent=1 // pred_region
      %26 = vsyncadd [#allocation4], 0
      %s27 = sshll.u32 %s1, 4
      %s28 = int_to_ptr.hbm [resolvable:$true] %s27
      %s29 = sshll.u32 [#allocation3], 4
      %s30 = int_to_ptr.vmem [resolvable:$true] %s29
      %35 = dma.hbm_to_vmem [thread:$0]  %s28, 8192, %s30, [#allocation4], 256, 256, 16
    $region9: #{fcn_neural_func_forward.1} parent=1 // pred_fallthru
      _
    // Predicated region
    $region10: #{fcn_neural_func_forward.1} parent=1 // pred_check
      _
    $region11: #{fcn_neural_func_forward.1} parent=1 // pred_check_branch
      %37 = sbr.rel (0) target = $region13
    $region12: #{fcn_neural_func_forward.1} parent=1 // pred_region
      _
    $region13: #{fcn_neural_func_forward.1} parent=1 // pred_fallthru
      _
    // Predicated region
    $region14: #{fcn_neural_func_forward.1} parent=1 // pred_check
      _
    $region15: #{fcn_neural_func_forward.1} parent=1 // pred_check_branch
      %39 = sbr.rel (0) target = $region17
    $region16: #{fcn_neural_func_forward.1} parent=1 // pred_region
      %41 = vsyncadd [#allocation6], 0
      %s42 = sshll.u32 %s3, 4
      %s43 = int_to_ptr.hbm [resolvable:$true] %s42
      %s44 = sshll.u32 [#allocation5], 4
      %s45 = int_to_ptr.vmem [resolvable:$true] %s44
      %50 = dma.hbm_to_vmem [thread:$0]  %s43, 16384, %s45, [#allocation6], 256, 256, 16
    $region17: #{fcn_neural_func_forward.1} parent=1 // pred_fallthru
      _
    // Predicated region
    $region18: #{fcn_neural_func_forward.1} parent=1 // pred_check
      _
    $region19: #{fcn_neural_func_forward.1} parent=1 // pred_check_branch
      %52 = sbr.rel (0) target = $region21
    $region20: #{fcn_neural_func_forward.1} parent=1 // pred_region
      _
    $region21: #{fcn_neural_func_forward.1} parent=1 // pred_fallthru
      _
    // Predicated region
    $region22: #{fcn_neural_func_forward.1} parent=1 // pred_check
      _
    $region23: #{fcn_neural_func_forward.1} parent=1 // pred_check_branch
      %54 = sbr.rel (0) target = $region25
    $region24: #{fcn_neural_func_forward.1} parent=1 // pred_region
      %56 = vsyncadd [#allocation6], 0
      %s57 = sshll.u32 %s5, 4
      %s58 = int_to_ptr.hbm [resolvable:$true] %s57
      %s59 = sshll.u32 [#allocation7], 4
      %s60 = int_to_ptr.vmem [resolvable:$true] %s59
      %65 = dma.hbm_to_vmem [thread:$0]  %s58, 16384, %s60, [#allocation6], 256, 256, 16
    $region25: #{fcn_neural_func_forward.1} parent=1 // pred_fallthru
      _
    // Predicated region
    $region26: #{fcn_neural_func_forward.1} parent=1 // pred_check
      _
    $region27: #{fcn_neural_func_forward.1} parent=1 // pred_check_branch
      %67 = sbr.rel (0) target = $region29
    $region28: #{fcn_neural_func_forward.1} parent=1 // pred_region
      _
    $region29: #{fcn_neural_func_forward.1} parent=1 // pred_fallthru
      _
    // Predicated region
    $region30: #{fcn_neural_func_forward.1} parent=1 // pred_check
      _
    $region31: #{fcn_neural_func_forward.1} parent=1 // pred_check_branch
      %69 = sbr.rel (0) target = $region33
    $region32: #{fcn_neural_func_forward.1} parent=1 // pred_region
      %71 = vsyncadd [#allocation9], 0
      %s72 = sshll.u32 %s7, 4
      %s73 = int_to_ptr.hbm [resolvable:$true] %s72
      %s74 = sshll.u32 [#allocation8], 4
      %s75 = int_to_ptr.vmem [resolvable:$true] %s74
      %80 = dma.hbm_to_vmem [thread:$0]  %s73, 16384, %s75, [#allocation9], 256, 256, 16
    $region33: #{fcn_neural_func_forward.1} parent=1 // pred_fallthru
      _
    // Predicated region
    $region34: #{fcn_neural_func_forward.1} parent=1 // pred_check
      _
    $region35: #{fcn_neural_func_forward.1} parent=1 // pred_check_branch
      %82 = sbr.rel (0) target = $region37
    $region36: #{fcn_neural_func_forward.1} parent=1 // pred_region
      _
    $region37: #{fcn_neural_func_forward.1} parent=1 // pred_fallthru
      _
    // Predicated region
    $region38: #{fcn_neural_func_forward.1} parent=1 // pred_check
      _
    $region39: #{fcn_neural_func_forward.1} parent=1 // pred_check_branch
      %84 = sbr.rel (0) target = $region41
    $region40: #{fcn_neural_func_forward.1} parent=1 // pred_region
      _
    $region41: #{fcn_neural_func_forward.1} parent=1 // pred_fallthru
      _
    // Predicated region
    $region42: #{fcn_neural_func_forward.1} parent=1 // pred_check
      _
    $region43: #{fcn_neural_func_forward.1} parent=1 // pred_check_branch
      %86 = sbr.rel (0) target = $region45
    $region44: #{fcn_neural_func_forward.1} parent=1 // pred_region
      _
    $region45: #{fcn_neural_func_forward.1} parent=1 // pred_fallthru
      _
    // Predicated region
    $region46: #{fcn_neural_func_forward.1} parent=1 // pred_check
      _
    $region47: #{fcn_neural_func_forward.1} parent=1 // pred_check_branch
      %88 = sbr.rel (0) target = $region49
    $region48: #{fcn_neural_func_forward.1} parent=1 // pred_region
      %90 = dma.done [#allocation4], 8192
    $region49: #{fcn_neural_func_forward.1} parent=1 // pred_fallthru
      _
    // Predicated region
    $region50: #{fcn_neural_func_forward.1} parent=1 // pred_check
      _
    $region51: #{fcn_neural_func_forward.1} parent=1 // pred_check_branch
      %92 = sbr.rel (0) target = $region53
    $region52: #{fcn_neural_func_forward.1} parent=1 // pred_region
      %94 = dma.done [#allocation6], 16384
    $region53: #{fcn_neural_func_forward.1} parent=1 // pred_fallthru
      _
    // Predicated region
    $region54: #{fcn_neural_func_forward.1} parent=1 // pred_check
      _
    $region55: #{fcn_neural_func_forward.1} parent=1 // pred_check_branch
      %96 = sbr.rel (0) target = $region57
    $region56: #{fcn_neural_func_forward.1} parent=1 // pred_region
      %98 = dma.done [#allocation6], 16384
    $region57: #{fcn_neural_func_forward.1} parent=1 // pred_fallthru
      _
    // Predicated region
    $region58: #{fcn_neural_func_forward.1} parent=1 // pred_check
      _
    $region59: #{fcn_neural_func_forward.1} parent=1 // pred_check_branch
      %100 = sbr.rel (0) target = $region61
    $region60: #{fcn_neural_func_forward.1} parent=1 // pred_region
      %102 = dma.done [#allocation9], 16384
    $region61: #{fcn_neural_func_forward.1} parent=1 // pred_fallthru
      _
    %v103 = vld [vmem:[%s0] sm:$0xff]
    %v104 = vld [vmem:[%s0 + $0x8] sm:$0xff]
    %v105 = vld [vmem:[#allocation3] sm:$0xff]
    %v106 = vld [vmem:[#allocation3 + $0x8] sm:$0xff]
    %v107 = vld [vmem:[#allocation3 + $0x10] sm:$0xff]
    %v108 = vld [vmem:[#allocation3 + $0x18] sm:$0xff]
    %v109 = vld [vmem:[#allocation3 + $0x20] sm:$0xff]
    %v110 = vld [vmem:[#allocation3 + $0x28] sm:$0xff]
    %v111 = vld [vmem:[#allocation3 + $0x30] sm:$0xff]
    %v112 = vld [vmem:[#allocation3 + $0x38] sm:$0xff]
    %v113 = vld [vmem:[#allocation3 + $0x40] sm:$0xff]
    %v114 = vld [vmem:[#allocation3 + $0x48] sm:$0xff]
    %v115 = vld [vmem:[#allocation3 + $0x50] sm:$0xff]
    %v116 = vld [vmem:[#allocation3 + $0x58] sm:$0xff]
    %v117 = vld [vmem:[#allocation3 + $0x60] sm:$0xff]
    %v118 = vld [vmem:[#allocation3 + $0x68] sm:$0xff]
    %v119 = vld [vmem:[#allocation3 + $0x70] sm:$0xff]
    %v120 = vld [vmem:[#allocation3 + $0x78] sm:$0xff]
    %v121 = vld [vmem:[#allocation3 + $0x80] sm:$0xff]
    %v122 = vld [vmem:[#allocation3 + $0x88] sm:$0xff]
    %v123 = vld [vmem:[#allocation3 + $0x90] sm:$0xff]
    %v124 = vld [vmem:[#allocation3 + $0x98] sm:$0xff]
    %v125 = vld [vmem:[#allocation3 + $0xa0] sm:$0xff]
    %v126 = vld [vmem:[#allocation3 + $0xa8] sm:$0xff]
    %v127 = vld [vmem:[#allocation3 + $0xb0] sm:$0xff]
    %v128 = vld [vmem:[#allocation3 + $0xb8] sm:$0xff]
    %v129 = vld [vmem:[#allocation3 + $0xc0] sm:$0xff]
    %v130 = vld [vmem:[#allocation3 + $0xc8] sm:$0xff]
    %v131 = vld [vmem:[#allocation3 + $0xd0] sm:$0xff]
    %v132 = vld [vmem:[#allocation3 + $0xd8] sm:$0xff]
    %v133 = vld [vmem:[#allocation3 + $0xe0] sm:$0xff]
    %v134 = vld [vmem:[#allocation3 + $0xe8] sm:$0xff]
    %v135 = vld [vmem:[#allocation3 + $0xf0] sm:$0xff]
    %v136 = vld [vmem:[#allocation3 + $0xf8] sm:$0xff]
    %v137 = vld [vmem:[#allocation3 + $0x100] sm:$0xff]
    %v138 = vld [vmem:[#allocation3 + $0x108] sm:$0xff]
    %v139 = vld [vmem:[#allocation3 + $0x110] sm:$0xff]
    %v140 = vld [vmem:[#allocation3 + $0x118] sm:$0xff]
    %v141 = vld [vmem:[#allocation3 + $0x120] sm:$0xff]
    %v142 = vld [vmem:[#allocation3 + $0x128] sm:$0xff]
    %v143 = vld [vmem:[#allocation3 + $0x130] sm:$0xff]
    %v144 = vld [vmem:[#allocation3 + $0x138] sm:$0xff]
    %v145 = vld [vmem:[#allocation3 + $0x140] sm:$0xff]
    %v146 = vld [vmem:[#allocation3 + $0x148] sm:$0xff]
    %v147 = vld [vmem:[#allocation3 + $0x150] sm:$0xff]
    %v148 = vld [vmem:[#allocation3 + $0x158] sm:$0xff]
    %v149 = vld [vmem:[#allocation3 + $0x160] sm:$0xff]
    %v150 = vld [vmem:[#allocation3 + $0x168] sm:$0xff]
    %v151 = vld [vmem:[#allocation3 + $0x170] sm:$0xff]
    %v152 = vld [vmem:[#allocation3 + $0x178] sm:$0xff]
    %v153 = vld [vmem:[#allocation3 + $0x180] sm:$0xff]
    %v154 = vld [vmem:[#allocation3 + $0x188] sm:$0xff]
    %v155 = vld [vmem:[#allocation3 + $0x190] sm:$0xff]
    %v156 = vld [vmem:[#allocation3 + $0x198] sm:$0xff]
    %v157 = vld [vmem:[#allocation3 + $0x1a0] sm:$0xff]
    %v158 = vld [vmem:[#allocation3 + $0x1a8] sm:$0xff]
    %v159 = vld [vmem:[#allocation3 + $0x1b0] sm:$0xff]
    %v160 = vld [vmem:[#allocation3 + $0x1b8] sm:$0xff]
    %v161 = vld [vmem:[#allocation3 + $0x1c0] sm:$0xff]
    %v162 = vld [vmem:[#allocation3 + $0x1c8] sm:$0xff]
    %v163 = vld [vmem:[#allocation3 + $0x1d0] sm:$0xff]
    %v164 = vld [vmem:[#allocation3 + $0x1d8] sm:$0xff]
    %v165 = vld [vmem:[#allocation3 + $0x1e0] sm:$0xff]
    %v166 = vld [vmem:[#allocation3 + $0x1e8] sm:$0xff]
    %v167 = vld [vmem:[#allocation3 + $0x1f0] sm:$0xff]
    %v168 = vld [vmem:[#allocation3 + $0x1f8] sm:$0xff]
    %v169 = vld [vmem:[%s2] sm:$0xf]
    %v171 = vperm.slane %v169, 0
    %v172 = vperm.slane %v169, 1
    %v173 = vperm.slane %v169, 2
    %v174 = vperm.slane %v169, 3
    %v181 = vunpack.c.l.b16 %v103
    %v182 = vunpack.c.h.b16 %v103
    %v183 = vunpack.c.l.b16 %v104
    %v184 = vunpack.c.h.b16 %v104
    %v185 = vpack.c.b16 %v183, %v181
    %v186 = vpack.c.b16 %v184, %v182
    %v253 = vunpack.c.l.b16 %v105
    %v254 = vunpack.c.h.b16 %v105
    %v255 = vunpack.c.l.b16 %v106
    %v256 = vunpack.c.h.b16 %v106
    %v257 = vunpack.c.l.b16 %v107
    %v258 = vunpack.c.h.b16 %v107
    %v259 = vunpack.c.l.b16 %v108
    %v260 = vunpack.c.h.b16 %v108
    %v261 = vunpack.c.l.b16 %v109
    %v262 = vunpack.c.h.b16 %v109
    %v263 = vunpack.c.l.b16 %v110
    %v264 = vunpack.c.h.b16 %v110
    %v265 = vunpack.c.l.b16 %v111
    %v266 = vunpack.c.h.b16 %v111
    %v267 = vunpack.c.l.b16 %v112
    %v268 = vunpack.c.h.b16 %v112
    %v269 = vunpack.c.l.b16 %v113
    %v270 = vunpack.c.h.b16 %v113
    %v271 = vunpack.c.l.b16 %v114
    %v272 = vunpack.c.h.b16 %v114
    %v273 = vunpack.c.l.b16 %v115
    %v274 = vunpack.c.h.b16 %v115
    %v275 = vunpack.c.l.b16 %v116
    %v276 = vunpack.c.h.b16 %v116
    %v277 = vunpack.c.l.b16 %v117
    %v278 = vunpack.c.h.b16 %v117
    %v279 = vunpack.c.l.b16 %v118
    %v280 = vunpack.c.h.b16 %v118
    %v281 = vunpack.c.l.b16 %v119
    %v282 = vunpack.c.h.b16 %v119
    %v283 = vunpack.c.l.b16 %v120
    %v284 = vunpack.c.h.b16 %v120
    %v285 = vunpack.c.l.b16 %v121
    %v286 = vunpack.c.h.b16 %v121
    %v287 = vunpack.c.l.b16 %v122
    %v288 = vunpack.c.h.b16 %v122
    %v289 = vunpack.c.l.b16 %v123
    %v290 = vunpack.c.h.b16 %v123
    %v291 = vunpack.c.l.b16 %v124
    %v292 = vunpack.c.h.b16 %v124
    %v293 = vunpack.c.l.b16 %v125
    %v294 = vunpack.c.h.b16 %v125
    %v295 = vunpack.c.l.b16 %v126
    %v296 = vunpack.c.h.b16 %v126
    %v297 = vunpack.c.l.b16 %v127
    %v298 = vunpack.c.h.b16 %v127
    %v299 = vunpack.c.l.b16 %v128
    %v300 = vunpack.c.h.b16 %v128
    %v301 = vunpack.c.l.b16 %v129
    %v302 = vunpack.c.h.b16 %v129
    %v303 = vunpack.c.l.b16 %v130
    %v304 = vunpack.c.h.b16 %v130
    %v305 = vunpack.c.l.b16 %v131
    %v306 = vunpack.c.h.b16 %v131
    %v307 = vunpack.c.l.b16 %v132
    %v308 = vunpack.c.h.b16 %v132
    %v309 = vunpack.c.l.b16 %v133
    %v310 = vunpack.c.h.b16 %v133
    %v311 = vunpack.c.l.b16 %v134
    %v312 = vunpack.c.h.b16 %v134
    %v313 = vunpack.c.l.b16 %v135
    %v314 = vunpack.c.h.b16 %v135
    %v315 = vunpack.c.l.b16 %v136
    %v316 = vunpack.c.h.b16 %v136
    %v317 = vunpack.c.l.b16 %v137
    %v318 = vunpack.c.h.b16 %v137
    %v319 = vunpack.c.l.b16 %v138
    %v320 = vunpack.c.h.b16 %v138
    %v321 = vunpack.c.l.b16 %v139
    %v322 = vunpack.c.h.b16 %v139
    %v323 = vunpack.c.l.b16 %v140
    %v324 = vunpack.c.h.b16 %v140
    %v325 = vunpack.c.l.b16 %v141
    %v326 = vunpack.c.h.b16 %v141
    %v327 = vunpack.c.l.b16 %v142
    %v328 = vunpack.c.h.b16 %v142
    %v329 = vunpack.c.l.b16 %v143
    %v330 = vunpack.c.h.b16 %v143
    %v331 = vunpack.c.l.b16 %v144
    %v332 = vunpack.c.h.b16 %v144
    %v333 = vunpack.c.l.b16 %v145
    %v334 = vunpack.c.h.b16 %v145
    %v335 = vunpack.c.l.b16 %v146
    %v336 = vunpack.c.h.b16 %v146
    %v337 = vunpack.c.l.b16 %v147
    %v338 = vunpack.c.h.b16 %v147
    %v339 = vunpack.c.l.b16 %v148
    %v340 = vunpack.c.h.b16 %v148
    %v341 = vunpack.c.l.b16 %v149
    %v342 = vunpack.c.h.b16 %v149
    %v343 = vunpack.c.l.b16 %v150
    %v344 = vunpack.c.h.b16 %v150
    %v345 = vunpack.c.l.b16 %v151
    %v346 = vunpack.c.h.b16 %v151
    %v347 = vunpack.c.l.b16 %v152
    %v348 = vunpack.c.h.b16 %v152
    %v349 = vunpack.c.l.b16 %v153
    %v350 = vunpack.c.h.b16 %v153
    %v351 = vunpack.c.l.b16 %v154
    %v352 = vunpack.c.h.b16 %v154
    %v353 = vunpack.c.l.b16 %v155
    %v354 = vunpack.c.h.b16 %v155
    %v355 = vunpack.c.l.b16 %v156
    %v356 = vunpack.c.h.b16 %v156
    %v357 = vunpack.c.l.b16 %v157
    %v358 = vunpack.c.h.b16 %v157
    %v359 = vunpack.c.l.b16 %v158
    %v360 = vunpack.c.h.b16 %v158
    %v361 = vunpack.c.l.b16 %v159
    %v362 = vunpack.c.h.b16 %v159
    %v363 = vunpack.c.l.b16 %v160
    %v364 = vunpack.c.h.b16 %v160
    %v365 = vunpack.c.l.b16 %v161
    %v366 = vunpack.c.h.b16 %v161
    %v367 = vunpack.c.l.b16 %v162
    %v368 = vunpack.c.h.b16 %v162
    %v369 = vunpack.c.l.b16 %v163
    %v370 = vunpack.c.h.b16 %v163
    %v371 = vunpack.c.l.b16 %v164
    %v372 = vunpack.c.h.b16 %v164
    %v373 = vunpack.c.l.b16 %v165
    %v374 = vunpack.c.h.b16 %v165
    %v375 = vunpack.c.l.b16 %v166
    %v376 = vunpack.c.h.b16 %v166
    %v377 = vunpack.c.l.b16 %v167
    %v378 = vunpack.c.h.b16 %v167
    %v379 = vunpack.c.l.b16 %v168
    %v380 = vunpack.c.h.b16 %v168
    %v381 = vpack.c.b16 %v257, %v253
    %v382 = vpack.c.b16 %v258, %v254
    %v383 = vpack.c.b16 %v259, %v255
    %v384 = vpack.c.b16 %v260, %v256
    %v385 = vpack.c.b16 %v265, %v261
    %v386 = vpack.c.b16 %v266, %v262
    %v387 = vpack.c.b16 %v267, %v263
    %v388 = vpack.c.b16 %v268, %v264
    %v389 = vpack.c.b16 %v273, %v269
    %v390 = vpack.c.b16 %v274, %v270
    %v391 = vpack.c.b16 %v275, %v271
    %v392 = vpack.c.b16 %v276, %v272
    %v393 = vpack.c.b16 %v281, %v277
    %v394 = vpack.c.b16 %v282, %v278
    %v395 = vpack.c.b16 %v283, %v279
    %v396 = vpack.c.b16 %v284, %v280
    %v397 = vpack.c.b16 %v289, %v285
    %v398 = vpack.c.b16 %v290, %v286
    %v399 = vpack.c.b16 %v291, %v287
    %v400 = vpack.c.b16 %v292, %v288
    %v401 = vpack.c.b16 %v297, %v293
    %v402 = vpack.c.b16 %v298, %v294
    %v403 = vpack.c.b16 %v299, %v295
    %v404 = vpack.c.b16 %v300, %v296
    %v405 = vpack.c.b16 %v305, %v301
    %v406 = vpack.c.b16 %v306, %v302
    %v407 = vpack.c.b16 %v307, %v303
    %v408 = vpack.c.b16 %v308, %v304
    %v409 = vpack.c.b16 %v313, %v309
    %v410 = vpack.c.b16 %v314, %v310
    %v411 = vpack.c.b16 %v315, %v311
    %v412 = vpack.c.b16 %v316, %v312
    %v413 = vpack.c.b16 %v321, %v317
    %v414 = vpack.c.b16 %v322, %v318
    %v415 = vpack.c.b16 %v323, %v319
    %v416 = vpack.c.b16 %v324, %v320
    %v417 = vpack.c.b16 %v329, %v325
    %v418 = vpack.c.b16 %v330, %v326
    %v419 = vpack.c.b16 %v331, %v327
    %v420 = vpack.c.b16 %v332, %v328
    %v421 = vpack.c.b16 %v337, %v333
    %v422 = vpack.c.b16 %v338, %v334
    %v423 = vpack.c.b16 %v339, %v335
    %v424 = vpack.c.b16 %v340, %v336
    %v425 = vpack.c.b16 %v345, %v341
    %v426 = vpack.c.b16 %v346, %v342
    %v427 = vpack.c.b16 %v347, %v343
    %v428 = vpack.c.b16 %v348, %v344
    %v429 = vpack.c.b16 %v353, %v349
    %v430 = vpack.c.b16 %v354, %v350
    %v431 = vpack.c.b16 %v355, %v351
    %v432 = vpack.c.b16 %v356, %v352
    %v433 = vpack.c.b16 %v361, %v357
    %v434 = vpack.c.b16 %v362, %v358
    %v435 = vpack.c.b16 %v363, %v359
    %v436 = vpack.c.b16 %v364, %v360
    %v437 = vpack.c.b16 %v369, %v365
    %v438 = vpack.c.b16 %v370, %v366
    %v439 = vpack.c.b16 %v371, %v367
    %v440 = vpack.c.b16 %v372, %v368
    %v441 = vpack.c.b16 %v377, %v373
    %v442 = vpack.c.b16 %v378, %v374
    %v443 = vpack.c.b16 %v379, %v375
    %v444 = vpack.c.b16 %v380, %v376
    %509 = vmatpush.bf16.msra.mxu0 %v409
    %510 = vmatpush.bf16.msra.mxu0 %v405
    %511 = vmatpush.bf16.msra.mxu0 %v401
    %512 = vmatpush.bf16.msra.mxu0 %v397
    %513 = vmatpush.bf16.msra.mxu0 %v393
    %514 = vmatpush.bf16.msra.mxu0 %v389
    %515 = vmatpush.bf16.msra.mxu0 %v385
    %516 = vmatpush.bf16.msra.mxu0 %v381
    %517 = vmatmul.bf16.gmra.mxu0 %v185
    %v518 = vpop.f32.mrf.mxu0
    %v519 = vadd.f32 %v171, %v518
    %v520 = vpop.f32.mrf.mxu0
    %v521 = vadd.f32 %v171, %v520
    %522 = vdwg.mxu0
    %523 = vmatpush.bf16.msra.mxu0 %v441
    %524 = vmatpush.bf16.msra.mxu0 %v437
    %525 = vmatpush.bf16.msra.mxu0 %v433
    %526 = vmatpush.bf16.msra.mxu0 %v429
    %527 = vmatpush.bf16.msra.mxu0 %v425
    %528 = vmatpush.bf16.msra.mxu0 %v421
    %529 = vmatpush.bf16.msra.mxu0 %v417
    %530 = vmatpush.bf16.msra.mxu0 %v413
    %531 = vmatmul.bf16.gmra.mxu0 %v186
    %v532 = vpop.f32.mrf.mxu0
    %v533 = vadd.f32 %v519, %v532
    %v534 = vpop.f32.mrf.mxu0
    %v535 = vadd.f32 %v521, %v534
    %536 = vdwg.mxu0
    %537 = vmatpush.bf16.msra.mxu0 %v410
    %538 = vmatpush.bf16.msra.mxu0 %v406
    %539 = vmatpush.bf16.msra.mxu0 %v402
    %540 = vmatpush.bf16.msra.mxu0 %v398
    %541 = vmatpush.bf16.msra.mxu0 %v394
    %542 = vmatpush.bf16.msra.mxu0 %v390
    %543 = vmatpush.bf16.msra.mxu0 %v386
    %544 = vmatpush.bf16.msra.mxu0 %v382
    %545 = vmatmul.bf16.gmra.mxu0 %v185
    %v546 = vpop.f32.mrf.mxu0
    %v547 = vadd.f32 %v172, %v546
    %v548 = vpop.f32.mrf.mxu0
    %v549 = vadd.f32 %v172, %v548
    %550 = vdwg.mxu0
    %551 = vmatpush.bf16.msra.mxu0 %v442
    %552 = vmatpush.bf16.msra.mxu0 %v438
    %553 = vmatpush.bf16.msra.mxu0 %v434
    %554 = vmatpush.bf16.msra.mxu0 %v430
    %555 = vmatpush.bf16.msra.mxu0 %v426
    %556 = vmatpush.bf16.msra.mxu0 %v422
    %557 = vmatpush.bf16.msra.mxu0 %v418
    %558 = vmatpush.bf16.msra.mxu0 %v414
    %559 = vmatmul.bf16.gmra.mxu0 %v186
    %v560 = vpop.f32.mrf.mxu0
    %v561 = vadd.f32 %v547, %v560
    %v562 = vpop.f32.mrf.mxu0
    %v563 = vadd.f32 %v549, %v562
    %564 = vdwg.mxu0
    %565 = vmatpush.bf16.msra.mxu0 %v411
    %566 = vmatpush.bf16.msra.mxu0 %v407
    %567 = vmatpush.bf16.msra.mxu0 %v403
    %568 = vmatpush.bf16.msra.mxu0 %v399
    %569 = vmatpush.bf16.msra.mxu0 %v395
    %570 = vmatpush.bf16.msra.mxu0 %v391
    %571 = vmatpush.bf16.msra.mxu0 %v387
    %572 = vmatpush.bf16.msra.mxu0 %v383
    %573 = vmatmul.bf16.gmra.mxu0 %v185
    %v574 = vpop.f32.mrf.mxu0
    %v575 = vadd.f32 %v173, %v574
    %v576 = vpop.f32.mrf.mxu0
    %v577 = vadd.f32 %v173, %v576
    %578 = vdwg.mxu0
    %579 = vmatpush.bf16.msra.mxu0 %v443
    %580 = vmatpush.bf16.msra.mxu0 %v439
    %581 = vmatpush.bf16.msra.mxu0 %v435
    %582 = vmatpush.bf16.msra.mxu0 %v431
    %583 = vmatpush.bf16.msra.mxu0 %v427
    %584 = vmatpush.bf16.msra.mxu0 %v423
    %585 = vmatpush.bf16.msra.mxu0 %v419
    %586 = vmatpush.bf16.msra.mxu0 %v415
    %587 = vmatmul.bf16.gmra.mxu0 %v186
    %v588 = vpop.f32.mrf.mxu0
    %v589 = vadd.f32 %v575, %v588
    %v590 = vpop.f32.mrf.mxu0
    %v591 = vadd.f32 %v577, %v590
    %592 = vdwg.mxu0
    %593 = vmatpush.bf16.msra.mxu0 %v412
    %594 = vmatpush.bf16.msra.mxu0 %v408
    %595 = vmatpush.bf16.msra.mxu0 %v404
    %596 = vmatpush.bf16.msra.mxu0 %v400
    %597 = vmatpush.bf16.msra.mxu0 %v396
    %598 = vmatpush.bf16.msra.mxu0 %v392
    %599 = vmatpush.bf16.msra.mxu0 %v388
    %600 = vmatpush.bf16.msra.mxu0 %v384
    %601 = vmatmul.bf16.gmra.mxu0 %v185
    %v602 = vpop.f32.mrf.mxu0
    %v603 = vadd.f32 %v174, %v602
    %v604 = vpop.f32.mrf.mxu0
    %v605 = vadd.f32 %v174, %v604
    %606 = vdwg.mxu0
    %607 = vmatpush.bf16.msra.mxu0 %v444
    %608 = vmatpush.bf16.msra.mxu0 %v440
    %609 = vmatpush.bf16.msra.mxu0 %v436
    %610 = vmatpush.bf16.msra.mxu0 %v432
    %611 = vmatpush.bf16.msra.mxu0 %v428
    %612 = vmatpush.bf16.msra.mxu0 %v424
    %613 = vmatpush.bf16.msra.mxu0 %v420
    %614 = vmatpush.bf16.msra.mxu0 %v416
    %615 = vmatmul.bf16.gmra.mxu0 %v186
    %v616 = vpop.f32.mrf.mxu0
    %v617 = vadd.f32 %v603, %v616
    %v618 = vpop.f32.mrf.mxu0
    %v619 = vadd.f32 %v605, %v618
    %620 = vdwg.mxu0
    %v621 = vmin.f32 %v533, 20.0
    %v622 = vmin.f32 %v561, 20.0
    %v623 = vmin.f32 %v589, 20.0
    %v624 = vmin.f32 %v617, 20.0
    %v625 = vmin.f32 %v535, 20.0
    %v626 = vmin.f32 %v563, 20.0
    %v627 = vmin.f32 %v591, 20.0
    %v628 = vmin.f32 %v619, 20.0
    %vm629 = vcmp.gt.f32.partialorder %v533, 20.0
    %vm630 = vcmp.gt.f32.partialorder %v561, 20.0
    %vm631 = vcmp.gt.f32.partialorder %v589, 20.0
    %vm632 = vcmp.gt.f32.partialorder %v617, 20.0
    %vm633 = vcmp.gt.f32.partialorder %v535, 20.0
    %vm634 = vcmp.gt.f32.partialorder %v563, 20.0
    %vm635 = vcmp.gt.f32.partialorder %v591, 20.0
    %vm636 = vcmp.gt.f32.partialorder %v619, 20.0
    %v637 = vmul.f32 %v621, 1.442695
    %v638 = vpow.pop %v637
    %v639 = vmul.f32 %v622, 1.442695
    %v640 = vpow.pop %v639
    %v641 = vmul.f32 %v623, 1.442695
    %v642 = vpow.pop %v641
    %v643 = vmul.f32 %v624, 1.442695
    %v644 = vpow.pop %v643
    %v645 = vmul.f32 %v625, 1.442695
    %v646 = vpow.pop %v645
    %v647 = vmul.f32 %v626, 1.442695
    %v648 = vpow.pop %v647
    %v649 = vmul.f32 %v627, 1.442695
    %v650 = vpow.pop %v649
    %v651 = vmul.f32 %v628, 1.442695
    %v652 = vpow.pop %v651
    %v653 = vadd.f32 %v638, 1.0
    %v654 = vlog2.pop %v653
    %v655 = vmul.f32 %v654, 0.6931472
    %v656 = vmul.f32 -0.5, %v638
    %v657 = vadd.f32 %v656, 1.0
    %v658 = vmul.f32 %v657, %v638
    %v659 = vand.u32 2147483647, %v638
    %vm660 = vcmp.lt.f32.partialorder %v659, 0.0004427343
    %v661 = vsel %vm660, %v658, %v655
    %v662 = vadd.f32 %v640, 1.0
    %v663 = vlog2.pop %v662
    %v664 = vmul.f32 %v663, 0.6931472
    %v665 = vmul.f32 -0.5, %v640
    %v666 = vadd.f32 %v665, 1.0
    %v667 = vmul.f32 %v666, %v640
    %v668 = vand.u32 2147483647, %v640
    %vm669 = vcmp.lt.f32.partialorder %v668, 0.0004427343
    %v670 = vsel %vm669, %v667, %v664
    %v671 = vadd.f32 %v642, 1.0
    %v672 = vlog2.pop %v671
    %v673 = vmul.f32 %v672, 0.6931472
    %v674 = vmul.f32 -0.5, %v642
    %v675 = vadd.f32 %v674, 1.0
    %v676 = vmul.f32 %v675, %v642
    %v677 = vand.u32 2147483647, %v642
    %vm678 = vcmp.lt.f32.partialorder %v677, 0.0004427343
    %v679 = vsel %vm678, %v676, %v673
    %v680 = vadd.f32 %v644, 1.0
    %v681 = vlog2.pop %v680
    %v682 = vmul.f32 %v681, 0.6931472
    %v683 = vmul.f32 -0.5, %v644
    %v684 = vadd.f32 %v683, 1.0
    %v685 = vmul.f32 %v684, %v644
    %v686 = vand.u32 2147483647, %v644
    %vm687 = vcmp.lt.f32.partialorder %v686, 0.0004427343
    %v688 = vsel %vm687, %v685, %v682
    %v689 = vadd.f32 %v646, 1.0
    %v690 = vlog2.pop %v689
    %v691 = vmul.f32 %v690, 0.6931472
    %v692 = vmul.f32 -0.5, %v646
    %v693 = vadd.f32 %v692, 1.0
    %v694 = vmul.f32 %v693, %v646
    %v695 = vand.u32 2147483647, %v646
    %vm696 = vcmp.lt.f32.partialorder %v695, 0.0004427343
    %v697 = vsel %vm696, %v694, %v691
    %v698 = vadd.f32 %v648, 1.0
    %v699 = vlog2.pop %v698
    %v700 = vmul.f32 %v699, 0.6931472
    %v701 = vmul.f32 -0.5, %v648
    %v702 = vadd.f32 %v701, 1.0
    %v703 = vmul.f32 %v702, %v648
    %v704 = vand.u32 2147483647, %v648
    %vm705 = vcmp.lt.f32.partialorder %v704, 0.0004427343
    %v706 = vsel %vm705, %v703, %v700
    %v707 = vadd.f32 %v650, 1.0
    %v708 = vlog2.pop %v707
    %v709 = vmul.f32 %v708, 0.6931472
    %v710 = vmul.f32 -0.5, %v650
    %v711 = vadd.f32 %v710, 1.0
    %v712 = vmul.f32 %v711, %v650
    %v713 = vand.u32 2147483647, %v650
    %vm714 = vcmp.lt.f32.partialorder %v713, 0.0004427343
    %v715 = vsel %vm714, %v712, %v709
    %v716 = vadd.f32 %v652, 1.0
    %v717 = vlog2.pop %v716
    %v718 = vmul.f32 %v717, 0.6931472
    %v719 = vmul.f32 -0.5, %v652
    %v720 = vadd.f32 %v719, 1.0
    %v721 = vmul.f32 %v720, %v652
    %v722 = vand.u32 2147483647, %v652
    %vm723 = vcmp.lt.f32.partialorder %v722, 0.0004427343
    %v724 = vsel %vm723, %v721, %v718
    %v725 = vsel %vm629, %v533, %v661
    %v726 = vsel %vm630, %v561, %v670
    %v727 = vsel %vm631, %v589, %v679
    %v728 = vsel %vm632, %v617, %v688
    %v729 = vsel %vm633, %v535, %v697
    %v730 = vsel %vm634, %v563, %v706
    %v731 = vsel %vm635, %v591, %v715
    %v732 = vsel %vm636, %v619, %v724
    %v733 = vpack.c.bf16 %v729, %v725
    %v734 = vpack.c.bf16 %v730, %v726
    %v735 = vpack.c.bf16 %v731, %v727
    %v736 = vpack.c.bf16 %v732, %v728
    %v737 = vld [vmem:[#allocation5] sm:$0xff]
    %v738 = vld [vmem:[#allocation5 + $0x8] sm:$0xff]
    %v739 = vld [vmem:[#allocation5 + $0x10] sm:$0xff]
    %v740 = vld [vmem:[#allocation5 + $0x18] sm:$0xff]
    %v741 = vld [vmem:[#allocation5 + $0x20] sm:$0xff]
    %v742 = vld [vmem:[#allocation5 + $0x28] sm:$0xff]
    %v743 = vld [vmem:[#allocation5 + $0x30] sm:$0xff]
    %v744 = vld [vmem:[#allocation5 + $0x38] sm:$0xff]
    %v745 = vld [vmem:[#allocation5 + $0x40] sm:$0xff]
    %v746 = vld [vmem:[#allocation5 + $0x48] sm:$0xff]
    %v747 = vld [vmem:[#allocation5 + $0x50] sm:$0xff]
    %v748 = vld [vmem:[#allocation5 + $0x58] sm:$0xff]
    %v749 = vld [vmem:[#allocation5 + $0x60] sm:$0xff]
    %v750 = vld [vmem:[#allocation5 + $0x68] sm:$0xff]
    %v751 = vld [vmem:[#allocation5 + $0x70] sm:$0xff]
    %v752 = vld [vmem:[#allocation5 + $0x78] sm:$0xff]
    %v753 = vld [vmem:[#allocation5 + $0x80] sm:$0xff]
    %v754 = vld [vmem:[#allocation5 + $0x88] sm:$0xff]
    %v755 = vld [vmem:[#allocation5 + $0x90] sm:$0xff]
    %v756 = vld [vmem:[#allocation5 + $0x98] sm:$0xff]
    %v757 = vld [vmem:[#allocation5 + $0xa0] sm:$0xff]
    %v758 = vld [vmem:[#allocation5 + $0xa8] sm:$0xff]
    %v759 = vld [vmem:[#allocation5 + $0xb0] sm:$0xff]
    %v760 = vld [vmem:[#allocation5 + $0xb8] sm:$0xff]
    %v761 = vld [vmem:[#allocation5 + $0xc0] sm:$0xff]
    %v762 = vld [vmem:[#allocation5 + $0xc8] sm:$0xff]
    %v763 = vld [vmem:[#allocation5 + $0xd0] sm:$0xff]
    %v764 = vld [vmem:[#allocation5 + $0xd8] sm:$0xff]
    %v765 = vld [vmem:[#allocation5 + $0xe0] sm:$0xff]
    %v766 = vld [vmem:[#allocation5 + $0xe8] sm:$0xff]
    %v767 = vld [vmem:[#allocation5 + $0xf0] sm:$0xff]
    %v768 = vld [vmem:[#allocation5 + $0xf8] sm:$0xff]
    %v769 = vld [vmem:[#allocation5 + $0x100] sm:$0xff]
    %v770 = vld [vmem:[#allocation5 + $0x108] sm:$0xff]
    %v771 = vld [vmem:[#allocation5 + $0x110] sm:$0xff]
    %v772 = vld [vmem:[#allocation5 + $0x118] sm:$0xff]
    %v773 = vld [vmem:[#allocation5 + $0x120] sm:$0xff]
    %v774 = vld [vmem:[#allocation5 + $0x128] sm:$0xff]
    %v775 = vld [vmem:[#allocation5 + $0x130] sm:$0xff]
    %v776 = vld [vmem:[#allocation5 + $0x138] sm:$0xff]
    %v777 = vld [vmem:[#allocation5 + $0x140] sm:$0xff]
    %v778 = vld [vmem:[#allocation5 + $0x148] sm:$0xff]
    %v779 = vld [vmem:[#allocation5 + $0x150] sm:$0xff]
    %v780 = vld [vmem:[#allocation5 + $0x158] sm:$0xff]
    %v781 = vld [vmem:[#allocation5 + $0x160] sm:$0xff]
    %v782 = vld [vmem:[#allocation5 + $0x168] sm:$0xff]
    %v783 = vld [vmem:[#allocation5 + $0x170] sm:$0xff]
    %v784 = vld [vmem:[#allocation5 + $0x178] sm:$0xff]
    %v785 = vld [vmem:[#allocation5 + $0x180] sm:$0xff]
    %v786 = vld [vmem:[#allocation5 + $0x188] sm:$0xff]
    %v787 = vld [vmem:[#allocation5 + $0x190] sm:$0xff]
    %v788 = vld [vmem:[#allocation5 + $0x198] sm:$0xff]
    %v789 = vld [vmem:[#allocation5 + $0x1a0] sm:$0xff]
    %v790 = vld [vmem:[#allocation5 + $0x1a8] sm:$0xff]
    %v791 = vld [vmem:[#allocation5 + $0x1b0] sm:$0xff]
    %v792 = vld [vmem:[#allocation5 + $0x1b8] sm:$0xff]
    %v793 = vld [vmem:[#allocation5 + $0x1c0] sm:$0xff]
    %v794 = vld [vmem:[#allocation5 + $0x1c8] sm:$0xff]
    %v795 = vld [vmem:[#allocation5 + $0x1d0] sm:$0xff]
    %v796 = vld [vmem:[#allocation5 + $0x1d8] sm:$0xff]
    %v797 = vld [vmem:[#allocation5 + $0x1e0] sm:$0xff]
    %v798 = vld [vmem:[#allocation5 + $0x1e8] sm:$0xff]
    %v799 = vld [vmem:[#allocation5 + $0x1f0] sm:$0xff]
    %v800 = vld [vmem:[#allocation5 + $0x1f8] sm:$0xff]
    %v801 = vld [vmem:[#allocation5 + $0x200] sm:$0xff]
    %v802 = vld [vmem:[#allocation5 + $0x208] sm:$0xff]
    %v803 = vld [vmem:[#allocation5 + $0x210] sm:$0xff]
    %v804 = vld [vmem:[#allocation5 + $0x218] sm:$0xff]
    %v805 = vld [vmem:[#allocation5 + $0x220] sm:$0xff]
    %v806 = vld [vmem:[#allocation5 + $0x228] sm:$0xff]
    %v807 = vld [vmem:[#allocation5 + $0x230] sm:$0xff]
    %v808 = vld [vmem:[#allocation5 + $0x238] sm:$0xff]
    %v809 = vld [vmem:[#allocation5 + $0x240] sm:$0xff]
    %v810 = vld [vmem:[#allocation5 + $0x248] sm:$0xff]
    %v811 = vld [vmem:[#allocation5 + $0x250] sm:$0xff]
    %v812 = vld [vmem:[#allocation5 + $0x258] sm:$0xff]
    %v813 = vld [vmem:[#allocation5 + $0x260] sm:$0xff]
    %v814 = vld [vmem:[#allocation5 + $0x268] sm:$0xff]
    %v815 = vld [vmem:[#allocation5 + $0x270] sm:$0xff]
    %v816 = vld [vmem:[#allocation5 + $0x278] sm:$0xff]
    %v817 = vld [vmem:[#allocation5 + $0x280] sm:$0xff]
    %v818 = vld [vmem:[#allocation5 + $0x288] sm:$0xff]
    %v819 = vld [vmem:[#allocation5 + $0x290] sm:$0xff]
    %v820 = vld [vmem:[#allocation5 + $0x298] sm:$0xff]
    %v821 = vld [vmem:[#allocation5 + $0x2a0] sm:$0xff]
    %v822 = vld [vmem:[#allocation5 + $0x2a8] sm:$0xff]
    %v823 = vld [vmem:[#allocation5 + $0x2b0] sm:$0xff]
    %v824 = vld [vmem:[#allocation5 + $0x2b8] sm:$0xff]
    %v825 = vld [vmem:[#allocation5 + $0x2c0] sm:$0xff]
    %v826 = vld [vmem:[#allocation5 + $0x2c8] sm:$0xff]
    %v827 = vld [vmem:[#allocation5 + $0x2d0] sm:$0xff]
    %v828 = vld [vmem:[#allocation5 + $0x2d8] sm:$0xff]
    %v829 = vld [vmem:[#allocation5 + $0x2e0] sm:$0xff]
    %v830 = vld [vmem:[#allocation5 + $0x2e8] sm:$0xff]
    %v831 = vld [vmem:[#allocation5 + $0x2f0] sm:$0xff]
    %v832 = vld [vmem:[#allocation5 + $0x2f8] sm:$0xff]
    %v833 = vld [vmem:[#allocation5 + $0x300] sm:$0xff]
    %v834 = vld [vmem:[#allocation5 + $0x308] sm:$0xff]
    %v835 = vld [vmem:[#allocation5 + $0x310] sm:$0xff]
    %v836 = vld [vmem:[#allocation5 + $0x318] sm:$0xff]
    %v837 = vld [vmem:[#allocation5 + $0x320] sm:$0xff]
    %v838 = vld [vmem:[#allocation5 + $0x328] sm:$0xff]
    %v839 = vld [vmem:[#allocation5 + $0x330] sm:$0xff]
    %v840 = vld [vmem:[#allocation5 + $0x338] sm:$0xff]
    %v841 = vld [vmem:[#allocation5 + $0x340] sm:$0xff]
    %v842 = vld [vmem:[#allocation5 + $0x348] sm:$0xff]
    %v843 = vld [vmem:[#allocation5 + $0x350] sm:$0xff]
    %v844 = vld [vmem:[#allocation5 + $0x358] sm:$0xff]
    %v845 = vld [vmem:[#allocation5 + $0x360] sm:$0xff]
    %v846 = vld [vmem:[#allocation5 + $0x368] sm:$0xff]
    %v847 = vld [vmem:[#allocation5 + $0x370] sm:$0xff]
    %v848 = vld [vmem:[#allocation5 + $0x378] sm:$0xff]
    %v849 = vld [vmem:[#allocation5 + $0x380] sm:$0xff]
    %v850 = vld [vmem:[#allocation5 + $0x388] sm:$0xff]
    %v851 = vld [vmem:[#allocation5 + $0x390] sm:$0xff]
    %v852 = vld [vmem:[#allocation5 + $0x398] sm:$0xff]
    %v853 = vld [vmem:[#allocation5 + $0x3a0] sm:$0xff]
    %v854 = vld [vmem:[#allocation5 + $0x3a8] sm:$0xff]
    %v855 = vld [vmem:[#allocation5 + $0x3b0] sm:$0xff]
    %v856 = vld [vmem:[#allocation5 + $0x3b8] sm:$0xff]
    %v857 = vld [vmem:[#allocation5 + $0x3c0] sm:$0xff]
    %v858 = vld [vmem:[#allocation5 + $0x3c8] sm:$0xff]
    %v859 = vld [vmem:[#allocation5 + $0x3d0] sm:$0xff]
    %v860 = vld [vmem:[#allocation5 + $0x3d8] sm:$0xff]
    %v861 = vld [vmem:[#allocation5 + $0x3e0] sm:$0xff]
    %v862 = vld [vmem:[#allocation5 + $0x3e8] sm:$0xff]
    %v863 = vld [vmem:[#allocation5 + $0x3f0] sm:$0xff]
    %v864 = vld [vmem:[#allocation5 + $0x3f8] sm:$0xff]
    %v865 = vld [vmem:[%s4] sm:$0xf]
    %v867 = vperm.slane %v865, 0
    %v868 = vperm.slane %v865, 1
    %v869 = vperm.slane %v865, 2
    %v870 = vperm.slane %v865, 3
    %v1003 = vunpack.c.l.b16 %v737
    %v1004 = vunpack.c.h.b16 %v737
    %v1005 = vunpack.c.l.b16 %v738
    %v1006 = vunpack.c.h.b16 %v738
    %v1007 = vunpack.c.l.b16 %v739
    %v1008 = vunpack.c.h.b16 %v739
    %v1009 = vunpack.c.l.b16 %v740
    %v1010 = vunpack.c.h.b16 %v740
    %v1011 = vunpack.c.l.b16 %v741
    %v1012 = vunpack.c.h.b16 %v741
    %v1013 = vunpack.c.l.b16 %v742
    %v1014 = vunpack.c.h.b16 %v742
    %v1015 = vunpack.c.l.b16 %v743
    %v1016 = vunpack.c.h.b16 %v743
    %v1017 = vunpack.c.l.b16 %v744
    %v1018 = vunpack.c.h.b16 %v744
    %v1019 = vunpack.c.l.b16 %v745
    %v1020 = vunpack.c.h.b16 %v745
    %v1021 = vunpack.c.l.b16 %v746
    %v1022 = vunpack.c.h.b16 %v746
    %v1023 = vunpack.c.l.b16 %v747
    %v1024 = vunpack.c.h.b16 %v747
    %v1025 = vunpack.c.l.b16 %v748
    %v1026 = vunpack.c.h.b16 %v748
    %v1027 = vunpack.c.l.b16 %v749
    %v1028 = vunpack.c.h.b16 %v749
    %v1029 = vunpack.c.l.b16 %v750
    %v1030 = vunpack.c.h.b16 %v750
    %v1031 = vunpack.c.l.b16 %v751
    %v1032 = vunpack.c.h.b16 %v751
    %v1033 = vunpack.c.l.b16 %v752
    %v1034 = vunpack.c.h.b16 %v752
    %v1035 = vunpack.c.l.b16 %v753
    %v1036 = vunpack.c.h.b16 %v753
    %v1037 = vunpack.c.l.b16 %v754
    %v1038 = vunpack.c.h.b16 %v754
    %v1039 = vunpack.c.l.b16 %v755
    %v1040 = vunpack.c.h.b16 %v755
    %v1041 = vunpack.c.l.b16 %v756
    %v1042 = vunpack.c.h.b16 %v756
    %v1043 = vunpack.c.l.b16 %v757
    %v1044 = vunpack.c.h.b16 %v757
    %v1045 = vunpack.c.l.b16 %v758
    %v1046 = vunpack.c.h.b16 %v758
    %v1047 = vunpack.c.l.b16 %v759
    %v1048 = vunpack.c.h.b16 %v759
    %v1049 = vunpack.c.l.b16 %v760
    %v1050 = vunpack.c.h.b16 %v760
    %v1051 = vunpack.c.l.b16 %v761
    %v1052 = vunpack.c.h.b16 %v761
    %v1053 = vunpack.c.l.b16 %v762
    %v1054 = vunpack.c.h.b16 %v762
    %v1055 = vunpack.c.l.b16 %v763
    %v1056 = vunpack.c.h.b16 %v763
    %v1057 = vunpack.c.l.b16 %v764
    %v1058 = vunpack.c.h.b16 %v764
    %v1059 = vunpack.c.l.b16 %v765
    %v1060 = vunpack.c.h.b16 %v765
    %v1061 = vunpack.c.l.b16 %v766
    %v1062 = vunpack.c.h.b16 %v766
    %v1063 = vunpack.c.l.b16 %v767
    %v1064 = vunpack.c.h.b16 %v767
    %v1065 = vunpack.c.l.b16 %v768
    %v1066 = vunpack.c.h.b16 %v768
    %v1067 = vunpack.c.l.b16 %v769
    %v1068 = vunpack.c.h.b16 %v769
    %v1069 = vunpack.c.l.b16 %v770
    %v1070 = vunpack.c.h.b16 %v770
    %v1071 = vunpack.c.l.b16 %v771
    %v1072 = vunpack.c.h.b16 %v771
    %v1073 = vunpack.c.l.b16 %v772
    %v1074 = vunpack.c.h.b16 %v772
    %v1075 = vunpack.c.l.b16 %v773
    %v1076 = vunpack.c.h.b16 %v773
    %v1077 = vunpack.c.l.b16 %v774
    %v1078 = vunpack.c.h.b16 %v774
    %v1079 = vunpack.c.l.b16 %v775
    %v1080 = vunpack.c.h.b16 %v775
    %v1081 = vunpack.c.l.b16 %v776
    %v1082 = vunpack.c.h.b16 %v776
    %v1083 = vunpack.c.l.b16 %v777
    %v1084 = vunpack.c.h.b16 %v777
    %v1085 = vunpack.c.l.b16 %v778
    %v1086 = vunpack.c.h.b16 %v778
    %v1087 = vunpack.c.l.b16 %v779
    %v1088 = vunpack.c.h.b16 %v779
    %v1089 = vunpack.c.l.b16 %v780
    %v1090 = vunpack.c.h.b16 %v780
    %v1091 = vunpack.c.l.b16 %v781
    %v1092 = vunpack.c.h.b16 %v781
    %v1093 = vunpack.c.l.b16 %v782
    %v1094 = vunpack.c.h.b16 %v782
    %v1095 = vunpack.c.l.b16 %v783
    %v1096 = vunpack.c.h.b16 %v783
    %v1097 = vunpack.c.l.b16 %v784
    %v1098 = vunpack.c.h.b16 %v784
    %v1099 = vunpack.c.l.b16 %v785
    %v1100 = vunpack.c.h.b16 %v785
    %v1101 = vunpack.c.l.b16 %v786
    %v1102 = vunpack.c.h.b16 %v786
    %v1103 = vunpack.c.l.b16 %v787
    %v1104 = vunpack.c.h.b16 %v787
    %v1105 = vunpack.c.l.b16 %v788
    %v1106 = vunpack.c.h.b16 %v788
    %v1107 = vunpack.c.l.b16 %v789
    %v1108 = vunpack.c.h.b16 %v789
    %v1109 = vunpack.c.l.b16 %v790
    %v1110 = vunpack.c.h.b16 %v790
    %v1111 = vunpack.c.l.b16 %v791
    %v1112 = vunpack.c.h.b16 %v791
    %v1113 = vunpack.c.l.b16 %v792
    %v1114 = vunpack.c.h.b16 %v792
    %v1115 = vunpack.c.l.b16 %v793
    %v1116 = vunpack.c.h.b16 %v793
    %v1117 = vunpack.c.l.b16 %v794
    %v1118 = vunpack.c.h.b16 %v794
    %v1119 = vunpack.c.l.b16 %v795
    %v1120 = vunpack.c.h.b16 %v795
    %v1121 = vunpack.c.l.b16 %v796
    %v1122 = vunpack.c.h.b16 %v796
    %v1123 = vunpack.c.l.b16 %v797
    %v1124 = vunpack.c.h.b16 %v797
    %v1125 = vunpack.c.l.b16 %v798
    %v1126 = vunpack.c.h.b16 %v798
    %v1127 = vunpack.c.l.b16 %v799
    %v1128 = vunpack.c.h.b16 %v799
    %v1129 = vunpack.c.l.b16 %v800
    %v1130 = vunpack.c.h.b16 %v800
    %v1131 = vunpack.c.l.b16 %v801
    %v1132 = vunpack.c.h.b16 %v801
    %v1133 = vunpack.c.l.b16 %v802
    %v1134 = vunpack.c.h.b16 %v802
    %v1135 = vunpack.c.l.b16 %v803
    %v1136 = vunpack.c.h.b16 %v803
    %v1137 = vunpack.c.l.b16 %v804
    %v1138 = vunpack.c.h.b16 %v804
    %v1139 = vunpack.c.l.b16 %v805
    %v1140 = vunpack.c.h.b16 %v805
    %v1141 = vunpack.c.l.b16 %v806
    %v1142 = vunpack.c.h.b16 %v806
    %v1143 = vunpack.c.l.b16 %v807
    %v1144 = vunpack.c.h.b16 %v807
    %v1145 = vunpack.c.l.b16 %v808
    %v1146 = vunpack.c.h.b16 %v808
    %v1147 = vunpack.c.l.b16 %v809
    %v1148 = vunpack.c.h.b16 %v809
    %v1149 = vunpack.c.l.b16 %v810
    %v1150 = vunpack.c.h.b16 %v810
    %v1151 = vunpack.c.l.b16 %v811
    %v1152 = vunpack.c.h.b16 %v811
    %v1153 = vunpack.c.l.b16 %v812
    %v1154 = vunpack.c.h.b16 %v812
    %v1155 = vunpack.c.l.b16 %v813
    %v1156 = vunpack.c.h.b16 %v813
    %v1157 = vunpack.c.l.b16 %v814
    %v1158 = vunpack.c.h.b16 %v814
    %v1159 = vunpack.c.l.b16 %v815
    %v1160 = vunpack.c.h.b16 %v815
    %v1161 = vunpack.c.l.b16 %v816
    %v1162 = vunpack.c.h.b16 %v816
    %v1163 = vunpack.c.l.b16 %v817
    %v1164 = vunpack.c.h.b16 %v817
    %v1165 = vunpack.c.l.b16 %v818
    %v1166 = vunpack.c.h.b16 %v818
    %v1167 = vunpack.c.l.b16 %v819
    %v1168 = vunpack.c.h.b16 %v819
    %v1169 = vunpack.c.l.b16 %v820
    %v1170 = vunpack.c.h.b16 %v820
    %v1171 = vunpack.c.l.b16 %v821
    %v1172 = vunpack.c.h.b16 %v821
    %v1173 = vunpack.c.l.b16 %v822
    %v1174 = vunpack.c.h.b16 %v822
    %v1175 = vunpack.c.l.b16 %v823
    %v1176 = vunpack.c.h.b16 %v823
    %v1177 = vunpack.c.l.b16 %v824
    %v1178 = vunpack.c.h.b16 %v824
    %v1179 = vunpack.c.l.b16 %v825
    %v1180 = vunpack.c.h.b16 %v825
    %v1181 = vunpack.c.l.b16 %v826
    %v1182 = vunpack.c.h.b16 %v826
    %v1183 = vunpack.c.l.b16 %v827
    %v1184 = vunpack.c.h.b16 %v827
    %v1185 = vunpack.c.l.b16 %v828
    %v1186 = vunpack.c.h.b16 %v828
    %v1187 = vunpack.c.l.b16 %v829
    %v1188 = vunpack.c.h.b16 %v829
    %v1189 = vunpack.c.l.b16 %v830
    %v1190 = vunpack.c.h.b16 %v830
    %v1191 = vunpack.c.l.b16 %v831
    %v1192 = vunpack.c.h.b16 %v831
    %v1193 = vunpack.c.l.b16 %v832
    %v1194 = vunpack.c.h.b16 %v832
    %v1195 = vunpack.c.l.b16 %v833
    %v1196 = vunpack.c.h.b16 %v833
    %v1197 = vunpack.c.l.b16 %v834
    %v1198 = vunpack.c.h.b16 %v834
    %v1199 = vunpack.c.l.b16 %v835
    %v1200 = vunpack.c.h.b16 %v835
    %v1201 = vunpack.c.l.b16 %v836
    %v1202 = vunpack.c.h.b16 %v836
    %v1203 = vunpack.c.l.b16 %v837
    %v1204 = vunpack.c.h.b16 %v837
    %v1205 = vunpack.c.l.b16 %v838
    %v1206 = vunpack.c.h.b16 %v838
    %v1207 = vunpack.c.l.b16 %v839
    %v1208 = vunpack.c.h.b16 %v839
    %v1209 = vunpack.c.l.b16 %v840
    %v1210 = vunpack.c.h.b16 %v840
    %v1211 = vunpack.c.l.b16 %v841
    %v1212 = vunpack.c.h.b16 %v841
    %v1213 = vunpack.c.l.b16 %v842
    %v1214 = vunpack.c.h.b16 %v842
    %v1215 = vunpack.c.l.b16 %v843
    %v1216 = vunpack.c.h.b16 %v843
    %v1217 = vunpack.c.l.b16 %v844
    %v1218 = vunpack.c.h.b16 %v844
    %v1219 = vunpack.c.l.b16 %v845
    %v1220 = vunpack.c.h.b16 %v845
    %v1221 = vunpack.c.l.b16 %v846
    %v1222 = vunpack.c.h.b16 %v846
    %v1223 = vunpack.c.l.b16 %v847
    %v1224 = vunpack.c.h.b16 %v847
    %v1225 = vunpack.c.l.b16 %v848
    %v1226 = vunpack.c.h.b16 %v848
    %v1227 = vunpack.c.l.b16 %v849
    %v1228 = vunpack.c.h.b16 %v849
    %v1229 = vunpack.c.l.b16 %v850
    %v1230 = vunpack.c.h.b16 %v850
    %v1231 = vunpack.c.l.b16 %v851
    %v1232 = vunpack.c.h.b16 %v851
    %v1233 = vunpack.c.l.b16 %v852
    %v1234 = vunpack.c.h.b16 %v852
    %v1235 = vunpack.c.l.b16 %v853
    %v1236 = vunpack.c.h.b16 %v853
    %v1237 = vunpack.c.l.b16 %v854
    %v1238 = vunpack.c.h.b16 %v854
    %v1239 = vunpack.c.l.b16 %v855
    %v1240 = vunpack.c.h.b16 %v855
    %v1241 = vunpack.c.l.b16 %v856
    %v1242 = vunpack.c.h.b16 %v856
    %v1243 = vunpack.c.l.b16 %v857
    %v1244 = vunpack.c.h.b16 %v857
    %v1245 = vunpack.c.l.b16 %v858
    %v1246 = vunpack.c.h.b16 %v858
    %v1247 = vunpack.c.l.b16 %v859
    %v1248 = vunpack.c.h.b16 %v859
    %v1249 = vunpack.c.l.b16 %v860
    %v1250 = vunpack.c.h.b16 %v860
    %v1251 = vunpack.c.l.b16 %v861
    %v1252 = vunpack.c.h.b16 %v861
    %v1253 = vunpack.c.l.b16 %v862
    %v1254 = vunpack.c.h.b16 %v862
    %v1255 = vunpack.c.l.b16 %v863
    %v1256 = vunpack.c.h.b16 %v863
    %v1257 = vunpack.c.l.b16 %v864
    %v1258 = vunpack.c.h.b16 %v864
    %v1259 = vpack.c.b16 %v1007, %v1003
    %v1260 = vpack.c.b16 %v1008, %v1004
    %v1261 = vpack.c.b16 %v1009, %v1005
    %v1262 = vpack.c.b16 %v1010, %v1006
    %v1263 = vpack.c.b16 %v1015, %v1011
    %v1264 = vpack.c.b16 %v1016, %v1012
    %v1265 = vpack.c.b16 %v1017, %v1013
    %v1266 = vpack.c.b16 %v1018, %v1014
    %v1267 = vpack.c.b16 %v1023, %v1019
    %v1268 = vpack.c.b16 %v1024, %v1020
    %v1269 = vpack.c.b16 %v1025, %v1021
    %v1270 = vpack.c.b16 %v1026, %v1022
    %v1271 = vpack.c.b16 %v1031, %v1027
    %v1272 = vpack.c.b16 %v1032, %v1028
    %v1273 = vpack.c.b16 %v1033, %v1029
    %v1274 = vpack.c.b16 %v1034, %v1030
    %v1275 = vpack.c.b16 %v1039, %v1035
    %v1276 = vpack.c.b16 %v1040, %v1036
    %v1277 = vpack.c.b16 %v1041, %v1037
    %v1278 = vpack.c.b16 %v1042, %v1038
    %v1279 = vpack.c.b16 %v1047, %v1043
    %v1280 = vpack.c.b16 %v1048, %v1044
    %v1281 = vpack.c.b16 %v1049, %v1045
    %v1282 = vpack.c.b16 %v1050, %v1046
    %v1283 = vpack.c.b16 %v1055, %v1051
    %v1284 = vpack.c.b16 %v1056, %v1052
    %v1285 = vpack.c.b16 %v1057, %v1053
    %v1286 = vpack.c.b16 %v1058, %v1054
    %v1287 = vpack.c.b16 %v1063, %v1059
    %v1288 = vpack.c.b16 %v1064, %v1060
    %v1289 = vpack.c.b16 %v1065, %v1061
    %v1290 = vpack.c.b16 %v1066, %v1062
    %v1291 = vpack.c.b16 %v1071, %v1067
    %v1292 = vpack.c.b16 %v1072, %v1068
    %v1293 = vpack.c.b16 %v1073, %v1069
    %v1294 = vpack.c.b16 %v1074, %v1070
    %v1295 = vpack.c.b16 %v1079, %v1075
    %v1296 = vpack.c.b16 %v1080, %v1076
    %v1297 = vpack.c.b16 %v1081, %v1077
    %v1298 = vpack.c.b16 %v1082, %v1078
    %v1299 = vpack.c.b16 %v1087, %v1083
    %v1300 = vpack.c.b16 %v1088, %v1084
    %v1301 = vpack.c.b16 %v1089, %v1085
    %v1302 = vpack.c.b16 %v1090, %v1086
    %v1303 = vpack.c.b16 %v1095, %v1091
    %v1304 = vpack.c.b16 %v1096, %v1092
    %v1305 = vpack.c.b16 %v1097, %v1093
    %v1306 = vpack.c.b16 %v1098, %v1094
    %v1307 = vpack.c.b16 %v1103, %v1099
    %v1308 = vpack.c.b16 %v1104, %v1100
    %v1309 = vpack.c.b16 %v1105, %v1101
    %v1310 = vpack.c.b16 %v1106, %v1102
    %v1311 = vpack.c.b16 %v1111, %v1107
    %v1312 = vpack.c.b16 %v1112, %v1108
    %v1313 = vpack.c.b16 %v1113, %v1109
    %v1314 = vpack.c.b16 %v1114, %v1110
    %v1315 = vpack.c.b16 %v1119, %v1115
    %v1316 = vpack.c.b16 %v1120, %v1116
    %v1317 = vpack.c.b16 %v1121, %v1117
    %v1318 = vpack.c.b16 %v1122, %v1118
    %v1319 = vpack.c.b16 %v1127, %v1123
    %v1320 = vpack.c.b16 %v1128, %v1124
    %v1321 = vpack.c.b16 %v1129, %v1125
    %v1322 = vpack.c.b16 %v1130, %v1126
    %v1323 = vpack.c.b16 %v1135, %v1131
    %v1324 = vpack.c.b16 %v1136, %v1132
    %v1325 = vpack.c.b16 %v1137, %v1133
    %v1326 = vpack.c.b16 %v1138, %v1134
    %v1327 = vpack.c.b16 %v1143, %v1139
    %v1328 = vpack.c.b16 %v1144, %v1140
    %v1329 = vpack.c.b16 %v1145, %v1141
    %v1330 = vpack.c.b16 %v1146, %v1142
    %v1331 = vpack.c.b16 %v1151, %v1147
    %v1332 = vpack.c.b16 %v1152, %v1148
    %v1333 = vpack.c.b16 %v1153, %v1149
    %v1334 = vpack.c.b16 %v1154, %v1150
    %v1335 = vpack.c.b16 %v1159, %v1155
    %v1336 = vpack.c.b16 %v1160, %v1156
    %v1337 = vpack.c.b16 %v1161, %v1157
    %v1338 = vpack.c.b16 %v1162, %v1158
    %v1339 = vpack.c.b16 %v1167, %v1163
    %v1340 = vpack.c.b16 %v1168, %v1164
    %v1341 = vpack.c.b16 %v1169, %v1165
    %v1342 = vpack.c.b16 %v1170, %v1166
    %v1343 = vpack.c.b16 %v1175, %v1171
    %v1344 = vpack.c.b16 %v1176, %v1172
    %v1345 = vpack.c.b16 %v1177, %v1173
    %v1346 = vpack.c.b16 %v1178, %v1174
    %v1347 = vpack.c.b16 %v1183, %v1179
    %v1348 = vpack.c.b16 %v1184, %v1180
    %v1349 = vpack.c.b16 %v1185, %v1181
    %v1350 = vpack.c.b16 %v1186, %v1182
    %v1351 = vpack.c.b16 %v1191, %v1187
    %v1352 = vpack.c.b16 %v1192, %v1188
    %v1353 = vpack.c.b16 %v1193, %v1189
    %v1354 = vpack.c.b16 %v1194, %v1190
    %v1355 = vpack.c.b16 %v1199, %v1195
    %v1356 = vpack.c.b16 %v1200, %v1196
    %v1357 = vpack.c.b16 %v1201, %v1197
    %v1358 = vpack.c.b16 %v1202, %v1198
    %v1359 = vpack.c.b16 %v1207, %v1203
    %v1360 = vpack.c.b16 %v1208, %v1204
    %v1361 = vpack.c.b16 %v1209, %v1205
    %v1362 = vpack.c.b16 %v1210, %v1206
    %v1363 = vpack.c.b16 %v1215, %v1211
    %v1364 = vpack.c.b16 %v1216, %v1212
    %v1365 = vpack.c.b16 %v1217, %v1213
    %v1366 = vpack.c.b16 %v1218, %v1214
    %v1367 = vpack.c.b16 %v1223, %v1219
    %v1368 = vpack.c.b16 %v1224, %v1220
    %v1369 = vpack.c.b16 %v1225, %v1221
    %v1370 = vpack.c.b16 %v1226, %v1222
    %v1371 = vpack.c.b16 %v1231, %v1227
    %v1372 = vpack.c.b16 %v1232, %v1228
    %v1373 = vpack.c.b16 %v1233, %v1229
    %v1374 = vpack.c.b16 %v1234, %v1230
    %v1375 = vpack.c.b16 %v1239, %v1235
    %v1376 = vpack.c.b16 %v1240, %v1236
    %v1377 = vpack.c.b16 %v1241, %v1237
    %v1378 = vpack.c.b16 %v1242, %v1238
    %v1379 = vpack.c.b16 %v1247, %v1243
    %v1380 = vpack.c.b16 %v1248, %v1244
    %v1381 = vpack.c.b16 %v1249, %v1245
    %v1382 = vpack.c.b16 %v1250, %v1246
    %v1383 = vpack.c.b16 %v1255, %v1251
    %v1384 = vpack.c.b16 %v1256, %v1252
    %v1385 = vpack.c.b16 %v1257, %v1253
    %v1386 = vpack.c.b16 %v1258, %v1254
    %1515 = vmatpush.bf16.msra.mxu0 %v1287
    %1516 = vmatpush.bf16.msra.mxu0 %v1283
    %1517 = vmatpush.bf16.msra.mxu0 %v1279
    %1518 = vmatpush.bf16.msra.mxu0 %v1275
    %1519 = vmatpush.bf16.msra.mxu0 %v1271
    %1520 = vmatpush.bf16.msra.mxu0 %v1267
    %1521 = vmatpush.bf16.msra.mxu0 %v1263
    %1522 = vmatpush.bf16.msra.mxu0 %v1259
    %1523 = vmatmul.bf16.gmra.mxu0 %v733
    %v1524 = vpop.f32.mrf.mxu0
    %v1525 = vadd.f32 %v867, %v1524
    %v1526 = vpop.f32.mrf.mxu0
    %v1527 = vadd.f32 %v867, %v1526
    %1528 = vdwg.mxu0
    %1529 = vmatpush.bf16.msra.mxu0 %v1319
    %1530 = vmatpush.bf16.msra.mxu0 %v1315
    %1531 = vmatpush.bf16.msra.mxu0 %v1311
    %1532 = vmatpush.bf16.msra.mxu0 %v1307
    %1533 = vmatpush.bf16.msra.mxu0 %v1303
    %1534 = vmatpush.bf16.msra.mxu0 %v1299
    %1535 = vmatpush.bf16.msra.mxu0 %v1295
    %1536 = vmatpush.bf16.msra.mxu0 %v1291
    %1537 = vmatmul.bf16.gmra.mxu0 %v734
    %v1538 = vpop.f32.mrf.mxu0
    %v1539 = vadd.f32 %v1525, %v1538
    %v1540 = vpop.f32.mrf.mxu0
    %v1541 = vadd.f32 %v1527, %v1540
    %1542 = vdwg.mxu0
    %1543 = vmatpush.bf16.msra.mxu0 %v1351
    %1544 = vmatpush.bf16.msra.mxu0 %v1347
    %1545 = vmatpush.bf16.msra.mxu0 %v1343
    %1546 = vmatpush.bf16.msra.mxu0 %v1339
    %1547 = vmatpush.bf16.msra.mxu0 %v1335
    %1548 = vmatpush.bf16.msra.mxu0 %v1331
    %1549 = vmatpush.bf16.msra.mxu0 %v1327
    %1550 = vmatpush.bf16.msra.mxu0 %v1323
    %1551 = vmatmul.bf16.gmra.mxu0 %v735
    %v1552 = vpop.f32.mrf.mxu0
    %v1553 = vadd.f32 %v1539, %v1552
    %v1554 = vpop.f32.mrf.mxu0
    %v1555 = vadd.f32 %v1541, %v1554
    %1556 = vdwg.mxu0
    %1557 = vmatpush.bf16.msra.mxu0 %v1383
    %1558 = vmatpush.bf16.msra.mxu0 %v1379
    %1559 = vmatpush.bf16.msra.mxu0 %v1375
    %1560 = vmatpush.bf16.msra.mxu0 %v1371
    %1561 = vmatpush.bf16.msra.mxu0 %v1367
    %1562 = vmatpush.bf16.msra.mxu0 %v1363
    %1563 = vmatpush.bf16.msra.mxu0 %v1359
    %1564 = vmatpush.bf16.msra.mxu0 %v1355
    %1565 = vmatmul.bf16.gmra.mxu0 %v736
    %v1566 = vpop.f32.mrf.mxu0
    %v1567 = vadd.f32 %v1553, %v1566
    %v1568 = vpop.f32.mrf.mxu0
    %v1569 = vadd.f32 %v1555, %v1568
    %1570 = vdwg.mxu0
    %1571 = vmatpush.bf16.msra.mxu0 %v1288
    %1572 = vmatpush.bf16.msra.mxu0 %v1284
    %1573 = vmatpush.bf16.msra.mxu0 %v1280
    %1574 = vmatpush.bf16.msra.mxu0 %v1276
    %1575 = vmatpush.bf16.msra.mxu0 %v1272
    %1576 = vmatpush.bf16.msra.mxu0 %v1268
    %1577 = vmatpush.bf16.msra.mxu0 %v1264
    %1578 = vmatpush.bf16.msra.mxu0 %v1260
    %1579 = vmatmul.bf16.gmra.mxu0 %v733
    %v1580 = vpop.f32.mrf.mxu0
    %v1581 = vadd.f32 %v868, %v1580
    %v1582 = vpop.f32.mrf.mxu0
    %v1583 = vadd.f32 %v868, %v1582
    %1584 = vdwg.mxu0
    %1585 = vmatpush.bf16.msra.mxu0 %v1320
    %1586 = vmatpush.bf16.msra.mxu0 %v1316
    %1587 = vmatpush.bf16.msra.mxu0 %v1312
    %1588 = vmatpush.bf16.msra.mxu0 %v1308
    %1589 = vmatpush.bf16.msra.mxu0 %v1304
    %1590 = vmatpush.bf16.msra.mxu0 %v1300
    %1591 = vmatpush.bf16.msra.mxu0 %v1296
    %1592 = vmatpush.bf16.msra.mxu0 %v1292
    %1593 = vmatmul.bf16.gmra.mxu0 %v734
    %v1594 = vpop.f32.mrf.mxu0
    %v1595 = vadd.f32 %v1581, %v1594
    %v1596 = vpop.f32.mrf.mxu0
    %v1597 = vadd.f32 %v1583, %v1596
    %1598 = vdwg.mxu0
    %1599 = vmatpush.bf16.msra.mxu0 %v1352
    %1600 = vmatpush.bf16.msra.mxu0 %v1348
    %1601 = vmatpush.bf16.msra.mxu0 %v1344
    %1602 = vmatpush.bf16.msra.mxu0 %v1340
    %1603 = vmatpush.bf16.msra.mxu0 %v1336
    %1604 = vmatpush.bf16.msra.mxu0 %v1332
    %1605 = vmatpush.bf16.msra.mxu0 %v1328
    %1606 = vmatpush.bf16.msra.mxu0 %v1324
    %1607 = vmatmul.bf16.gmra.mxu0 %v735
    %v1608 = vpop.f32.mrf.mxu0
    %v1609 = vadd.f32 %v1595, %v1608
    %v1610 = vpop.f32.mrf.mxu0
    %v1611 = vadd.f32 %v1597, %v1610
    %1612 = vdwg.mxu0
    %1613 = vmatpush.bf16.msra.mxu0 %v1384
    %1614 = vmatpush.bf16.msra.mxu0 %v1380
    %1615 = vmatpush.bf16.msra.mxu0 %v1376
    %1616 = vmatpush.bf16.msra.mxu0 %v1372
    %1617 = vmatpush.bf16.msra.mxu0 %v1368
    %1618 = vmatpush.bf16.msra.mxu0 %v1364
    %1619 = vmatpush.bf16.msra.mxu0 %v1360
    %1620 = vmatpush.bf16.msra.mxu0 %v1356
    %1621 = vmatmul.bf16.gmra.mxu0 %v736
    %v1622 = vpop.f32.mrf.mxu0
    %v1623 = vadd.f32 %v1609, %v1622
    %v1624 = vpop.f32.mrf.mxu0
    %v1625 = vadd.f32 %v1611, %v1624
    %1626 = vdwg.mxu0
    %1627 = vmatpush.bf16.msra.mxu0 %v1289
    %1628 = vmatpush.bf16.msra.mxu0 %v1285
    %1629 = vmatpush.bf16.msra.mxu0 %v1281
    %1630 = vmatpush.bf16.msra.mxu0 %v1277
    %1631 = vmatpush.bf16.msra.mxu0 %v1273
    %1632 = vmatpush.bf16.msra.mxu0 %v1269
    %1633 = vmatpush.bf16.msra.mxu0 %v1265
    %1634 = vmatpush.bf16.msra.mxu0 %v1261
    %1635 = vmatmul.bf16.gmra.mxu0 %v733
    %v1636 = vpop.f32.mrf.mxu0
    %v1637 = vadd.f32 %v869, %v1636
    %v1638 = vpop.f32.mrf.mxu0
    %v1639 = vadd.f32 %v869, %v1638
    %1640 = vdwg.mxu0
    %1641 = vmatpush.bf16.msra.mxu0 %v1321
    %1642 = vmatpush.bf16.msra.mxu0 %v1317
    %1643 = vmatpush.bf16.msra.mxu0 %v1313
    %1644 = vmatpush.bf16.msra.mxu0 %v1309
    %1645 = vmatpush.bf16.msra.mxu0 %v1305
    %1646 = vmatpush.bf16.msra.mxu0 %v1301
    %1647 = vmatpush.bf16.msra.mxu0 %v1297
    %1648 = vmatpush.bf16.msra.mxu0 %v1293
    %1649 = vmatmul.bf16.gmra.mxu0 %v734
    %v1650 = vpop.f32.mrf.mxu0
    %v1651 = vadd.f32 %v1637, %v1650
    %v1652 = vpop.f32.mrf.mxu0
    %v1653 = vadd.f32 %v1639, %v1652
    %1654 = vdwg.mxu0
    %1655 = vmatpush.bf16.msra.mxu0 %v1353
    %1656 = vmatpush.bf16.msra.mxu0 %v1349
    %1657 = vmatpush.bf16.msra.mxu0 %v1345
    %1658 = vmatpush.bf16.msra.mxu0 %v1341
    %1659 = vmatpush.bf16.msra.mxu0 %v1337
    %1660 = vmatpush.bf16.msra.mxu0 %v1333
    %1661 = vmatpush.bf16.msra.mxu0 %v1329
    %1662 = vmatpush.bf16.msra.mxu0 %v1325
    %1663 = vmatmul.bf16.gmra.mxu0 %v735
    %v1664 = vpop.f32.mrf.mxu0
    %v1665 = vadd.f32 %v1651, %v1664
    %v1666 = vpop.f32.mrf.mxu0
    %v1667 = vadd.f32 %v1653, %v1666
    %1668 = vdwg.mxu0
    %1669 = vmatpush.bf16.msra.mxu0 %v1385
    %1670 = vmatpush.bf16.msra.mxu0 %v1381
    %1671 = vmatpush.bf16.msra.mxu0 %v1377
    %1672 = vmatpush.bf16.msra.mxu0 %v1373
    %1673 = vmatpush.bf16.msra.mxu0 %v1369
    %1674 = vmatpush.bf16.msra.mxu0 %v1365
    %1675 = vmatpush.bf16.msra.mxu0 %v1361
    %1676 = vmatpush.bf16.msra.mxu0 %v1357
    %1677 = vmatmul.bf16.gmra.mxu0 %v736
    %v1678 = vpop.f32.mrf.mxu0
    %v1679 = vadd.f32 %v1665, %v1678
    %v1680 = vpop.f32.mrf.mxu0
    %v1681 = vadd.f32 %v1667, %v1680
    %1682 = vdwg.mxu0
    %1683 = vmatpush.bf16.msra.mxu0 %v1290
    %1684 = vmatpush.bf16.msra.mxu0 %v1286
    %1685 = vmatpush.bf16.msra.mxu0 %v1282
    %1686 = vmatpush.bf16.msra.mxu0 %v1278
    %1687 = vmatpush.bf16.msra.mxu0 %v1274
    %1688 = vmatpush.bf16.msra.mxu0 %v1270
    %1689 = vmatpush.bf16.msra.mxu0 %v1266
    %1690 = vmatpush.bf16.msra.mxu0 %v1262
    %1691 = vmatmul.bf16.gmra.mxu0 %v733
    %v1692 = vpop.f32.mrf.mxu0
    %v1693 = vadd.f32 %v870, %v1692
    %v1694 = vpop.f32.mrf.mxu0
    %v1695 = vadd.f32 %v870, %v1694
    %1696 = vdwg.mxu0
    %1697 = vmatpush.bf16.msra.mxu0 %v1322
    %1698 = vmatpush.bf16.msra.mxu0 %v1318
    %1699 = vmatpush.bf16.msra.mxu0 %v1314
    %1700 = vmatpush.bf16.msra.mxu0 %v1310
    %1701 = vmatpush.bf16.msra.mxu0 %v1306
    %1702 = vmatpush.bf16.msra.mxu0 %v1302
    %1703 = vmatpush.bf16.msra.mxu0 %v1298
    %1704 = vmatpush.bf16.msra.mxu0 %v1294
    %1705 = vmatmul.bf16.gmra.mxu0 %v734
    %v1706 = vpop.f32.mrf.mxu0
    %v1707 = vadd.f32 %v1693, %v1706
    %v1708 = vpop.f32.mrf.mxu0
    %v1709 = vadd.f32 %v1695, %v1708
    %1710 = vdwg.mxu0
    %1711 = vmatpush.bf16.msra.mxu0 %v1354
    %1712 = vmatpush.bf16.msra.mxu0 %v1350
    %1713 = vmatpush.bf16.msra.mxu0 %v1346
    %1714 = vmatpush.bf16.msra.mxu0 %v1342
    %1715 = vmatpush.bf16.msra.mxu0 %v1338
    %1716 = vmatpush.bf16.msra.mxu0 %v1334
    %1717 = vmatpush.bf16.msra.mxu0 %v1330
    %1718 = vmatpush.bf16.msra.mxu0 %v1326
    %1719 = vmatmul.bf16.gmra.mxu0 %v735
    %v1720 = vpop.f32.mrf.mxu0
    %v1721 = vadd.f32 %v1707, %v1720
    %v1722 = vpop.f32.mrf.mxu0
    %v1723 = vadd.f32 %v1709, %v1722
    %1724 = vdwg.mxu0
    %1725 = vmatpush.bf16.msra.mxu0 %v1386
    %1726 = vmatpush.bf16.msra.mxu0 %v1382
    %1727 = vmatpush.bf16.msra.mxu0 %v1378
    %1728 = vmatpush.bf16.msra.mxu0 %v1374
    %1729 = vmatpush.bf16.msra.mxu0 %v1370
    %1730 = vmatpush.bf16.msra.mxu0 %v1366
    %1731 = vmatpush.bf16.msra.mxu0 %v1362
    %1732 = vmatpush.bf16.msra.mxu0 %v1358
    %1733 = vmatmul.bf16.gmra.mxu0 %v736
    %v1734 = vpop.f32.mrf.mxu0
    %v1735 = vadd.f32 %v1721, %v1734
    %v1736 = vpop.f32.mrf.mxu0
    %v1737 = vadd.f32 %v1723, %v1736
    %1738 = vdwg.mxu0
    %v1739 = vmin.f32 %v1567, 20.0
    %v1740 = vmin.f32 %v1623, 20.0
    %v1741 = vmin.f32 %v1679, 20.0
    %v1742 = vmin.f32 %v1735, 20.0
    %v1743 = vmin.f32 %v1569, 20.0
    %v1744 = vmin.f32 %v1625, 20.0
    %v1745 = vmin.f32 %v1681, 20.0
    %v1746 = vmin.f32 %v1737, 20.0
    %vm1747 = vcmp.gt.f32.partialorder %v1567, 20.0
    %vm1748 = vcmp.gt.f32.partialorder %v1623, 20.0
    %vm1749 = vcmp.gt.f32.partialorder %v1679, 20.0
    %vm1750 = vcmp.gt.f32.partialorder %v1735, 20.0
    %vm1751 = vcmp.gt.f32.partialorder %v1569, 20.0
    %vm1752 = vcmp.gt.f32.partialorder %v1625, 20.0
    %vm1753 = vcmp.gt.f32.partialorder %v1681, 20.0
    %vm1754 = vcmp.gt.f32.partialorder %v1737, 20.0
    %v1755 = vmul.f32 %v1739, 1.442695
    %v1756 = vpow.pop %v1755
    %v1757 = vmul.f32 %v1740, 1.442695
    %v1758 = vpow.pop %v1757
    %v1759 = vmul.f32 %v1741, 1.442695
    %v1760 = vpow.pop %v1759
    %v1761 = vmul.f32 %v1742, 1.442695
    %v1762 = vpow.pop %v1761
    %v1763 = vmul.f32 %v1743, 1.442695
    %v1764 = vpow.pop %v1763
    %v1765 = vmul.f32 %v1744, 1.442695
    %v1766 = vpow.pop %v1765
    %v1767 = vmul.f32 %v1745, 1.442695
    %v1768 = vpow.pop %v1767
    %v1769 = vmul.f32 %v1746, 1.442695
    %v1770 = vpow.pop %v1769
    %v1771 = vadd.f32 %v1756, 1.0
    %v1772 = vlog2.pop %v1771
    %v1773 = vmul.f32 %v1772, 0.6931472
    %v1774 = vmul.f32 -0.5, %v1756
    %v1775 = vadd.f32 %v1774, 1.0
    %v1776 = vmul.f32 %v1775, %v1756
    %v1777 = vand.u32 2147483647, %v1756
    %vm1778 = vcmp.lt.f32.partialorder %v1777, 0.0004427343
    %v1779 = vsel %vm1778, %v1776, %v1773
    %v1780 = vadd.f32 %v1758, 1.0
    %v1781 = vlog2.pop %v1780
    %v1782 = vmul.f32 %v1781, 0.6931472
    %v1783 = vmul.f32 -0.5, %v1758
    %v1784 = vadd.f32 %v1783, 1.0
    %v1785 = vmul.f32 %v1784, %v1758
    %v1786 = vand.u32 2147483647, %v1758
    %vm1787 = vcmp.lt.f32.partialorder %v1786, 0.0004427343
    %v1788 = vsel %vm1787, %v1785, %v1782
    %v1789 = vadd.f32 %v1760, 1.0
    %v1790 = vlog2.pop %v1789
    %v1791 = vmul.f32 %v1790, 0.6931472
    %v1792 = vmul.f32 -0.5, %v1760
    %v1793 = vadd.f32 %v1792, 1.0
    %v1794 = vmul.f32 %v1793, %v1760
    %v1795 = vand.u32 2147483647, %v1760
    %vm1796 = vcmp.lt.f32.partialorder %v1795, 0.0004427343
    %v1797 = vsel %vm1796, %v1794, %v1791
    %v1798 = vadd.f32 %v1762, 1.0
    %v1799 = vlog2.pop %v1798
    %v1800 = vmul.f32 %v1799, 0.6931472
    %v1801 = vmul.f32 -0.5, %v1762
    %v1802 = vadd.f32 %v1801, 1.0
    %v1803 = vmul.f32 %v1802, %v1762
    %v1804 = vand.u32 2147483647, %v1762
    %vm1805 = vcmp.lt.f32.partialorder %v1804, 0.0004427343
    %v1806 = vsel %vm1805, %v1803, %v1800
    %v1807 = vadd.f32 %v1764, 1.0
    %v1808 = vlog2.pop %v1807
    %v1809 = vmul.f32 %v1808, 0.6931472
    %v1810 = vmul.f32 -0.5, %v1764
    %v1811 = vadd.f32 %v1810, 1.0
    %v1812 = vmul.f32 %v1811, %v1764
    %v1813 = vand.u32 2147483647, %v1764
    %vm1814 = vcmp.lt.f32.partialorder %v1813, 0.0004427343
    %v1815 = vsel %vm1814, %v1812, %v1809
    %v1816 = vadd.f32 %v1766, 1.0
    %v1817 = vlog2.pop %v1816
    %v1818 = vmul.f32 %v1817, 0.6931472
    %v1819 = vmul.f32 -0.5, %v1766
    %v1820 = vadd.f32 %v1819, 1.0
    %v1821 = vmul.f32 %v1820, %v1766
    %v1822 = vand.u32 2147483647, %v1766
    %vm1823 = vcmp.lt.f32.partialorder %v1822, 0.0004427343
    %v1824 = vsel %vm1823, %v1821, %v1818
    %v1825 = vadd.f32 %v1768, 1.0
    %v1826 = vlog2.pop %v1825
    %v1827 = vmul.f32 %v1826, 0.6931472
    %v1828 = vmul.f32 -0.5, %v1768
    %v1829 = vadd.f32 %v1828, 1.0
    %v1830 = vmul.f32 %v1829, %v1768
    %v1831 = vand.u32 2147483647, %v1768
    %vm1832 = vcmp.lt.f32.partialorder %v1831, 0.0004427343
    %v1833 = vsel %vm1832, %v1830, %v1827
    %v1834 = vadd.f32 %v1770, 1.0
    %v1835 = vlog2.pop %v1834
    %v1836 = vmul.f32 %v1835, 0.6931472
    %v1837 = vmul.f32 -0.5, %v1770
    %v1838 = vadd.f32 %v1837, 1.0
    %v1839 = vmul.f32 %v1838, %v1770
    %v1840 = vand.u32 2147483647, %v1770
    %vm1841 = vcmp.lt.f32.partialorder %v1840, 0.0004427343
    %v1842 = vsel %vm1841, %v1839, %v1836
    %v1843 = vsel %vm1747, %v1567, %v1779
    %v1844 = vsel %vm1748, %v1623, %v1788
    %v1845 = vsel %vm1749, %v1679, %v1797
    %v1846 = vsel %vm1750, %v1735, %v1806
    %v1847 = vsel %vm1751, %v1569, %v1815
    %v1848 = vsel %vm1752, %v1625, %v1824
    %v1849 = vsel %vm1753, %v1681, %v1833
    %v1850 = vsel %vm1754, %v1737, %v1842
    %v1851 = vpack.c.bf16 %v1847, %v1843
    %v1852 = vpack.c.bf16 %v1848, %v1844
    %v1853 = vpack.c.bf16 %v1849, %v1845
    %v1854 = vpack.c.bf16 %v1850, %v1846
    %v1855 = vld [vmem:[#allocation7] sm:$0xff]
    %v1856 = vld [vmem:[#allocation7 + $0x8] sm:$0xff]
    %v1857 = vld [vmem:[#allocation7 + $0x10] sm:$0xff]
    %v1858 = vld [vmem:[#allocation7 + $0x18] sm:$0xff]
    %v1859 = vld [vmem:[#allocation7 + $0x20] sm:$0xff]
    %v1860 = vld [vmem:[#allocation7 + $0x28] sm:$0xff]
    %v1861 = vld [vmem:[#allocation7 + $0x30] sm:$0xff]
    %v1862 = vld [vmem:[#allocation7 + $0x38] sm:$0xff]
    %v1863 = vld [vmem:[#allocation7 + $0x40] sm:$0xff]
    %v1864 = vld [vmem:[#allocation7 + $0x48] sm:$0xff]
    %v1865 = vld [vmem:[#allocation7 + $0x50] sm:$0xff]
    %v1866 = vld [vmem:[#allocation7 + $0x58] sm:$0xff]
    %v1867 = vld [vmem:[#allocation7 + $0x60] sm:$0xff]
    %v1868 = vld [vmem:[#allocation7 + $0x68] sm:$0xff]
    %v1869 = vld [vmem:[#allocation7 + $0x70] sm:$0xff]
    %v1870 = vld [vmem:[#allocation7 + $0x78] sm:$0xff]
    %v1871 = vld [vmem:[#allocation7 + $0x80] sm:$0xff]
    %v1872 = vld [vmem:[#allocation7 + $0x88] sm:$0xff]
    %v1873 = vld [vmem:[#allocation7 + $0x90] sm:$0xff]
    %v1874 = vld [vmem:[#allocation7 + $0x98] sm:$0xff]
    %v1875 = vld [vmem:[#allocation7 + $0xa0] sm:$0xff]
    %v1876 = vld [vmem:[#allocation7 + $0xa8] sm:$0xff]
    %v1877 = vld [vmem:[#allocation7 + $0xb0] sm:$0xff]
    %v1878 = vld [vmem:[#allocation7 + $0xb8] sm:$0xff]
    %v1879 = vld [vmem:[#allocation7 + $0xc0] sm:$0xff]
    %v1880 = vld [vmem:[#allocation7 + $0xc8] sm:$0xff]
    %v1881 = vld [vmem:[#allocation7 + $0xd0] sm:$0xff]
    %v1882 = vld [vmem:[#allocation7 + $0xd8] sm:$0xff]
    %v1883 = vld [vmem:[#allocation7 + $0xe0] sm:$0xff]
    %v1884 = vld [vmem:[#allocation7 + $0xe8] sm:$0xff]
    %v1885 = vld [vmem:[#allocation7 + $0xf0] sm:$0xff]
    %v1886 = vld [vmem:[#allocation7 + $0xf8] sm:$0xff]
    %v1887 = vld [vmem:[#allocation7 + $0x100] sm:$0xff]
    %v1888 = vld [vmem:[#allocation7 + $0x108] sm:$0xff]
    %v1889 = vld [vmem:[#allocation7 + $0x110] sm:$0xff]
    %v1890 = vld [vmem:[#allocation7 + $0x118] sm:$0xff]
    %v1891 = vld [vmem:[#allocation7 + $0x120] sm:$0xff]
    %v1892 = vld [vmem:[#allocation7 + $0x128] sm:$0xff]
    %v1893 = vld [vmem:[#allocation7 + $0x130] sm:$0xff]
    %v1894 = vld [vmem:[#allocation7 + $0x138] sm:$0xff]
    %v1895 = vld [vmem:[#allocation7 + $0x140] sm:$0xff]
    %v1896 = vld [vmem:[#allocation7 + $0x148] sm:$0xff]
    %v1897 = vld [vmem:[#allocation7 + $0x150] sm:$0xff]
    %v1898 = vld [vmem:[#allocation7 + $0x158] sm:$0xff]
    %v1899 = vld [vmem:[#allocation7 + $0x160] sm:$0xff]
    %v1900 = vld [vmem:[#allocation7 + $0x168] sm:$0xff]
    %v1901 = vld [vmem:[#allocation7 + $0x170] sm:$0xff]
    %v1902 = vld [vmem:[#allocation7 + $0x178] sm:$0xff]
    %v1903 = vld [vmem:[#allocation7 + $0x180] sm:$0xff]
    %v1904 = vld [vmem:[#allocation7 + $0x188] sm:$0xff]
    %v1905 = vld [vmem:[#allocation7 + $0x190] sm:$0xff]
    %v1906 = vld [vmem:[#allocation7 + $0x198] sm:$0xff]
    %v1907 = vld [vmem:[#allocation7 + $0x1a0] sm:$0xff]
    %v1908 = vld [vmem:[#allocation7 + $0x1a8] sm:$0xff]
    %v1909 = vld [vmem:[#allocation7 + $0x1b0] sm:$0xff]
    %v1910 = vld [vmem:[#allocation7 + $0x1b8] sm:$0xff]
    %v1911 = vld [vmem:[#allocation7 + $0x1c0] sm:$0xff]
    %v1912 = vld [vmem:[#allocation7 + $0x1c8] sm:$0xff]
    %v1913 = vld [vmem:[#allocation7 + $0x1d0] sm:$0xff]
    %v1914 = vld [vmem:[#allocation7 + $0x1d8] sm:$0xff]
    %v1915 = vld [vmem:[#allocation7 + $0x1e0] sm:$0xff]
    %v1916 = vld [vmem:[#allocation7 + $0x1e8] sm:$0xff]
    %v1917 = vld [vmem:[#allocation7 + $0x1f0] sm:$0xff]
    %v1918 = vld [vmem:[#allocation7 + $0x1f8] sm:$0xff]
    %v1919 = vld [vmem:[#allocation7 + $0x200] sm:$0xff]
    %v1920 = vld [vmem:[#allocation7 + $0x208] sm:$0xff]
    %v1921 = vld [vmem:[#allocation7 + $0x210] sm:$0xff]
    %v1922 = vld [vmem:[#allocation7 + $0x218] sm:$0xff]
    %v1923 = vld [vmem:[#allocation7 + $0x220] sm:$0xff]
    %v1924 = vld [vmem:[#allocation7 + $0x228] sm:$0xff]
    %v1925 = vld [vmem:[#allocation7 + $0x230] sm:$0xff]
    %v1926 = vld [vmem:[#allocation7 + $0x238] sm:$0xff]
    %v1927 = vld [vmem:[#allocation7 + $0x240] sm:$0xff]
    %v1928 = vld [vmem:[#allocation7 + $0x248] sm:$0xff]
    %v1929 = vld [vmem:[#allocation7 + $0x250] sm:$0xff]
    %v1930 = vld [vmem:[#allocation7 + $0x258] sm:$0xff]
    %v1931 = vld [vmem:[#allocation7 + $0x260] sm:$0xff]
    %v1932 = vld [vmem:[#allocation7 + $0x268] sm:$0xff]
    %v1933 = vld [vmem:[#allocation7 + $0x270] sm:$0xff]
    %v1934 = vld [vmem:[#allocation7 + $0x278] sm:$0xff]
    %v1935 = vld [vmem:[#allocation7 + $0x280] sm:$0xff]
    %v1936 = vld [vmem:[#allocation7 + $0x288] sm:$0xff]
    %v1937 = vld [vmem:[#allocation7 + $0x290] sm:$0xff]
    %v1938 = vld [vmem:[#allocation7 + $0x298] sm:$0xff]
    %v1939 = vld [vmem:[#allocation7 + $0x2a0] sm:$0xff]
    %v1940 = vld [vmem:[#allocation7 + $0x2a8] sm:$0xff]
    %v1941 = vld [vmem:[#allocation7 + $0x2b0] sm:$0xff]
    %v1942 = vld [vmem:[#allocation7 + $0x2b8] sm:$0xff]
    %v1943 = vld [vmem:[#allocation7 + $0x2c0] sm:$0xff]
    %v1944 = vld [vmem:[#allocation7 + $0x2c8] sm:$0xff]
    %v1945 = vld [vmem:[#allocation7 + $0x2d0] sm:$0xff]
    %v1946 = vld [vmem:[#allocation7 + $0x2d8] sm:$0xff]
    %v1947 = vld [vmem:[#allocation7 + $0x2e0] sm:$0xff]
    %v1948 = vld [vmem:[#allocation7 + $0x2e8] sm:$0xff]
    %v1949 = vld [vmem:[#allocation7 + $0x2f0] sm:$0xff]
    %v1950 = vld [vmem:[#allocation7 + $0x2f8] sm:$0xff]
    %v1951 = vld [vmem:[#allocation7 + $0x300] sm:$0xff]
    %v1952 = vld [vmem:[#allocation7 + $0x308] sm:$0xff]
    %v1953 = vld [vmem:[#allocation7 + $0x310] sm:$0xff]
    %v1954 = vld [vmem:[#allocation7 + $0x318] sm:$0xff]
    %v1955 = vld [vmem:[#allocation7 + $0x320] sm:$0xff]
    %v1956 = vld [vmem:[#allocation7 + $0x328] sm:$0xff]
    %v1957 = vld [vmem:[#allocation7 + $0x330] sm:$0xff]
    %v1958 = vld [vmem:[#allocation7 + $0x338] sm:$0xff]
    %v1959 = vld [vmem:[#allocation7 + $0x340] sm:$0xff]
    %v1960 = vld [vmem:[#allocation7 + $0x348] sm:$0xff]
    %v1961 = vld [vmem:[#allocation7 + $0x350] sm:$0xff]
    %v1962 = vld [vmem:[#allocation7 + $0x358] sm:$0xff]
    %v1963 = vld [vmem:[#allocation7 + $0x360] sm:$0xff]
    %v1964 = vld [vmem:[#allocation7 + $0x368] sm:$0xff]
    %v1965 = vld [vmem:[#allocation7 + $0x370] sm:$0xff]
    %v1966 = vld [vmem:[#allocation7 + $0x378] sm:$0xff]
    %v1967 = vld [vmem:[#allocation7 + $0x380] sm:$0xff]
    %v1968 = vld [vmem:[#allocation7 + $0x388] sm:$0xff]
    %v1969 = vld [vmem:[#allocation7 + $0x390] sm:$0xff]
    %v1970 = vld [vmem:[#allocation7 + $0x398] sm:$0xff]
    %v1971 = vld [vmem:[#allocation7 + $0x3a0] sm:$0xff]
    %v1972 = vld [vmem:[#allocation7 + $0x3a8] sm:$0xff]
    %v1973 = vld [vmem:[#allocation7 + $0x3b0] sm:$0xff]
    %v1974 = vld [vmem:[#allocation7 + $0x3b8] sm:$0xff]
    %v1975 = vld [vmem:[#allocation7 + $0x3c0] sm:$0xff]
    %v1976 = vld [vmem:[#allocation7 + $0x3c8] sm:$0xff]
    %v1977 = vld [vmem:[#allocation7 + $0x3d0] sm:$0xff]
    %v1978 = vld [vmem:[#allocation7 + $0x3d8] sm:$0xff]
    %v1979 = vld [vmem:[#allocation7 + $0x3e0] sm:$0xff]
    %v1980 = vld [vmem:[#allocation7 + $0x3e8] sm:$0xff]
    %v1981 = vld [vmem:[#allocation7 + $0x3f0] sm:$0xff]
    %v1982 = vld [vmem:[#allocation7 + $0x3f8] sm:$0xff]
    %v1983 = vld [vmem:[%s6] sm:$0xf]
    %v1985 = vperm.slane %v1983, 0
    %v1986 = vperm.slane %v1983, 1
    %v1987 = vperm.slane %v1983, 2
    %v1988 = vperm.slane %v1983, 3
    %v2121 = vunpack.c.l.b16 %v1855
    %v2122 = vunpack.c.h.b16 %v1855
    %v2123 = vunpack.c.l.b16 %v1856
    %v2124 = vunpack.c.h.b16 %v1856
    %v2125 = vunpack.c.l.b16 %v1857
    %v2126 = vunpack.c.h.b16 %v1857
    %v2127 = vunpack.c.l.b16 %v1858
    %v2128 = vunpack.c.h.b16 %v1858
    %v2129 = vunpack.c.l.b16 %v1859
    %v2130 = vunpack.c.h.b16 %v1859
    %v2131 = vunpack.c.l.b16 %v1860
    %v2132 = vunpack.c.h.b16 %v1860
    %v2133 = vunpack.c.l.b16 %v1861
    %v2134 = vunpack.c.h.b16 %v1861
    %v2135 = vunpack.c.l.b16 %v1862
    %v2136 = vunpack.c.h.b16 %v1862
    %v2137 = vunpack.c.l.b16 %v1863
    %v2138 = vunpack.c.h.b16 %v1863
    %v2139 = vunpack.c.l.b16 %v1864
    %v2140 = vunpack.c.h.b16 %v1864
    %v2141 = vunpack.c.l.b16 %v1865
    %v2142 = vunpack.c.h.b16 %v1865
    %v2143 = vunpack.c.l.b16 %v1866
    %v2144 = vunpack.c.h.b16 %v1866
    %v2145 = vunpack.c.l.b16 %v1867
    %v2146 = vunpack.c.h.b16 %v1867
    %v2147 = vunpack.c.l.b16 %v1868
    %v2148 = vunpack.c.h.b16 %v1868
    %v2149 = vunpack.c.l.b16 %v1869
    %v2150 = vunpack.c.h.b16 %v1869
    %v2151 = vunpack.c.l.b16 %v1870
    %v2152 = vunpack.c.h.b16 %v1870
    %v2153 = vunpack.c.l.b16 %v1871
    %v2154 = vunpack.c.h.b16 %v1871
    %v2155 = vunpack.c.l.b16 %v1872
    %v2156 = vunpack.c.h.b16 %v1872
    %v2157 = vunpack.c.l.b16 %v1873
    %v2158 = vunpack.c.h.b16 %v1873
    %v2159 = vunpack.c.l.b16 %v1874
    %v2160 = vunpack.c.h.b16 %v1874
    %v2161 = vunpack.c.l.b16 %v1875
    %v2162 = vunpack.c.h.b16 %v1875
    %v2163 = vunpack.c.l.b16 %v1876
    %v2164 = vunpack.c.h.b16 %v1876
    %v2165 = vunpack.c.l.b16 %v1877
    %v2166 = vunpack.c.h.b16 %v1877
    %v2167 = vunpack.c.l.b16 %v1878
    %v2168 = vunpack.c.h.b16 %v1878
    %v2169 = vunpack.c.l.b16 %v1879
    %v2170 = vunpack.c.h.b16 %v1879
    %v2171 = vunpack.c.l.b16 %v1880
    %v2172 = vunpack.c.h.b16 %v1880
    %v2173 = vunpack.c.l.b16 %v1881
    %v2174 = vunpack.c.h.b16 %v1881
    %v2175 = vunpack.c.l.b16 %v1882
    %v2176 = vunpack.c.h.b16 %v1882
    %v2177 = vunpack.c.l.b16 %v1883
    %v2178 = vunpack.c.h.b16 %v1883
    %v2179 = vunpack.c.l.b16 %v1884
    %v2180 = vunpack.c.h.b16 %v1884
    %v2181 = vunpack.c.l.b16 %v1885
    %v2182 = vunpack.c.h.b16 %v1885
    %v2183 = vunpack.c.l.b16 %v1886
    %v2184 = vunpack.c.h.b16 %v1886
    %v2185 = vunpack.c.l.b16 %v1887
    %v2186 = vunpack.c.h.b16 %v1887
    %v2187 = vunpack.c.l.b16 %v1888
    %v2188 = vunpack.c.h.b16 %v1888
    %v2189 = vunpack.c.l.b16 %v1889
    %v2190 = vunpack.c.h.b16 %v1889
    %v2191 = vunpack.c.l.b16 %v1890
    %v2192 = vunpack.c.h.b16 %v1890
    %v2193 = vunpack.c.l.b16 %v1891
    %v2194 = vunpack.c.h.b16 %v1891
    %v2195 = vunpack.c.l.b16 %v1892
    %v2196 = vunpack.c.h.b16 %v1892
    %v2197 = vunpack.c.l.b16 %v1893
    %v2198 = vunpack.c.h.b16 %v1893
    %v2199 = vunpack.c.l.b16 %v1894
    %v2200 = vunpack.c.h.b16 %v1894
    %v2201 = vunpack.c.l.b16 %v1895
    %v2202 = vunpack.c.h.b16 %v1895
    %v2203 = vunpack.c.l.b16 %v1896
    %v2204 = vunpack.c.h.b16 %v1896
    %v2205 = vunpack.c.l.b16 %v1897
    %v2206 = vunpack.c.h.b16 %v1897
    %v2207 = vunpack.c.l.b16 %v1898
    %v2208 = vunpack.c.h.b16 %v1898
    %v2209 = vunpack.c.l.b16 %v1899
    %v2210 = vunpack.c.h.b16 %v1899
    %v2211 = vunpack.c.l.b16 %v1900
    %v2212 = vunpack.c.h.b16 %v1900
    %v2213 = vunpack.c.l.b16 %v1901
    %v2214 = vunpack.c.h.b16 %v1901
    %v2215 = vunpack.c.l.b16 %v1902
    %v2216 = vunpack.c.h.b16 %v1902
    %v2217 = vunpack.c.l.b16 %v1903
    %v2218 = vunpack.c.h.b16 %v1903
    %v2219 = vunpack.c.l.b16 %v1904
    %v2220 = vunpack.c.h.b16 %v1904
    %v2221 = vunpack.c.l.b16 %v1905
    %v2222 = vunpack.c.h.b16 %v1905
    %v2223 = vunpack.c.l.b16 %v1906
    %v2224 = vunpack.c.h.b16 %v1906
    %v2225 = vunpack.c.l.b16 %v1907
    %v2226 = vunpack.c.h.b16 %v1907
    %v2227 = vunpack.c.l.b16 %v1908
    %v2228 = vunpack.c.h.b16 %v1908
    %v2229 = vunpack.c.l.b16 %v1909
    %v2230 = vunpack.c.h.b16 %v1909
    %v2231 = vunpack.c.l.b16 %v1910
    %v2232 = vunpack.c.h.b16 %v1910
    %v2233 = vunpack.c.l.b16 %v1911
    %v2234 = vunpack.c.h.b16 %v1911
    %v2235 = vunpack.c.l.b16 %v1912
    %v2236 = vunpack.c.h.b16 %v1912
    %v2237 = vunpack.c.l.b16 %v1913
    %v2238 = vunpack.c.h.b16 %v1913
    %v2239 = vunpack.c.l.b16 %v1914
    %v2240 = vunpack.c.h.b16 %v1914
    %v2241 = vunpack.c.l.b16 %v1915
    %v2242 = vunpack.c.h.b16 %v1915
    %v2243 = vunpack.c.l.b16 %v1916
    %v2244 = vunpack.c.h.b16 %v1916
    %v2245 = vunpack.c.l.b16 %v1917
    %v2246 = vunpack.c.h.b16 %v1917
    %v2247 = vunpack.c.l.b16 %v1918
    %v2248 = vunpack.c.h.b16 %v1918
    %v2249 = vunpack.c.l.b16 %v1919
    %v2250 = vunpack.c.h.b16 %v1919
    %v2251 = vunpack.c.l.b16 %v1920
    %v2252 = vunpack.c.h.b16 %v1920
    %v2253 = vunpack.c.l.b16 %v1921
    %v2254 = vunpack.c.h.b16 %v1921
    %v2255 = vunpack.c.l.b16 %v1922
    %v2256 = vunpack.c.h.b16 %v1922
    %v2257 = vunpack.c.l.b16 %v1923
    %v2258 = vunpack.c.h.b16 %v1923
    %v2259 = vunpack.c.l.b16 %v1924
    %v2260 = vunpack.c.h.b16 %v1924
    %v2261 = vunpack.c.l.b16 %v1925
    %v2262 = vunpack.c.h.b16 %v1925
    %v2263 = vunpack.c.l.b16 %v1926
    %v2264 = vunpack.c.h.b16 %v1926
    %v2265 = vunpack.c.l.b16 %v1927
    %v2266 = vunpack.c.h.b16 %v1927
    %v2267 = vunpack.c.l.b16 %v1928
    %v2268 = vunpack.c.h.b16 %v1928
    %v2269 = vunpack.c.l.b16 %v1929
    %v2270 = vunpack.c.h.b16 %v1929
    %v2271 = vunpack.c.l.b16 %v1930
    %v2272 = vunpack.c.h.b16 %v1930
    %v2273 = vunpack.c.l.b16 %v1931
    %v2274 = vunpack.c.h.b16 %v1931
    %v2275 = vunpack.c.l.b16 %v1932
    %v2276 = vunpack.c.h.b16 %v1932
    %v2277 = vunpack.c.l.b16 %v1933
    %v2278 = vunpack.c.h.b16 %v1933
    %v2279 = vunpack.c.l.b16 %v1934
    %v2280 = vunpack.c.h.b16 %v1934
    %v2281 = vunpack.c.l.b16 %v1935
    %v2282 = vunpack.c.h.b16 %v1935
    %v2283 = vunpack.c.l.b16 %v1936
    %v2284 = vunpack.c.h.b16 %v1936
    %v2285 = vunpack.c.l.b16 %v1937
    %v2286 = vunpack.c.h.b16 %v1937
    %v2287 = vunpack.c.l.b16 %v1938
    %v2288 = vunpack.c.h.b16 %v1938
    %v2289 = vunpack.c.l.b16 %v1939
    %v2290 = vunpack.c.h.b16 %v1939
    %v2291 = vunpack.c.l.b16 %v1940
    %v2292 = vunpack.c.h.b16 %v1940
    %v2293 = vunpack.c.l.b16 %v1941
    %v2294 = vunpack.c.h.b16 %v1941
    %v2295 = vunpack.c.l.b16 %v1942
    %v2296 = vunpack.c.h.b16 %v1942
    %v2297 = vunpack.c.l.b16 %v1943
    %v2298 = vunpack.c.h.b16 %v1943
    %v2299 = vunpack.c.l.b16 %v1944
    %v2300 = vunpack.c.h.b16 %v1944
    %v2301 = vunpack.c.l.b16 %v1945
    %v2302 = vunpack.c.h.b16 %v1945
    %v2303 = vunpack.c.l.b16 %v1946
    %v2304 = vunpack.c.h.b16 %v1946
    %v2305 = vunpack.c.l.b16 %v1947
    %v2306 = vunpack.c.h.b16 %v1947
    %v2307 = vunpack.c.l.b16 %v1948
    %v2308 = vunpack.c.h.b16 %v1948
    %v2309 = vunpack.c.l.b16 %v1949
    %v2310 = vunpack.c.h.b16 %v1949
    %v2311 = vunpack.c.l.b16 %v1950
    %v2312 = vunpack.c.h.b16 %v1950
    %v2313 = vunpack.c.l.b16 %v1951
    %v2314 = vunpack.c.h.b16 %v1951
    %v2315 = vunpack.c.l.b16 %v1952
    %v2316 = vunpack.c.h.b16 %v1952
    %v2317 = vunpack.c.l.b16 %v1953
    %v2318 = vunpack.c.h.b16 %v1953
    %v2319 = vunpack.c.l.b16 %v1954
    %v2320 = vunpack.c.h.b16 %v1954
    %v2321 = vunpack.c.l.b16 %v1955
    %v2322 = vunpack.c.h.b16 %v1955
    %v2323 = vunpack.c.l.b16 %v1956
    %v2324 = vunpack.c.h.b16 %v1956
    %v2325 = vunpack.c.l.b16 %v1957
    %v2326 = vunpack.c.h.b16 %v1957
    %v2327 = vunpack.c.l.b16 %v1958
    %v2328 = vunpack.c.h.b16 %v1958
    %v2329 = vunpack.c.l.b16 %v1959
    %v2330 = vunpack.c.h.b16 %v1959
    %v2331 = vunpack.c.l.b16 %v1960
    %v2332 = vunpack.c.h.b16 %v1960
    %v2333 = vunpack.c.l.b16 %v1961
    %v2334 = vunpack.c.h.b16 %v1961
    %v2335 = vunpack.c.l.b16 %v1962
    %v2336 = vunpack.c.h.b16 %v1962
    %v2337 = vunpack.c.l.b16 %v1963
    %v2338 = vunpack.c.h.b16 %v1963
    %v2339 = vunpack.c.l.b16 %v1964
    %v2340 = vunpack.c.h.b16 %v1964
    %v2341 = vunpack.c.l.b16 %v1965
    %v2342 = vunpack.c.h.b16 %v1965
    %v2343 = vunpack.c.l.b16 %v1966
    %v2344 = vunpack.c.h.b16 %v1966
    %v2345 = vunpack.c.l.b16 %v1967
    %v2346 = vunpack.c.h.b16 %v1967
    %v2347 = vunpack.c.l.b16 %v1968
    %v2348 = vunpack.c.h.b16 %v1968
    %v2349 = vunpack.c.l.b16 %v1969
    %v2350 = vunpack.c.h.b16 %v1969
    %v2351 = vunpack.c.l.b16 %v1970
    %v2352 = vunpack.c.h.b16 %v1970
    %v2353 = vunpack.c.l.b16 %v1971
    %v2354 = vunpack.c.h.b16 %v1971
    %v2355 = vunpack.c.l.b16 %v1972
    %v2356 = vunpack.c.h.b16 %v1972
    %v2357 = vunpack.c.l.b16 %v1973
    %v2358 = vunpack.c.h.b16 %v1973
    %v2359 = vunpack.c.l.b16 %v1974
    %v2360 = vunpack.c.h.b16 %v1974
    %v2361 = vunpack.c.l.b16 %v1975
    %v2362 = vunpack.c.h.b16 %v1975
    %v2363 = vunpack.c.l.b16 %v1976
    %v2364 = vunpack.c.h.b16 %v1976
    %v2365 = vunpack.c.l.b16 %v1977
    %v2366 = vunpack.c.h.b16 %v1977
    %v2367 = vunpack.c.l.b16 %v1978
    %v2368 = vunpack.c.h.b16 %v1978
    %v2369 = vunpack.c.l.b16 %v1979
    %v2370 = vunpack.c.h.b16 %v1979
    %v2371 = vunpack.c.l.b16 %v1980
    %v2372 = vunpack.c.h.b16 %v1980
    %v2373 = vunpack.c.l.b16 %v1981
    %v2374 = vunpack.c.h.b16 %v1981
    %v2375 = vunpack.c.l.b16 %v1982
    %v2376 = vunpack.c.h.b16 %v1982
    %v2377 = vpack.c.b16 %v2125, %v2121
    %v2378 = vpack.c.b16 %v2126, %v2122
    %v2379 = vpack.c.b16 %v2127, %v2123
    %v2380 = vpack.c.b16 %v2128, %v2124
    %v2381 = vpack.c.b16 %v2133, %v2129
    %v2382 = vpack.c.b16 %v2134, %v2130
    %v2383 = vpack.c.b16 %v2135, %v2131
    %v2384 = vpack.c.b16 %v2136, %v2132
    %v2385 = vpack.c.b16 %v2141, %v2137
    %v2386 = vpack.c.b16 %v2142, %v2138
    %v2387 = vpack.c.b16 %v2143, %v2139
    %v2388 = vpack.c.b16 %v2144, %v2140
    %v2389 = vpack.c.b16 %v2149, %v2145
    %v2390 = vpack.c.b16 %v2150, %v2146
    %v2391 = vpack.c.b16 %v2151, %v2147
    %v2392 = vpack.c.b16 %v2152, %v2148
    %v2393 = vpack.c.b16 %v2157, %v2153
    %v2394 = vpack.c.b16 %v2158, %v2154
    %v2395 = vpack.c.b16 %v2159, %v2155
    %v2396 = vpack.c.b16 %v2160, %v2156
    %v2397 = vpack.c.b16 %v2165, %v2161
    %v2398 = vpack.c.b16 %v2166, %v2162
    %v2399 = vpack.c.b16 %v2167, %v2163
    %v2400 = vpack.c.b16 %v2168, %v2164
    %v2401 = vpack.c.b16 %v2173, %v2169
    %v2402 = vpack.c.b16 %v2174, %v2170
    %v2403 = vpack.c.b16 %v2175, %v2171
    %v2404 = vpack.c.b16 %v2176, %v2172
    %v2405 = vpack.c.b16 %v2181, %v2177
    %v2406 = vpack.c.b16 %v2182, %v2178
    %v2407 = vpack.c.b16 %v2183, %v2179
    %v2408 = vpack.c.b16 %v2184, %v2180
    %v2409 = vpack.c.b16 %v2189, %v2185
    %v2410 = vpack.c.b16 %v2190, %v2186
    %v2411 = vpack.c.b16 %v2191, %v2187
    %v2412 = vpack.c.b16 %v2192, %v2188
    %v2413 = vpack.c.b16 %v2197, %v2193
    %v2414 = vpack.c.b16 %v2198, %v2194
    %v2415 = vpack.c.b16 %v2199, %v2195
    %v2416 = vpack.c.b16 %v2200, %v2196
    %v2417 = vpack.c.b16 %v2205, %v2201
    %v2418 = vpack.c.b16 %v2206, %v2202
    %v2419 = vpack.c.b16 %v2207, %v2203
    %v2420 = vpack.c.b16 %v2208, %v2204
    %v2421 = vpack.c.b16 %v2213, %v2209
    %v2422 = vpack.c.b16 %v2214, %v2210
    %v2423 = vpack.c.b16 %v2215, %v2211
    %v2424 = vpack.c.b16 %v2216, %v2212
    %v2425 = vpack.c.b16 %v2221, %v2217
    %v2426 = vpack.c.b16 %v2222, %v2218
    %v2427 = vpack.c.b16 %v2223, %v2219
    %v2428 = vpack.c.b16 %v2224, %v2220
    %v2429 = vpack.c.b16 %v2229, %v2225
    %v2430 = vpack.c.b16 %v2230, %v2226
    %v2431 = vpack.c.b16 %v2231, %v2227
    %v2432 = vpack.c.b16 %v2232, %v2228
    %v2433 = vpack.c.b16 %v2237, %v2233
    %v2434 = vpack.c.b16 %v2238, %v2234
    %v2435 = vpack.c.b16 %v2239, %v2235
    %v2436 = vpack.c.b16 %v2240, %v2236
    %v2437 = vpack.c.b16 %v2245, %v2241
    %v2438 = vpack.c.b16 %v2246, %v2242
    %v2439 = vpack.c.b16 %v2247, %v2243
    %v2440 = vpack.c.b16 %v2248, %v2244
    %v2441 = vpack.c.b16 %v2253, %v2249
    %v2442 = vpack.c.b16 %v2254, %v2250
    %v2443 = vpack.c.b16 %v2255, %v2251
    %v2444 = vpack.c.b16 %v2256, %v2252
    %v2445 = vpack.c.b16 %v2261, %v2257
    %v2446 = vpack.c.b16 %v2262, %v2258
    %v2447 = vpack.c.b16 %v2263, %v2259
    %v2448 = vpack.c.b16 %v2264, %v2260
    %v2449 = vpack.c.b16 %v2269, %v2265
    %v2450 = vpack.c.b16 %v2270, %v2266
    %v2451 = vpack.c.b16 %v2271, %v2267
    %v2452 = vpack.c.b16 %v2272, %v2268
    %v2453 = vpack.c.b16 %v2277, %v2273
    %v2454 = vpack.c.b16 %v2278, %v2274
    %v2455 = vpack.c.b16 %v2279, %v2275
    %v2456 = vpack.c.b16 %v2280, %v2276
    %v2457 = vpack.c.b16 %v2285, %v2281
    %v2458 = vpack.c.b16 %v2286, %v2282
    %v2459 = vpack.c.b16 %v2287, %v2283
    %v2460 = vpack.c.b16 %v2288, %v2284
    %v2461 = vpack.c.b16 %v2293, %v2289
    %v2462 = vpack.c.b16 %v2294, %v2290
    %v2463 = vpack.c.b16 %v2295, %v2291
    %v2464 = vpack.c.b16 %v2296, %v2292
    %v2465 = vpack.c.b16 %v2301, %v2297
    %v2466 = vpack.c.b16 %v2302, %v2298
    %v2467 = vpack.c.b16 %v2303, %v2299
    %v2468 = vpack.c.b16 %v2304, %v2300
    %v2469 = vpack.c.b16 %v2309, %v2305
    %v2470 = vpack.c.b16 %v2310, %v2306
    %v2471 = vpack.c.b16 %v2311, %v2307
    %v2472 = vpack.c.b16 %v2312, %v2308
    %v2473 = vpack.c.b16 %v2317, %v2313
    %v2474 = vpack.c.b16 %v2318, %v2314
    %v2475 = vpack.c.b16 %v2319, %v2315
    %v2476 = vpack.c.b16 %v2320, %v2316
    %v2477 = vpack.c.b16 %v2325, %v2321
    %v2478 = vpack.c.b16 %v2326, %v2322
    %v2479 = vpack.c.b16 %v2327, %v2323
    %v2480 = vpack.c.b16 %v2328, %v2324
    %v2481 = vpack.c.b16 %v2333, %v2329
    %v2482 = vpack.c.b16 %v2334, %v2330
    %v2483 = vpack.c.b16 %v2335, %v2331
    %v2484 = vpack.c.b16 %v2336, %v2332
    %v2485 = vpack.c.b16 %v2341, %v2337
    %v2486 = vpack.c.b16 %v2342, %v2338
    %v2487 = vpack.c.b16 %v2343, %v2339
    %v2488 = vpack.c.b16 %v2344, %v2340
    %v2489 = vpack.c.b16 %v2349, %v2345
    %v2490 = vpack.c.b16 %v2350, %v2346
    %v2491 = vpack.c.b16 %v2351, %v2347
    %v2492 = vpack.c.b16 %v2352, %v2348
    %v2493 = vpack.c.b16 %v2357, %v2353
    %v2494 = vpack.c.b16 %v2358, %v2354
    %v2495 = vpack.c.b16 %v2359, %v2355
    %v2496 = vpack.c.b16 %v2360, %v2356
    %v2497 = vpack.c.b16 %v2365, %v2361
    %v2498 = vpack.c.b16 %v2366, %v2362
    %v2499 = vpack.c.b16 %v2367, %v2363
    %v2500 = vpack.c.b16 %v2368, %v2364
    %v2501 = vpack.c.b16 %v2373, %v2369
    %v2502 = vpack.c.b16 %v2374, %v2370
    %v2503 = vpack.c.b16 %v2375, %v2371
    %v2504 = vpack.c.b16 %v2376, %v2372
    %2633 = vmatpush.bf16.msra.mxu0 %v2405
    %2634 = vmatpush.bf16.msra.mxu0 %v2401
    %2635 = vmatpush.bf16.msra.mxu0 %v2397
    %2636 = vmatpush.bf16.msra.mxu0 %v2393
    %2637 = vmatpush.bf16.msra.mxu0 %v2389
    %2638 = vmatpush.bf16.msra.mxu0 %v2385
    %2639 = vmatpush.bf16.msra.mxu0 %v2381
    %2640 = vmatpush.bf16.msra.mxu0 %v2377
    %2641 = vmatmul.bf16.gmra.mxu0 %v1851
    %v2642 = vpop.f32.mrf.mxu0
    %v2643 = vadd.f32 %v1985, %v2642
    %v2644 = vpop.f32.mrf.mxu0
    %v2645 = vadd.f32 %v1985, %v2644
    %2646 = vdwg.mxu0
    %2647 = vmatpush.bf16.msra.mxu0 %v2437
    %2648 = vmatpush.bf16.msra.mxu0 %v2433
    %2649 = vmatpush.bf16.msra.mxu0 %v2429
    %2650 = vmatpush.bf16.msra.mxu0 %v2425
    %2651 = vmatpush.bf16.msra.mxu0 %v2421
    %2652 = vmatpush.bf16.msra.mxu0 %v2417
    %2653 = vmatpush.bf16.msra.mxu0 %v2413
    %2654 = vmatpush.bf16.msra.mxu0 %v2409
    %2655 = vmatmul.bf16.gmra.mxu0 %v1852
    %v2656 = vpop.f32.mrf.mxu0
    %v2657 = vadd.f32 %v2643, %v2656
    %v2658 = vpop.f32.mrf.mxu0
    %v2659 = vadd.f32 %v2645, %v2658
    %2660 = vdwg.mxu0
    %2661 = vmatpush.bf16.msra.mxu0 %v2469
    %2662 = vmatpush.bf16.msra.mxu0 %v2465
    %2663 = vmatpush.bf16.msra.mxu0 %v2461
    %2664 = vmatpush.bf16.msra.mxu0 %v2457
    %2665 = vmatpush.bf16.msra.mxu0 %v2453
    %2666 = vmatpush.bf16.msra.mxu0 %v2449
    %2667 = vmatpush.bf16.msra.mxu0 %v2445
    %2668 = vmatpush.bf16.msra.mxu0 %v2441
    %2669 = vmatmul.bf16.gmra.mxu0 %v1853
    %v2670 = vpop.f32.mrf.mxu0
    %v2671 = vadd.f32 %v2657, %v2670
    %v2672 = vpop.f32.mrf.mxu0
    %v2673 = vadd.f32 %v2659, %v2672
    %2674 = vdwg.mxu0
    %2675 = vmatpush.bf16.msra.mxu0 %v2501
    %2676 = vmatpush.bf16.msra.mxu0 %v2497
    %2677 = vmatpush.bf16.msra.mxu0 %v2493
    %2678 = vmatpush.bf16.msra.mxu0 %v2489
    %2679 = vmatpush.bf16.msra.mxu0 %v2485
    %2680 = vmatpush.bf16.msra.mxu0 %v2481
    %2681 = vmatpush.bf16.msra.mxu0 %v2477
    %2682 = vmatpush.bf16.msra.mxu0 %v2473
    %2683 = vmatmul.bf16.gmra.mxu0 %v1854
    %v2684 = vpop.f32.mrf.mxu0
    %v2685 = vadd.f32 %v2671, %v2684
    %v2686 = vpop.f32.mrf.mxu0
    %v2687 = vadd.f32 %v2673, %v2686
    %2688 = vdwg.mxu0
    %2689 = vmatpush.bf16.msra.mxu0 %v2406
    %2690 = vmatpush.bf16.msra.mxu0 %v2402
    %2691 = vmatpush.bf16.msra.mxu0 %v2398
    %2692 = vmatpush.bf16.msra.mxu0 %v2394
    %2693 = vmatpush.bf16.msra.mxu0 %v2390
    %2694 = vmatpush.bf16.msra.mxu0 %v2386
    %2695 = vmatpush.bf16.msra.mxu0 %v2382
    %2696 = vmatpush.bf16.msra.mxu0 %v2378
    %2697 = vmatmul.bf16.gmra.mxu0 %v1851
    %v2698 = vpop.f32.mrf.mxu0
    %v2699 = vadd.f32 %v1986, %v2698
    %v2700 = vpop.f32.mrf.mxu0
    %v2701 = vadd.f32 %v1986, %v2700
    %2702 = vdwg.mxu0
    %2703 = vmatpush.bf16.msra.mxu0 %v2438
    %2704 = vmatpush.bf16.msra.mxu0 %v2434
    %2705 = vmatpush.bf16.msra.mxu0 %v2430
    %2706 = vmatpush.bf16.msra.mxu0 %v2426
    %2707 = vmatpush.bf16.msra.mxu0 %v2422
    %2708 = vmatpush.bf16.msra.mxu0 %v2418
    %2709 = vmatpush.bf16.msra.mxu0 %v2414
    %2710 = vmatpush.bf16.msra.mxu0 %v2410
    %2711 = vmatmul.bf16.gmra.mxu0 %v1852
    %v2712 = vpop.f32.mrf.mxu0
    %v2713 = vadd.f32 %v2699, %v2712
    %v2714 = vpop.f32.mrf.mxu0
    %v2715 = vadd.f32 %v2701, %v2714
    %2716 = vdwg.mxu0
    %2717 = vmatpush.bf16.msra.mxu0 %v2470
    %2718 = vmatpush.bf16.msra.mxu0 %v2466
    %2719 = vmatpush.bf16.msra.mxu0 %v2462
    %2720 = vmatpush.bf16.msra.mxu0 %v2458
    %2721 = vmatpush.bf16.msra.mxu0 %v2454
    %2722 = vmatpush.bf16.msra.mxu0 %v2450
    %2723 = vmatpush.bf16.msra.mxu0 %v2446
    %2724 = vmatpush.bf16.msra.mxu0 %v2442
    %2725 = vmatmul.bf16.gmra.mxu0 %v1853
    %v2726 = vpop.f32.mrf.mxu0
    %v2727 = vadd.f32 %v2713, %v2726
    %v2728 = vpop.f32.mrf.mxu0
    %v2729 = vadd.f32 %v2715, %v2728
    %2730 = vdwg.mxu0
    %2731 = vmatpush.bf16.msra.mxu0 %v2502
    %2732 = vmatpush.bf16.msra.mxu0 %v2498
    %2733 = vmatpush.bf16.msra.mxu0 %v2494
    %2734 = vmatpush.bf16.msra.mxu0 %v2490
    %2735 = vmatpush.bf16.msra.mxu0 %v2486
    %2736 = vmatpush.bf16.msra.mxu0 %v2482
    %2737 = vmatpush.bf16.msra.mxu0 %v2478
    %2738 = vmatpush.bf16.msra.mxu0 %v2474
    %2739 = vmatmul.bf16.gmra.mxu0 %v1854
    %v2740 = vpop.f32.mrf.mxu0
    %v2741 = vadd.f32 %v2727, %v2740
    %v2742 = vpop.f32.mrf.mxu0
    %v2743 = vadd.f32 %v2729, %v2742
    %2744 = vdwg.mxu0
    %2745 = vmatpush.bf16.msra.mxu0 %v2407
    %2746 = vmatpush.bf16.msra.mxu0 %v2403
    %2747 = vmatpush.bf16.msra.mxu0 %v2399
    %2748 = vmatpush.bf16.msra.mxu0 %v2395
    %2749 = vmatpush.bf16.msra.mxu0 %v2391
    %2750 = vmatpush.bf16.msra.mxu0 %v2387
    %2751 = vmatpush.bf16.msra.mxu0 %v2383
    %2752 = vmatpush.bf16.msra.mxu0 %v2379
    %2753 = vmatmul.bf16.gmra.mxu0 %v1851
    %v2754 = vpop.f32.mrf.mxu0
    %v2755 = vadd.f32 %v1987, %v2754
    %v2756 = vpop.f32.mrf.mxu0
    %v2757 = vadd.f32 %v1987, %v2756
    %2758 = vdwg.mxu0
    %2759 = vmatpush.bf16.msra.mxu0 %v2439
    %2760 = vmatpush.bf16.msra.mxu0 %v2435
    %2761 = vmatpush.bf16.msra.mxu0 %v2431
    %2762 = vmatpush.bf16.msra.mxu0 %v2427
    %2763 = vmatpush.bf16.msra.mxu0 %v2423
    %2764 = vmatpush.bf16.msra.mxu0 %v2419
    %2765 = vmatpush.bf16.msra.mxu0 %v2415
    %2766 = vmatpush.bf16.msra.mxu0 %v2411
    %2767 = vmatmul.bf16.gmra.mxu0 %v1852
    %v2768 = vpop.f32.mrf.mxu0
    %v2769 = vadd.f32 %v2755, %v2768
    %v2770 = vpop.f32.mrf.mxu0
    %v2771 = vadd.f32 %v2757, %v2770
    %2772 = vdwg.mxu0
    %2773 = vmatpush.bf16.msra.mxu0 %v2471
    %2774 = vmatpush.bf16.msra.mxu0 %v2467
    %2775 = vmatpush.bf16.msra.mxu0 %v2463
    %2776 = vmatpush.bf16.msra.mxu0 %v2459
    %2777 = vmatpush.bf16.msra.mxu0 %v2455
    %2778 = vmatpush.bf16.msra.mxu0 %v2451
    %2779 = vmatpush.bf16.msra.mxu0 %v2447
    %2780 = vmatpush.bf16.msra.mxu0 %v2443
    %2781 = vmatmul.bf16.gmra.mxu0 %v1853
    %v2782 = vpop.f32.mrf.mxu0
    %v2783 = vadd.f32 %v2769, %v2782
    %v2784 = vpop.f32.mrf.mxu0
    %v2785 = vadd.f32 %v2771, %v2784
    %2786 = vdwg.mxu0
    %2787 = vmatpush.bf16.msra.mxu0 %v2503
    %2788 = vmatpush.bf16.msra.mxu0 %v2499
    %2789 = vmatpush.bf16.msra.mxu0 %v2495
    %2790 = vmatpush.bf16.msra.mxu0 %v2491
    %2791 = vmatpush.bf16.msra.mxu0 %v2487
    %2792 = vmatpush.bf16.msra.mxu0 %v2483
    %2793 = vmatpush.bf16.msra.mxu0 %v2479
    %2794 = vmatpush.bf16.msra.mxu0 %v2475
    %2795 = vmatmul.bf16.gmra.mxu0 %v1854
    %v2796 = vpop.f32.mrf.mxu0
    %v2797 = vadd.f32 %v2783, %v2796
    %v2798 = vpop.f32.mrf.mxu0
    %v2799 = vadd.f32 %v2785, %v2798
    %2800 = vdwg.mxu0
    %2801 = vmatpush.bf16.msra.mxu0 %v2408
    %2802 = vmatpush.bf16.msra.mxu0 %v2404
    %2803 = vmatpush.bf16.msra.mxu0 %v2400
    %2804 = vmatpush.bf16.msra.mxu0 %v2396
    %2805 = vmatpush.bf16.msra.mxu0 %v2392
    %2806 = vmatpush.bf16.msra.mxu0 %v2388
    %2807 = vmatpush.bf16.msra.mxu0 %v2384
    %2808 = vmatpush.bf16.msra.mxu0 %v2380
    %2809 = vmatmul.bf16.gmra.mxu0 %v1851
    %v2810 = vpop.f32.mrf.mxu0
    %v2811 = vadd.f32 %v1988, %v2810
    %v2812 = vpop.f32.mrf.mxu0
    %v2813 = vadd.f32 %v1988, %v2812
    %2814 = vdwg.mxu0
    %2815 = vmatpush.bf16.msra.mxu0 %v2440
    %2816 = vmatpush.bf16.msra.mxu0 %v2436
    %2817 = vmatpush.bf16.msra.mxu0 %v2432
    %2818 = vmatpush.bf16.msra.mxu0 %v2428
    %2819 = vmatpush.bf16.msra.mxu0 %v2424
    %2820 = vmatpush.bf16.msra.mxu0 %v2420
    %2821 = vmatpush.bf16.msra.mxu0 %v2416
    %2822 = vmatpush.bf16.msra.mxu0 %v2412
    %2823 = vmatmul.bf16.gmra.mxu0 %v1852
    %v2824 = vpop.f32.mrf.mxu0
    %v2825 = vadd.f32 %v2811, %v2824
    %v2826 = vpop.f32.mrf.mxu0
    %v2827 = vadd.f32 %v2813, %v2826
    %2828 = vdwg.mxu0
    %2829 = vmatpush.bf16.msra.mxu0 %v2472
    %2830 = vmatpush.bf16.msra.mxu0 %v2468
    %2831 = vmatpush.bf16.msra.mxu0 %v2464
    %2832 = vmatpush.bf16.msra.mxu0 %v2460
    %2833 = vmatpush.bf16.msra.mxu0 %v2456
    %2834 = vmatpush.bf16.msra.mxu0 %v2452
    %2835 = vmatpush.bf16.msra.mxu0 %v2448
    %2836 = vmatpush.bf16.msra.mxu0 %v2444
    %2837 = vmatmul.bf16.gmra.mxu0 %v1853
    %v2838 = vpop.f32.mrf.mxu0
    %v2839 = vadd.f32 %v2825, %v2838
    %v2840 = vpop.f32.mrf.mxu0
    %v2841 = vadd.f32 %v2827, %v2840
    %2842 = vdwg.mxu0
    %2843 = vmatpush.bf16.msra.mxu0 %v2504
    %2844 = vmatpush.bf16.msra.mxu0 %v2500
    %2845 = vmatpush.bf16.msra.mxu0 %v2496
    %2846 = vmatpush.bf16.msra.mxu0 %v2492
    %2847 = vmatpush.bf16.msra.mxu0 %v2488
    %2848 = vmatpush.bf16.msra.mxu0 %v2484
    %2849 = vmatpush.bf16.msra.mxu0 %v2480
    %2850 = vmatpush.bf16.msra.mxu0 %v2476
    %2851 = vmatmul.bf16.gmra.mxu0 %v1854
    %v2852 = vpop.f32.mrf.mxu0
    %v2853 = vadd.f32 %v2839, %v2852
    %v2854 = vpop.f32.mrf.mxu0
    %v2855 = vadd.f32 %v2841, %v2854
    %2856 = vdwg.mxu0
    %v2857 = vmin.f32 %v2685, 20.0
    %v2858 = vmin.f32 %v2741, 20.0
    %v2859 = vmin.f32 %v2797, 20.0
    %v2860 = vmin.f32 %v2853, 20.0
    %v2861 = vmin.f32 %v2687, 20.0
    %v2862 = vmin.f32 %v2743, 20.0
    %v2863 = vmin.f32 %v2799, 20.0
    %v2864 = vmin.f32 %v2855, 20.0
    %vm2865 = vcmp.gt.f32.partialorder %v2685, 20.0
    %vm2866 = vcmp.gt.f32.partialorder %v2741, 20.0
    %vm2867 = vcmp.gt.f32.partialorder %v2797, 20.0
    %vm2868 = vcmp.gt.f32.partialorder %v2853, 20.0
    %vm2869 = vcmp.gt.f32.partialorder %v2687, 20.0
    %vm2870 = vcmp.gt.f32.partialorder %v2743, 20.0
    %vm2871 = vcmp.gt.f32.partialorder %v2799, 20.0
    %vm2872 = vcmp.gt.f32.partialorder %v2855, 20.0
    %v2873 = vmul.f32 %v2857, 1.442695
    %v2874 = vpow.pop %v2873
    %v2875 = vmul.f32 %v2858, 1.442695
    %v2876 = vpow.pop %v2875
    %v2877 = vmul.f32 %v2859, 1.442695
    %v2878 = vpow.pop %v2877
    %v2879 = vmul.f32 %v2860, 1.442695
    %v2880 = vpow.pop %v2879
    %v2881 = vmul.f32 %v2861, 1.442695
    %v2882 = vpow.pop %v2881
    %v2883 = vmul.f32 %v2862, 1.442695
    %v2884 = vpow.pop %v2883
    %v2885 = vmul.f32 %v2863, 1.442695
    %v2886 = vpow.pop %v2885
    %v2887 = vmul.f32 %v2864, 1.442695
    %v2888 = vpow.pop %v2887
    %v2889 = vadd.f32 %v2874, 1.0
    %v2890 = vlog2.pop %v2889
    %v2891 = vmul.f32 %v2890, 0.6931472
    %v2892 = vmul.f32 -0.5, %v2874
    %v2893 = vadd.f32 %v2892, 1.0
    %v2894 = vmul.f32 %v2893, %v2874
    %v2895 = vand.u32 2147483647, %v2874
    %vm2896 = vcmp.lt.f32.partialorder %v2895, 0.0004427343
    %v2897 = vsel %vm2896, %v2894, %v2891
    %v2898 = vadd.f32 %v2876, 1.0
    %v2899 = vlog2.pop %v2898
    %v2900 = vmul.f32 %v2899, 0.6931472
    %v2901 = vmul.f32 -0.5, %v2876
    %v2902 = vadd.f32 %v2901, 1.0
    %v2903 = vmul.f32 %v2902, %v2876
    %v2904 = vand.u32 2147483647, %v2876
    %vm2905 = vcmp.lt.f32.partialorder %v2904, 0.0004427343
    %v2906 = vsel %vm2905, %v2903, %v2900
    %v2907 = vadd.f32 %v2878, 1.0
    %v2908 = vlog2.pop %v2907
    %v2909 = vmul.f32 %v2908, 0.6931472
    %v2910 = vmul.f32 -0.5, %v2878
    %v2911 = vadd.f32 %v2910, 1.0
    %v2912 = vmul.f32 %v2911, %v2878
    %v2913 = vand.u32 2147483647, %v2878
    %vm2914 = vcmp.lt.f32.partialorder %v2913, 0.0004427343
    %v2915 = vsel %vm2914, %v2912, %v2909
    %v2916 = vadd.f32 %v2880, 1.0
    %v2917 = vlog2.pop %v2916
    %v2918 = vmul.f32 %v2917, 0.6931472
    %v2919 = vmul.f32 -0.5, %v2880
    %v2920 = vadd.f32 %v2919, 1.0
    %v2921 = vmul.f32 %v2920, %v2880
    %v2922 = vand.u32 2147483647, %v2880
    %vm2923 = vcmp.lt.f32.partialorder %v2922, 0.0004427343
    %v2924 = vsel %vm2923, %v2921, %v2918
    %v2925 = vadd.f32 %v2882, 1.0
    %v2926 = vlog2.pop %v2925
    %v2927 = vmul.f32 %v2926, 0.6931472
    %v2928 = vmul.f32 -0.5, %v2882
    %v2929 = vadd.f32 %v2928, 1.0
    %v2930 = vmul.f32 %v2929, %v2882
    %v2931 = vand.u32 2147483647, %v2882
    %vm2932 = vcmp.lt.f32.partialorder %v2931, 0.0004427343
    %v2933 = vsel %vm2932, %v2930, %v2927
    %v2934 = vadd.f32 %v2884, 1.0
    %v2935 = vlog2.pop %v2934
    %v2936 = vmul.f32 %v2935, 0.6931472
    %v2937 = vmul.f32 -0.5, %v2884
    %v2938 = vadd.f32 %v2937, 1.0
    %v2939 = vmul.f32 %v2938, %v2884
    %v2940 = vand.u32 2147483647, %v2884
    %vm2941 = vcmp.lt.f32.partialorder %v2940, 0.0004427343
    %v2942 = vsel %vm2941, %v2939, %v2936
    %v2943 = vadd.f32 %v2886, 1.0
    %v2944 = vlog2.pop %v2943
    %v2945 = vmul.f32 %v2944, 0.6931472
    %v2946 = vmul.f32 -0.5, %v2886
    %v2947 = vadd.f32 %v2946, 1.0
    %v2948 = vmul.f32 %v2947, %v2886
    %v2949 = vand.u32 2147483647, %v2886
    %vm2950 = vcmp.lt.f32.partialorder %v2949, 0.0004427343
    %v2951 = vsel %vm2950, %v2948, %v2945
    %v2952 = vadd.f32 %v2888, 1.0
    %v2953 = vlog2.pop %v2952
    %v2954 = vmul.f32 %v2953, 0.6931472
    %v2955 = vmul.f32 -0.5, %v2888
    %v2956 = vadd.f32 %v2955, 1.0
    %v2957 = vmul.f32 %v2956, %v2888
    %v2958 = vand.u32 2147483647, %v2888
    %vm2959 = vcmp.lt.f32.partialorder %v2958, 0.0004427343
    %v2960 = vsel %vm2959, %v2957, %v2954
    %v2961 = vsel %vm2865, %v2685, %v2897
    %v2962 = vsel %vm2866, %v2741, %v2906
    %v2963 = vsel %vm2867, %v2797, %v2915
    %v2964 = vsel %vm2868, %v2853, %v2924
    %v2965 = vsel %vm2869, %v2687, %v2933
    %v2966 = vsel %vm2870, %v2743, %v2942
    %v2967 = vsel %vm2871, %v2799, %v2951
    %v2968 = vsel %vm2872, %v2855, %v2960
    %v2969 = vpack.c.bf16 %v2965, %v2961
    %v2970 = vpack.c.bf16 %v2966, %v2962
    %v2971 = vpack.c.bf16 %v2967, %v2963
    %v2972 = vpack.c.bf16 %v2968, %v2964
    %v2973 = vld [vmem:[#allocation8] sm:$0xff]
    %v2974 = vld [vmem:[#allocation8 + $0x8] sm:$0xff]
    %v2975 = vld [vmem:[#allocation8 + $0x10] sm:$0xff]
    %v2976 = vld [vmem:[#allocation8 + $0x18] sm:$0xff]
    %v2977 = vld [vmem:[#allocation8 + $0x20] sm:$0xff]
    %v2978 = vld [vmem:[#allocation8 + $0x28] sm:$0xff]
    %v2979 = vld [vmem:[#allocation8 + $0x30] sm:$0xff]
    %v2980 = vld [vmem:[#allocation8 + $0x38] sm:$0xff]
    %v2981 = vld [vmem:[#allocation8 + $0x40] sm:$0xff]
    %v2982 = vld [vmem:[#allocation8 + $0x48] sm:$0xff]
    %v2983 = vld [vmem:[#allocation8 + $0x50] sm:$0xff]
    %v2984 = vld [vmem:[#allocation8 + $0x58] sm:$0xff]
    %v2985 = vld [vmem:[#allocation8 + $0x60] sm:$0xff]
    %v2986 = vld [vmem:[#allocation8 + $0x68] sm:$0xff]
    %v2987 = vld [vmem:[#allocation8 + $0x70] sm:$0xff]
    %v2988 = vld [vmem:[#allocation8 + $0x78] sm:$0xff]
    %v2989 = vld [vmem:[#allocation8 + $0x80] sm:$0xff]
    %v2990 = vld [vmem:[#allocation8 + $0x88] sm:$0xff]
    %v2991 = vld [vmem:[#allocation8 + $0x90] sm:$0xff]
    %v2992 = vld [vmem:[#allocation8 + $0x98] sm:$0xff]
    %v2993 = vld [vmem:[#allocation8 + $0xa0] sm:$0xff]
    %v2994 = vld [vmem:[#allocation8 + $0xa8] sm:$0xff]
    %v2995 = vld [vmem:[#allocation8 + $0xb0] sm:$0xff]
    %v2996 = vld [vmem:[#allocation8 + $0xb8] sm:$0xff]
    %v2997 = vld [vmem:[#allocation8 + $0xc0] sm:$0xff]
    %v2998 = vld [vmem:[#allocation8 + $0xc8] sm:$0xff]
    %v2999 = vld [vmem:[#allocation8 + $0xd0] sm:$0xff]
    %v3000 = vld [vmem:[#allocation8 + $0xd8] sm:$0xff]
    %v3001 = vld [vmem:[#allocation8 + $0xe0] sm:$0xff]
    %v3002 = vld [vmem:[#allocation8 + $0xe8] sm:$0xff]
    %v3003 = vld [vmem:[#allocation8 + $0xf0] sm:$0xff]
    %v3004 = vld [vmem:[#allocation8 + $0xf8] sm:$0xff]
    %v3005 = vld [vmem:[#allocation8 + $0x100] sm:$0xff]
    %v3006 = vld [vmem:[#allocation8 + $0x108] sm:$0xff]
    %v3007 = vld [vmem:[#allocation8 + $0x110] sm:$0xff]
    %v3008 = vld [vmem:[#allocation8 + $0x118] sm:$0xff]
    %v3009 = vld [vmem:[#allocation8 + $0x120] sm:$0xff]
    %v3010 = vld [vmem:[#allocation8 + $0x128] sm:$0xff]
    %v3011 = vld [vmem:[#allocation8 + $0x130] sm:$0xff]
    %v3012 = vld [vmem:[#allocation8 + $0x138] sm:$0xff]
    %v3013 = vld [vmem:[#allocation8 + $0x140] sm:$0xff]
    %v3014 = vld [vmem:[#allocation8 + $0x148] sm:$0xff]
    %v3015 = vld [vmem:[#allocation8 + $0x150] sm:$0xff]
    %v3016 = vld [vmem:[#allocation8 + $0x158] sm:$0xff]
    %v3017 = vld [vmem:[#allocation8 + $0x160] sm:$0xff]
    %v3018 = vld [vmem:[#allocation8 + $0x168] sm:$0xff]
    %v3019 = vld [vmem:[#allocation8 + $0x170] sm:$0xff]
    %v3020 = vld [vmem:[#allocation8 + $0x178] sm:$0xff]
    %v3021 = vld [vmem:[#allocation8 + $0x180] sm:$0xff]
    %v3022 = vld [vmem:[#allocation8 + $0x188] sm:$0xff]
    %v3023 = vld [vmem:[#allocation8 + $0x190] sm:$0xff]
    %v3024 = vld [vmem:[#allocation8 + $0x198] sm:$0xff]
    %v3025 = vld [vmem:[#allocation8 + $0x1a0] sm:$0xff]
    %v3026 = vld [vmem:[#allocation8 + $0x1a8] sm:$0xff]
    %v3027 = vld [vmem:[#allocation8 + $0x1b0] sm:$0xff]
    %v3028 = vld [vmem:[#allocation8 + $0x1b8] sm:$0xff]
    %v3029 = vld [vmem:[#allocation8 + $0x1c0] sm:$0xff]
    %v3030 = vld [vmem:[#allocation8 + $0x1c8] sm:$0xff]
    %v3031 = vld [vmem:[#allocation8 + $0x1d0] sm:$0xff]
    %v3032 = vld [vmem:[#allocation8 + $0x1d8] sm:$0xff]
    %v3033 = vld [vmem:[#allocation8 + $0x1e0] sm:$0xff]
    %v3034 = vld [vmem:[#allocation8 + $0x1e8] sm:$0xff]
    %v3035 = vld [vmem:[#allocation8 + $0x1f0] sm:$0xff]
    %v3036 = vld [vmem:[#allocation8 + $0x1f8] sm:$0xff]
    %v3037 = vld [vmem:[#allocation8 + $0x200] sm:$0xff]
    %v3038 = vld [vmem:[#allocation8 + $0x208] sm:$0xff]
    %v3039 = vld [vmem:[#allocation8 + $0x210] sm:$0xff]
    %v3040 = vld [vmem:[#allocation8 + $0x218] sm:$0xff]
    %v3041 = vld [vmem:[#allocation8 + $0x220] sm:$0xff]
    %v3042 = vld [vmem:[#allocation8 + $0x228] sm:$0xff]
    %v3043 = vld [vmem:[#allocation8 + $0x230] sm:$0xff]
    %v3044 = vld [vmem:[#allocation8 + $0x238] sm:$0xff]
    %v3045 = vld [vmem:[#allocation8 + $0x240] sm:$0xff]
    %v3046 = vld [vmem:[#allocation8 + $0x248] sm:$0xff]
    %v3047 = vld [vmem:[#allocation8 + $0x250] sm:$0xff]
    %v3048 = vld [vmem:[#allocation8 + $0x258] sm:$0xff]
    %v3049 = vld [vmem:[#allocation8 + $0x260] sm:$0xff]
    %v3050 = vld [vmem:[#allocation8 + $0x268] sm:$0xff]
    %v3051 = vld [vmem:[#allocation8 + $0x270] sm:$0xff]
    %v3052 = vld [vmem:[#allocation8 + $0x278] sm:$0xff]
    %v3053 = vld [vmem:[#allocation8 + $0x280] sm:$0xff]
    %v3054 = vld [vmem:[#allocation8 + $0x288] sm:$0xff]
    %v3055 = vld [vmem:[#allocation8 + $0x290] sm:$0xff]
    %v3056 = vld [vmem:[#allocation8 + $0x298] sm:$0xff]
    %v3057 = vld [vmem:[#allocation8 + $0x2a0] sm:$0xff]
    %v3058 = vld [vmem:[#allocation8 + $0x2a8] sm:$0xff]
    %v3059 = vld [vmem:[#allocation8 + $0x2b0] sm:$0xff]
    %v3060 = vld [vmem:[#allocation8 + $0x2b8] sm:$0xff]
    %v3061 = vld [vmem:[#allocation8 + $0x2c0] sm:$0xff]
    %v3062 = vld [vmem:[#allocation8 + $0x2c8] sm:$0xff]
    %v3063 = vld [vmem:[#allocation8 + $0x2d0] sm:$0xff]
    %v3064 = vld [vmem:[#allocation8 + $0x2d8] sm:$0xff]
    %v3065 = vld [vmem:[#allocation8 + $0x2e0] sm:$0xff]
    %v3066 = vld [vmem:[#allocation8 + $0x2e8] sm:$0xff]
    %v3067 = vld [vmem:[#allocation8 + $0x2f0] sm:$0xff]
    %v3068 = vld [vmem:[#allocation8 + $0x2f8] sm:$0xff]
    %v3069 = vld [vmem:[#allocation8 + $0x300] sm:$0xff]
    %v3070 = vld [vmem:[#allocation8 + $0x308] sm:$0xff]
    %v3071 = vld [vmem:[#allocation8 + $0x310] sm:$0xff]
    %v3072 = vld [vmem:[#allocation8 + $0x318] sm:$0xff]
    %v3073 = vld [vmem:[#allocation8 + $0x320] sm:$0xff]
    %v3074 = vld [vmem:[#allocation8 + $0x328] sm:$0xff]
    %v3075 = vld [vmem:[#allocation8 + $0x330] sm:$0xff]
    %v3076 = vld [vmem:[#allocation8 + $0x338] sm:$0xff]
    %v3077 = vld [vmem:[#allocation8 + $0x340] sm:$0xff]
    %v3078 = vld [vmem:[#allocation8 + $0x348] sm:$0xff]
    %v3079 = vld [vmem:[#allocation8 + $0x350] sm:$0xff]
    %v3080 = vld [vmem:[#allocation8 + $0x358] sm:$0xff]
    %v3081 = vld [vmem:[#allocation8 + $0x360] sm:$0xff]
    %v3082 = vld [vmem:[#allocation8 + $0x368] sm:$0xff]
    %v3083 = vld [vmem:[#allocation8 + $0x370] sm:$0xff]
    %v3084 = vld [vmem:[#allocation8 + $0x378] sm:$0xff]
    %v3085 = vld [vmem:[#allocation8 + $0x380] sm:$0xff]
    %v3086 = vld [vmem:[#allocation8 + $0x388] sm:$0xff]
    %v3087 = vld [vmem:[#allocation8 + $0x390] sm:$0xff]
    %v3088 = vld [vmem:[#allocation8 + $0x398] sm:$0xff]
    %v3089 = vld [vmem:[#allocation8 + $0x3a0] sm:$0xff]
    %v3090 = vld [vmem:[#allocation8 + $0x3a8] sm:$0xff]
    %v3091 = vld [vmem:[#allocation8 + $0x3b0] sm:$0xff]
    %v3092 = vld [vmem:[#allocation8 + $0x3b8] sm:$0xff]
    %v3093 = vld [vmem:[#allocation8 + $0x3c0] sm:$0xff]
    %v3094 = vld [vmem:[#allocation8 + $0x3c8] sm:$0xff]
    %v3095 = vld [vmem:[#allocation8 + $0x3d0] sm:$0xff]
    %v3096 = vld [vmem:[#allocation8 + $0x3d8] sm:$0xff]
    %v3097 = vld [vmem:[#allocation8 + $0x3e0] sm:$0xff]
    %v3098 = vld [vmem:[#allocation8 + $0x3e8] sm:$0xff]
    %v3099 = vld [vmem:[#allocation8 + $0x3f0] sm:$0xff]
    %v3100 = vld [vmem:[#allocation8 + $0x3f8] sm:$0xff]
    %v3101 = vld [vmem:[%s8] sm:$0xf]
    %v3103 = vperm.slane %v3101, 0
    %v3104 = vperm.slane %v3101, 1
    %v3105 = vperm.slane %v3101, 2
    %v3106 = vperm.slane %v3101, 3
    %v3239 = vunpack.c.l.b16 %v2973
    %v3240 = vunpack.c.h.b16 %v2973
    %v3241 = vunpack.c.l.b16 %v2974
    %v3242 = vunpack.c.h.b16 %v2974
    %v3243 = vunpack.c.l.b16 %v2975
    %v3244 = vunpack.c.h.b16 %v2975
    %v3245 = vunpack.c.l.b16 %v2976
    %v3246 = vunpack.c.h.b16 %v2976
    %v3247 = vunpack.c.l.b16 %v2977
    %v3248 = vunpack.c.h.b16 %v2977
    %v3249 = vunpack.c.l.b16 %v2978
    %v3250 = vunpack.c.h.b16 %v2978
    %v3251 = vunpack.c.l.b16 %v2979
    %v3252 = vunpack.c.h.b16 %v2979
    %v3253 = vunpack.c.l.b16 %v2980
    %v3254 = vunpack.c.h.b16 %v2980
    %v3255 = vunpack.c.l.b16 %v2981
    %v3256 = vunpack.c.h.b16 %v2981
    %v3257 = vunpack.c.l.b16 %v2982
    %v3258 = vunpack.c.h.b16 %v2982
    %v3259 = vunpack.c.l.b16 %v2983
    %v3260 = vunpack.c.h.b16 %v2983
    %v3261 = vunpack.c.l.b16 %v2984
    %v3262 = vunpack.c.h.b16 %v2984
    %v3263 = vunpack.c.l.b16 %v2985
    %v3264 = vunpack.c.h.b16 %v2985
    %v3265 = vunpack.c.l.b16 %v2986
    %v3266 = vunpack.c.h.b16 %v2986
    %v3267 = vunpack.c.l.b16 %v2987
    %v3268 = vunpack.c.h.b16 %v2987
    %v3269 = vunpack.c.l.b16 %v2988
    %v3270 = vunpack.c.h.b16 %v2988
    %v3271 = vunpack.c.l.b16 %v2989
    %v3272 = vunpack.c.h.b16 %v2989
    %v3273 = vunpack.c.l.b16 %v2990
    %v3274 = vunpack.c.h.b16 %v2990
    %v3275 = vunpack.c.l.b16 %v2991
    %v3276 = vunpack.c.h.b16 %v2991
    %v3277 = vunpack.c.l.b16 %v2992
    %v3278 = vunpack.c.h.b16 %v2992
    %v3279 = vunpack.c.l.b16 %v2993
    %v3280 = vunpack.c.h.b16 %v2993
    %v3281 = vunpack.c.l.b16 %v2994
    %v3282 = vunpack.c.h.b16 %v2994
    %v3283 = vunpack.c.l.b16 %v2995
    %v3284 = vunpack.c.h.b16 %v2995
    %v3285 = vunpack.c.l.b16 %v2996
    %v3286 = vunpack.c.h.b16 %v2996
    %v3287 = vunpack.c.l.b16 %v2997
    %v3288 = vunpack.c.h.b16 %v2997
    %v3289 = vunpack.c.l.b16 %v2998
    %v3290 = vunpack.c.h.b16 %v2998
    %v3291 = vunpack.c.l.b16 %v2999
    %v3292 = vunpack.c.h.b16 %v2999
    %v3293 = vunpack.c.l.b16 %v3000
    %v3294 = vunpack.c.h.b16 %v3000
    %v3295 = vunpack.c.l.b16 %v3001
    %v3296 = vunpack.c.h.b16 %v3001
    %v3297 = vunpack.c.l.b16 %v3002
    %v3298 = vunpack.c.h.b16 %v3002
    %v3299 = vunpack.c.l.b16 %v3003
    %v3300 = vunpack.c.h.b16 %v3003
    %v3301 = vunpack.c.l.b16 %v3004
    %v3302 = vunpack.c.h.b16 %v3004
    %v3303 = vunpack.c.l.b16 %v3005
    %v3304 = vunpack.c.h.b16 %v3005
    %v3305 = vunpack.c.l.b16 %v3006
    %v3306 = vunpack.c.h.b16 %v3006
    %v3307 = vunpack.c.l.b16 %v3007
    %v3308 = vunpack.c.h.b16 %v3007
    %v3309 = vunpack.c.l.b16 %v3008
    %v3310 = vunpack.c.h.b16 %v3008
    %v3311 = vunpack.c.l.b16 %v3009
    %v3312 = vunpack.c.h.b16 %v3009
    %v3313 = vunpack.c.l.b16 %v3010
    %v3314 = vunpack.c.h.b16 %v3010
    %v3315 = vunpack.c.l.b16 %v3011
    %v3316 = vunpack.c.h.b16 %v3011
    %v3317 = vunpack.c.l.b16 %v3012
    %v3318 = vunpack.c.h.b16 %v3012
    %v3319 = vunpack.c.l.b16 %v3013
    %v3320 = vunpack.c.h.b16 %v3013
    %v3321 = vunpack.c.l.b16 %v3014
    %v3322 = vunpack.c.h.b16 %v3014
    %v3323 = vunpack.c.l.b16 %v3015
    %v3324 = vunpack.c.h.b16 %v3015
    %v3325 = vunpack.c.l.b16 %v3016
    %v3326 = vunpack.c.h.b16 %v3016
    %v3327 = vunpack.c.l.b16 %v3017
    %v3328 = vunpack.c.h.b16 %v3017
    %v3329 = vunpack.c.l.b16 %v3018
    %v3330 = vunpack.c.h.b16 %v3018
    %v3331 = vunpack.c.l.b16 %v3019
    %v3332 = vunpack.c.h.b16 %v3019
    %v3333 = vunpack.c.l.b16 %v3020
    %v3334 = vunpack.c.h.b16 %v3020
    %v3335 = vunpack.c.l.b16 %v3021
    %v3336 = vunpack.c.h.b16 %v3021
    %v3337 = vunpack.c.l.b16 %v3022
    %v3338 = vunpack.c.h.b16 %v3022
    %v3339 = vunpack.c.l.b16 %v3023
    %v3340 = vunpack.c.h.b16 %v3023
    %v3341 = vunpack.c.l.b16 %v3024
    %v3342 = vunpack.c.h.b16 %v3024
    %v3343 = vunpack.c.l.b16 %v3025
    %v3344 = vunpack.c.h.b16 %v3025
    %v3345 = vunpack.c.l.b16 %v3026
    %v3346 = vunpack.c.h.b16 %v3026
    %v3347 = vunpack.c.l.b16 %v3027
    %v3348 = vunpack.c.h.b16 %v3027
    %v3349 = vunpack.c.l.b16 %v3028
    %v3350 = vunpack.c.h.b16 %v3028
    %v3351 = vunpack.c.l.b16 %v3029
    %v3352 = vunpack.c.h.b16 %v3029
    %v3353 = vunpack.c.l.b16 %v3030
    %v3354 = vunpack.c.h.b16 %v3030
    %v3355 = vunpack.c.l.b16 %v3031
    %v3356 = vunpack.c.h.b16 %v3031
    %v3357 = vunpack.c.l.b16 %v3032
    %v3358 = vunpack.c.h.b16 %v3032
    %v3359 = vunpack.c.l.b16 %v3033
    %v3360 = vunpack.c.h.b16 %v3033
    %v3361 = vunpack.c.l.b16 %v3034
    %v3362 = vunpack.c.h.b16 %v3034
    %v3363 = vunpack.c.l.b16 %v3035
    %v3364 = vunpack.c.h.b16 %v3035
    %v3365 = vunpack.c.l.b16 %v3036
    %v3366 = vunpack.c.h.b16 %v3036
    %v3367 = vunpack.c.l.b16 %v3037
    %v3368 = vunpack.c.h.b16 %v3037
    %v3369 = vunpack.c.l.b16 %v3038
    %v3370 = vunpack.c.h.b16 %v3038
    %v3371 = vunpack.c.l.b16 %v3039
    %v3372 = vunpack.c.h.b16 %v3039
    %v3373 = vunpack.c.l.b16 %v3040
    %v3374 = vunpack.c.h.b16 %v3040
    %v3375 = vunpack.c.l.b16 %v3041
    %v3376 = vunpack.c.h.b16 %v3041
    %v3377 = vunpack.c.l.b16 %v3042
    %v3378 = vunpack.c.h.b16 %v3042
    %v3379 = vunpack.c.l.b16 %v3043
    %v3380 = vunpack.c.h.b16 %v3043
    %v3381 = vunpack.c.l.b16 %v3044
    %v3382 = vunpack.c.h.b16 %v3044
    %v3383 = vunpack.c.l.b16 %v3045
    %v3384 = vunpack.c.h.b16 %v3045
    %v3385 = vunpack.c.l.b16 %v3046
    %v3386 = vunpack.c.h.b16 %v3046
    %v3387 = vunpack.c.l.b16 %v3047
    %v3388 = vunpack.c.h.b16 %v3047
    %v3389 = vunpack.c.l.b16 %v3048
    %v3390 = vunpack.c.h.b16 %v3048
    %v3391 = vunpack.c.l.b16 %v3049
    %v3392 = vunpack.c.h.b16 %v3049
    %v3393 = vunpack.c.l.b16 %v3050
    %v3394 = vunpack.c.h.b16 %v3050
    %v3395 = vunpack.c.l.b16 %v3051
    %v3396 = vunpack.c.h.b16 %v3051
    %v3397 = vunpack.c.l.b16 %v3052
    %v3398 = vunpack.c.h.b16 %v3052
    %v3399 = vunpack.c.l.b16 %v3053
    %v3400 = vunpack.c.h.b16 %v3053
    %v3401 = vunpack.c.l.b16 %v3054
    %v3402 = vunpack.c.h.b16 %v3054
    %v3403 = vunpack.c.l.b16 %v3055
    %v3404 = vunpack.c.h.b16 %v3055
    %v3405 = vunpack.c.l.b16 %v3056
    %v3406 = vunpack.c.h.b16 %v3056
    %v3407 = vunpack.c.l.b16 %v3057
    %v3408 = vunpack.c.h.b16 %v3057
    %v3409 = vunpack.c.l.b16 %v3058
    %v3410 = vunpack.c.h.b16 %v3058
    %v3411 = vunpack.c.l.b16 %v3059
    %v3412 = vunpack.c.h.b16 %v3059
    %v3413 = vunpack.c.l.b16 %v3060
    %v3414 = vunpack.c.h.b16 %v3060
    %v3415 = vunpack.c.l.b16 %v3061
    %v3416 = vunpack.c.h.b16 %v3061
    %v3417 = vunpack.c.l.b16 %v3062
    %v3418 = vunpack.c.h.b16 %v3062
    %v3419 = vunpack.c.l.b16 %v3063
    %v3420 = vunpack.c.h.b16 %v3063
    %v3421 = vunpack.c.l.b16 %v3064
    %v3422 = vunpack.c.h.b16 %v3064
    %v3423 = vunpack.c.l.b16 %v3065
    %v3424 = vunpack.c.h.b16 %v3065
    %v3425 = vunpack.c.l.b16 %v3066
    %v3426 = vunpack.c.h.b16 %v3066
    %v3427 = vunpack.c.l.b16 %v3067
    %v3428 = vunpack.c.h.b16 %v3067
    %v3429 = vunpack.c.l.b16 %v3068
    %v3430 = vunpack.c.h.b16 %v3068
    %v3431 = vunpack.c.l.b16 %v3069
    %v3432 = vunpack.c.h.b16 %v3069
    %v3433 = vunpack.c.l.b16 %v3070
    %v3434 = vunpack.c.h.b16 %v3070
    %v3435 = vunpack.c.l.b16 %v3071
    %v3436 = vunpack.c.h.b16 %v3071
    %v3437 = vunpack.c.l.b16 %v3072
    %v3438 = vunpack.c.h.b16 %v3072
    %v3439 = vunpack.c.l.b16 %v3073
    %v3440 = vunpack.c.h.b16 %v3073
    %v3441 = vunpack.c.l.b16 %v3074
    %v3442 = vunpack.c.h.b16 %v3074
    %v3443 = vunpack.c.l.b16 %v3075
    %v3444 = vunpack.c.h.b16 %v3075
    %v3445 = vunpack.c.l.b16 %v3076
    %v3446 = vunpack.c.h.b16 %v3076
    %v3447 = vunpack.c.l.b16 %v3077
    %v3448 = vunpack.c.h.b16 %v3077
    %v3449 = vunpack.c.l.b16 %v3078
    %v3450 = vunpack.c.h.b16 %v3078
    %v3451 = vunpack.c.l.b16 %v3079
    %v3452 = vunpack.c.h.b16 %v3079
    %v3453 = vunpack.c.l.b16 %v3080
    %v3454 = vunpack.c.h.b16 %v3080
    %v3455 = vunpack.c.l.b16 %v3081
    %v3456 = vunpack.c.h.b16 %v3081
    %v3457 = vunpack.c.l.b16 %v3082
    %v3458 = vunpack.c.h.b16 %v3082
    %v3459 = vunpack.c.l.b16 %v3083
    %v3460 = vunpack.c.h.b16 %v3083
    %v3461 = vunpack.c.l.b16 %v3084
    %v3462 = vunpack.c.h.b16 %v3084
    %v3463 = vunpack.c.l.b16 %v3085
    %v3464 = vunpack.c.h.b16 %v3085
    %v3465 = vunpack.c.l.b16 %v3086
    %v3466 = vunpack.c.h.b16 %v3086
    %v3467 = vunpack.c.l.b16 %v3087
    %v3468 = vunpack.c.h.b16 %v3087
    %v3469 = vunpack.c.l.b16 %v3088
    %v3470 = vunpack.c.h.b16 %v3088
    %v3471 = vunpack.c.l.b16 %v3089
    %v3472 = vunpack.c.h.b16 %v3089
    %v3473 = vunpack.c.l.b16 %v3090
    %v3474 = vunpack.c.h.b16 %v3090
    %v3475 = vunpack.c.l.b16 %v3091
    %v3476 = vunpack.c.h.b16 %v3091
    %v3477 = vunpack.c.l.b16 %v3092
    %v3478 = vunpack.c.h.b16 %v3092
    %v3479 = vunpack.c.l.b16 %v3093
    %v3480 = vunpack.c.h.b16 %v3093
    %v3481 = vunpack.c.l.b16 %v3094
    %v3482 = vunpack.c.h.b16 %v3094
    %v3483 = vunpack.c.l.b16 %v3095
    %v3484 = vunpack.c.h.b16 %v3095
    %v3485 = vunpack.c.l.b16 %v3096
    %v3486 = vunpack.c.h.b16 %v3096
    %v3487 = vunpack.c.l.b16 %v3097
    %v3488 = vunpack.c.h.b16 %v3097
    %v3489 = vunpack.c.l.b16 %v3098
    %v3490 = vunpack.c.h.b16 %v3098
    %v3491 = vunpack.c.l.b16 %v3099
    %v3492 = vunpack.c.h.b16 %v3099
    %v3493 = vunpack.c.l.b16 %v3100
    %v3494 = vunpack.c.h.b16 %v3100
    %v3495 = vpack.c.b16 %v3243, %v3239
    %v3496 = vpack.c.b16 %v3244, %v3240
    %v3497 = vpack.c.b16 %v3245, %v3241
    %v3498 = vpack.c.b16 %v3246, %v3242
    %v3499 = vpack.c.b16 %v3251, %v3247
    %v3500 = vpack.c.b16 %v3252, %v3248
    %v3501 = vpack.c.b16 %v3253, %v3249
    %v3502 = vpack.c.b16 %v3254, %v3250
    %v3503 = vpack.c.b16 %v3259, %v3255
    %v3504 = vpack.c.b16 %v3260, %v3256
    %v3505 = vpack.c.b16 %v3261, %v3257
    %v3506 = vpack.c.b16 %v3262, %v3258
    %v3507 = vpack.c.b16 %v3267, %v3263
    %v3508 = vpack.c.b16 %v3268, %v3264
    %v3509 = vpack.c.b16 %v3269, %v3265
    %v3510 = vpack.c.b16 %v3270, %v3266
    %v3511 = vpack.c.b16 %v3275, %v3271
    %v3512 = vpack.c.b16 %v3276, %v3272
    %v3513 = vpack.c.b16 %v3277, %v3273
    %v3514 = vpack.c.b16 %v3278, %v3274
    %v3515 = vpack.c.b16 %v3283, %v3279
    %v3516 = vpack.c.b16 %v3284, %v3280
    %v3517 = vpack.c.b16 %v3285, %v3281
    %v3518 = vpack.c.b16 %v3286, %v3282
    %v3519 = vpack.c.b16 %v3291, %v3287
    %v3520 = vpack.c.b16 %v3292, %v3288
    %v3521 = vpack.c.b16 %v3293, %v3289
    %v3522 = vpack.c.b16 %v3294, %v3290
    %v3523 = vpack.c.b16 %v3299, %v3295
    %v3524 = vpack.c.b16 %v3300, %v3296
    %v3525 = vpack.c.b16 %v3301, %v3297
    %v3526 = vpack.c.b16 %v3302, %v3298
    %v3527 = vpack.c.b16 %v3307, %v3303
    %v3528 = vpack.c.b16 %v3308, %v3304
    %v3529 = vpack.c.b16 %v3309, %v3305
    %v3530 = vpack.c.b16 %v3310, %v3306
    %v3531 = vpack.c.b16 %v3315, %v3311
    %v3532 = vpack.c.b16 %v3316, %v3312
    %v3533 = vpack.c.b16 %v3317, %v3313
    %v3534 = vpack.c.b16 %v3318, %v3314
    %v3535 = vpack.c.b16 %v3323, %v3319
    %v3536 = vpack.c.b16 %v3324, %v3320
    %v3537 = vpack.c.b16 %v3325, %v3321
    %v3538 = vpack.c.b16 %v3326, %v3322
    %v3539 = vpack.c.b16 %v3331, %v3327
    %v3540 = vpack.c.b16 %v3332, %v3328
    %v3541 = vpack.c.b16 %v3333, %v3329
    %v3542 = vpack.c.b16 %v3334, %v3330
    %v3543 = vpack.c.b16 %v3339, %v3335
    %v3544 = vpack.c.b16 %v3340, %v3336
    %v3545 = vpack.c.b16 %v3341, %v3337
    %v3546 = vpack.c.b16 %v3342, %v3338
    %v3547 = vpack.c.b16 %v3347, %v3343
    %v3548 = vpack.c.b16 %v3348, %v3344
    %v3549 = vpack.c.b16 %v3349, %v3345
    %v3550 = vpack.c.b16 %v3350, %v3346
    %v3551 = vpack.c.b16 %v3355, %v3351
    %v3552 = vpack.c.b16 %v3356, %v3352
    %v3553 = vpack.c.b16 %v3357, %v3353
    %v3554 = vpack.c.b16 %v3358, %v3354
    %v3555 = vpack.c.b16 %v3363, %v3359
    %v3556 = vpack.c.b16 %v3364, %v3360
    %v3557 = vpack.c.b16 %v3365, %v3361
    %v3558 = vpack.c.b16 %v3366, %v3362
    %v3559 = vpack.c.b16 %v3371, %v3367
    %v3560 = vpack.c.b16 %v3372, %v3368
    %v3561 = vpack.c.b16 %v3373, %v3369
    %v3562 = vpack.c.b16 %v3374, %v3370
    %v3563 = vpack.c.b16 %v3379, %v3375
    %v3564 = vpack.c.b16 %v3380, %v3376
    %v3565 = vpack.c.b16 %v3381, %v3377
    %v3566 = vpack.c.b16 %v3382, %v3378
    %v3567 = vpack.c.b16 %v3387, %v3383
    %v3568 = vpack.c.b16 %v3388, %v3384
    %v3569 = vpack.c.b16 %v3389, %v3385
    %v3570 = vpack.c.b16 %v3390, %v3386
    %v3571 = vpack.c.b16 %v3395, %v3391
    %v3572 = vpack.c.b16 %v3396, %v3392
    %v3573 = vpack.c.b16 %v3397, %v3393
    %v3574 = vpack.c.b16 %v3398, %v3394
    %v3575 = vpack.c.b16 %v3403, %v3399
    %v3576 = vpack.c.b16 %v3404, %v3400
    %v3577 = vpack.c.b16 %v3405, %v3401
    %v3578 = vpack.c.b16 %v3406, %v3402
    %v3579 = vpack.c.b16 %v3411, %v3407
    %v3580 = vpack.c.b16 %v3412, %v3408
    %v3581 = vpack.c.b16 %v3413, %v3409
    %v3582 = vpack.c.b16 %v3414, %v3410
    %v3583 = vpack.c.b16 %v3419, %v3415
    %v3584 = vpack.c.b16 %v3420, %v3416
    %v3585 = vpack.c.b16 %v3421, %v3417
    %v3586 = vpack.c.b16 %v3422, %v3418
    %v3587 = vpack.c.b16 %v3427, %v3423
    %v3588 = vpack.c.b16 %v3428, %v3424
    %v3589 = vpack.c.b16 %v3429, %v3425
    %v3590 = vpack.c.b16 %v3430, %v3426
    %v3591 = vpack.c.b16 %v3435, %v3431
    %v3592 = vpack.c.b16 %v3436, %v3432
    %v3593 = vpack.c.b16 %v3437, %v3433
    %v3594 = vpack.c.b16 %v3438, %v3434
    %v3595 = vpack.c.b16 %v3443, %v3439
    %v3596 = vpack.c.b16 %v3444, %v3440
    %v3597 = vpack.c.b16 %v3445, %v3441
    %v3598 = vpack.c.b16 %v3446, %v3442
    %v3599 = vpack.c.b16 %v3451, %v3447
    %v3600 = vpack.c.b16 %v3452, %v3448
    %v3601 = vpack.c.b16 %v3453, %v3449
    %v3602 = vpack.c.b16 %v3454, %v3450
    %v3603 = vpack.c.b16 %v3459, %v3455
    %v3604 = vpack.c.b16 %v3460, %v3456
    %v3605 = vpack.c.b16 %v3461, %v3457
    %v3606 = vpack.c.b16 %v3462, %v3458
    %v3607 = vpack.c.b16 %v3467, %v3463
    %v3608 = vpack.c.b16 %v3468, %v3464
    %v3609 = vpack.c.b16 %v3469, %v3465
    %v3610 = vpack.c.b16 %v3470, %v3466
    %v3611 = vpack.c.b16 %v3475, %v3471
    %v3612 = vpack.c.b16 %v3476, %v3472
    %v3613 = vpack.c.b16 %v3477, %v3473
    %v3614 = vpack.c.b16 %v3478, %v3474
    %v3615 = vpack.c.b16 %v3483, %v3479
    %v3616 = vpack.c.b16 %v3484, %v3480
    %v3617 = vpack.c.b16 %v3485, %v3481
    %v3618 = vpack.c.b16 %v3486, %v3482
    %v3619 = vpack.c.b16 %v3491, %v3487
    %v3620 = vpack.c.b16 %v3492, %v3488
    %v3621 = vpack.c.b16 %v3493, %v3489
    %v3622 = vpack.c.b16 %v3494, %v3490
    %3751 = vmatpush.bf16.msra.mxu0 %v3523
    %3752 = vmatpush.bf16.msra.mxu0 %v3519
    %3753 = vmatpush.bf16.msra.mxu0 %v3515
    %3754 = vmatpush.bf16.msra.mxu0 %v3511
    %3755 = vmatpush.bf16.msra.mxu0 %v3507
    %3756 = vmatpush.bf16.msra.mxu0 %v3503
    %3757 = vmatpush.bf16.msra.mxu0 %v3499
    %3758 = vmatpush.bf16.msra.mxu0 %v3495
    %3759 = vmatmul.bf16.gmra.mxu0 %v2969
    %v3760 = vpop.f32.mrf.mxu0
    %v3761 = vadd.f32 %v3103, %v3760
    %v3762 = vpop.f32.mrf.mxu0
    %v3763 = vadd.f32 %v3103, %v3762
    %3764 = vdwg.mxu0
    %3765 = vmatpush.bf16.msra.mxu0 %v3555
    %3766 = vmatpush.bf16.msra.mxu0 %v3551
    %3767 = vmatpush.bf16.msra.mxu0 %v3547
    %3768 = vmatpush.bf16.msra.mxu0 %v3543
    %3769 = vmatpush.bf16.msra.mxu0 %v3539
    %3770 = vmatpush.bf16.msra.mxu0 %v3535
    %3771 = vmatpush.bf16.msra.mxu0 %v3531
    %3772 = vmatpush.bf16.msra.mxu0 %v3527
    %3773 = vmatmul.bf16.gmra.mxu0 %v2970
    %v3774 = vpop.f32.mrf.mxu0
    %v3775 = vadd.f32 %v3761, %v3774
    %v3776 = vpop.f32.mrf.mxu0
    %v3777 = vadd.f32 %v3763, %v3776
    %3778 = vdwg.mxu0
    %3779 = vmatpush.bf16.msra.mxu0 %v3587
    %3780 = vmatpush.bf16.msra.mxu0 %v3583
    %3781 = vmatpush.bf16.msra.mxu0 %v3579
    %3782 = vmatpush.bf16.msra.mxu0 %v3575
    %3783 = vmatpush.bf16.msra.mxu0 %v3571
    %3784 = vmatpush.bf16.msra.mxu0 %v3567
    %3785 = vmatpush.bf16.msra.mxu0 %v3563
    %3786 = vmatpush.bf16.msra.mxu0 %v3559
    %3787 = vmatmul.bf16.gmra.mxu0 %v2971
    %v3788 = vpop.f32.mrf.mxu0
    %v3789 = vadd.f32 %v3775, %v3788
    %v3790 = vpop.f32.mrf.mxu0
    %v3791 = vadd.f32 %v3777, %v3790
    %3792 = vdwg.mxu0
    %3793 = vmatpush.bf16.msra.mxu0 %v3619
    %3794 = vmatpush.bf16.msra.mxu0 %v3615
    %3795 = vmatpush.bf16.msra.mxu0 %v3611
    %3796 = vmatpush.bf16.msra.mxu0 %v3607
    %3797 = vmatpush.bf16.msra.mxu0 %v3603
    %3798 = vmatpush.bf16.msra.mxu0 %v3599
    %3799 = vmatpush.bf16.msra.mxu0 %v3595
    %3800 = vmatpush.bf16.msra.mxu0 %v3591
    %3801 = vmatmul.bf16.gmra.mxu0 %v2972
    %v3802 = vpop.f32.mrf.mxu0
    %v3803 = vadd.f32 %v3789, %v3802
    %v3804 = vpop.f32.mrf.mxu0
    %v3805 = vadd.f32 %v3791, %v3804
    %3806 = vdwg.mxu0
    %3807 = vmatpush.bf16.msra.mxu0 %v3524
    %3808 = vmatpush.bf16.msra.mxu0 %v3520
    %3809 = vmatpush.bf16.msra.mxu0 %v3516
    %3810 = vmatpush.bf16.msra.mxu0 %v3512
    %3811 = vmatpush.bf16.msra.mxu0 %v3508
    %3812 = vmatpush.bf16.msra.mxu0 %v3504
    %3813 = vmatpush.bf16.msra.mxu0 %v3500
    %3814 = vmatpush.bf16.msra.mxu0 %v3496
    %3815 = vmatmul.bf16.gmra.mxu0 %v2969
    %v3816 = vpop.f32.mrf.mxu0
    %v3817 = vadd.f32 %v3104, %v3816
    %v3818 = vpop.f32.mrf.mxu0
    %v3819 = vadd.f32 %v3104, %v3818
    %3820 = vdwg.mxu0
    %3821 = vmatpush.bf16.msra.mxu0 %v3556
    %3822 = vmatpush.bf16.msra.mxu0 %v3552
    %3823 = vmatpush.bf16.msra.mxu0 %v3548
    %3824 = vmatpush.bf16.msra.mxu0 %v3544
    %3825 = vmatpush.bf16.msra.mxu0 %v3540
    %3826 = vmatpush.bf16.msra.mxu0 %v3536
    %3827 = vmatpush.bf16.msra.mxu0 %v3532
    %3828 = vmatpush.bf16.msra.mxu0 %v3528
    %3829 = vmatmul.bf16.gmra.mxu0 %v2970
    %v3830 = vpop.f32.mrf.mxu0
    %v3831 = vadd.f32 %v3817, %v3830
    %v3832 = vpop.f32.mrf.mxu0
    %v3833 = vadd.f32 %v3819, %v3832
    %3834 = vdwg.mxu0
    %3835 = vmatpush.bf16.msra.mxu0 %v3588
    %3836 = vmatpush.bf16.msra.mxu0 %v3584
    %3837 = vmatpush.bf16.msra.mxu0 %v3580
    %3838 = vmatpush.bf16.msra.mxu0 %v3576
    %3839 = vmatpush.bf16.msra.mxu0 %v3572
    %3840 = vmatpush.bf16.msra.mxu0 %v3568
    %3841 = vmatpush.bf16.msra.mxu0 %v3564
    %3842 = vmatpush.bf16.msra.mxu0 %v3560
    %3843 = vmatmul.bf16.gmra.mxu0 %v2971
    %v3844 = vpop.f32.mrf.mxu0
    %v3845 = vadd.f32 %v3831, %v3844
    %v3846 = vpop.f32.mrf.mxu0
    %v3847 = vadd.f32 %v3833, %v3846
    %3848 = vdwg.mxu0
    %3849 = vmatpush.bf16.msra.mxu0 %v3620
    %3850 = vmatpush.bf16.msra.mxu0 %v3616
    %3851 = vmatpush.bf16.msra.mxu0 %v3612
    %3852 = vmatpush.bf16.msra.mxu0 %v3608
    %3853 = vmatpush.bf16.msra.mxu0 %v3604
    %3854 = vmatpush.bf16.msra.mxu0 %v3600
    %3855 = vmatpush.bf16.msra.mxu0 %v3596
    %3856 = vmatpush.bf16.msra.mxu0 %v3592
    %3857 = vmatmul.bf16.gmra.mxu0 %v2972
    %v3858 = vpop.f32.mrf.mxu0
    %v3859 = vadd.f32 %v3845, %v3858
    %v3860 = vpop.f32.mrf.mxu0
    %v3861 = vadd.f32 %v3847, %v3860
    %3862 = vdwg.mxu0
    %3863 = vmatpush.bf16.msra.mxu0 %v3525
    %3864 = vmatpush.bf16.msra.mxu0 %v3521
    %3865 = vmatpush.bf16.msra.mxu0 %v3517
    %3866 = vmatpush.bf16.msra.mxu0 %v3513
    %3867 = vmatpush.bf16.msra.mxu0 %v3509
    %3868 = vmatpush.bf16.msra.mxu0 %v3505
    %3869 = vmatpush.bf16.msra.mxu0 %v3501
    %3870 = vmatpush.bf16.msra.mxu0 %v3497
    %3871 = vmatmul.bf16.gmra.mxu0 %v2969
    %v3872 = vpop.f32.mrf.mxu0
    %v3873 = vadd.f32 %v3105, %v3872
    %v3874 = vpop.f32.mrf.mxu0
    %v3875 = vadd.f32 %v3105, %v3874
    %3876 = vdwg.mxu0
    %3877 = vmatpush.bf16.msra.mxu0 %v3557
    %3878 = vmatpush.bf16.msra.mxu0 %v3553
    %3879 = vmatpush.bf16.msra.mxu0 %v3549
    %3880 = vmatpush.bf16.msra.mxu0 %v3545
    %3881 = vmatpush.bf16.msra.mxu0 %v3541
    %3882 = vmatpush.bf16.msra.mxu0 %v3537
    %3883 = vmatpush.bf16.msra.mxu0 %v3533
    %3884 = vmatpush.bf16.msra.mxu0 %v3529
    %3885 = vmatmul.bf16.gmra.mxu0 %v2970
    %v3886 = vpop.f32.mrf.mxu0
    %v3887 = vadd.f32 %v3873, %v3886
    %v3888 = vpop.f32.mrf.mxu0
    %v3889 = vadd.f32 %v3875, %v3888
    %3890 = vdwg.mxu0
    %3891 = vmatpush.bf16.msra.mxu0 %v3589
    %3892 = vmatpush.bf16.msra.mxu0 %v3585
    %3893 = vmatpush.bf16.msra.mxu0 %v3581
    %3894 = vmatpush.bf16.msra.mxu0 %v3577
    %3895 = vmatpush.bf16.msra.mxu0 %v3573
    %3896 = vmatpush.bf16.msra.mxu0 %v3569
    %3897 = vmatpush.bf16.msra.mxu0 %v3565
    %3898 = vmatpush.bf16.msra.mxu0 %v3561
    %3899 = vmatmul.bf16.gmra.mxu0 %v2971
    %v3900 = vpop.f32.mrf.mxu0
    %v3901 = vadd.f32 %v3887, %v3900
    %v3902 = vpop.f32.mrf.mxu0
    %v3903 = vadd.f32 %v3889, %v3902
    %3904 = vdwg.mxu0
    %3905 = vmatpush.bf16.msra.mxu0 %v3621
    %3906 = vmatpush.bf16.msra.mxu0 %v3617
    %3907 = vmatpush.bf16.msra.mxu0 %v3613
    %3908 = vmatpush.bf16.msra.mxu0 %v3609
    %3909 = vmatpush.bf16.msra.mxu0 %v3605
    %3910 = vmatpush.bf16.msra.mxu0 %v3601
    %3911 = vmatpush.bf16.msra.mxu0 %v3597
    %3912 = vmatpush.bf16.msra.mxu0 %v3593
    %3913 = vmatmul.bf16.gmra.mxu0 %v2972
    %v3914 = vpop.f32.mrf.mxu0
    %v3915 = vadd.f32 %v3901, %v3914
    %v3916 = vpop.f32.mrf.mxu0
    %v3917 = vadd.f32 %v3903, %v3916
    %3918 = vdwg.mxu0
    %3919 = vmatpush.bf16.msra.mxu0 %v3526
    %3920 = vmatpush.bf16.msra.mxu0 %v3522
    %3921 = vmatpush.bf16.msra.mxu0 %v3518
    %3922 = vmatpush.bf16.msra.mxu0 %v3514
    %3923 = vmatpush.bf16.msra.mxu0 %v3510
    %3924 = vmatpush.bf16.msra.mxu0 %v3506
    %3925 = vmatpush.bf16.msra.mxu0 %v3502
    %3926 = vmatpush.bf16.msra.mxu0 %v3498
    %3927 = vmatmul.bf16.gmra.mxu0 %v2969
    %v3928 = vpop.f32.mrf.mxu0
    %v3929 = vadd.f32 %v3106, %v3928
    %v3930 = vpop.f32.mrf.mxu0
    %v3931 = vadd.f32 %v3106, %v3930
    %3932 = vdwg.mxu0
    %3933 = vmatpush.bf16.msra.mxu0 %v3558
    %3934 = vmatpush.bf16.msra.mxu0 %v3554
    %3935 = vmatpush.bf16.msra.mxu0 %v3550
    %3936 = vmatpush.bf16.msra.mxu0 %v3546
    %3937 = vmatpush.bf16.msra.mxu0 %v3542
    %3938 = vmatpush.bf16.msra.mxu0 %v3538
    %3939 = vmatpush.bf16.msra.mxu0 %v3534
    %3940 = vmatpush.bf16.msra.mxu0 %v3530
    %3941 = vmatmul.bf16.gmra.mxu0 %v2970
    %v3942 = vpop.f32.mrf.mxu0
    %v3943 = vadd.f32 %v3929, %v3942
    %v3944 = vpop.f32.mrf.mxu0
    %v3945 = vadd.f32 %v3931, %v3944
    %3946 = vdwg.mxu0
    %3947 = vmatpush.bf16.msra.mxu0 %v3590
    %3948 = vmatpush.bf16.msra.mxu0 %v3586
    %3949 = vmatpush.bf16.msra.mxu0 %v3582
    %3950 = vmatpush.bf16.msra.mxu0 %v3578
    %3951 = vmatpush.bf16.msra.mxu0 %v3574
    %3952 = vmatpush.bf16.msra.mxu0 %v3570
    %3953 = vmatpush.bf16.msra.mxu0 %v3566
    %3954 = vmatpush.bf16.msra.mxu0 %v3562
    %3955 = vmatmul.bf16.gmra.mxu0 %v2971
    %v3956 = vpop.f32.mrf.mxu0
    %v3957 = vadd.f32 %v3943, %v3956
    %v3958 = vpop.f32.mrf.mxu0
    %v3959 = vadd.f32 %v3945, %v3958
    %3960 = vdwg.mxu0
    %3961 = vmatpush.bf16.msra.mxu0 %v3622
    %3962 = vmatpush.bf16.msra.mxu0 %v3618
    %3963 = vmatpush.bf16.msra.mxu0 %v3614
    %3964 = vmatpush.bf16.msra.mxu0 %v3610
    %3965 = vmatpush.bf16.msra.mxu0 %v3606
    %3966 = vmatpush.bf16.msra.mxu0 %v3602
    %3967 = vmatpush.bf16.msra.mxu0 %v3598
    %3968 = vmatpush.bf16.msra.mxu0 %v3594
    %3969 = vmatmul.bf16.gmra.mxu0 %v2972
    %v3970 = vpop.f32.mrf.mxu0
    %v3971 = vadd.f32 %v3957, %v3970
    %v3972 = vpop.f32.mrf.mxu0
    %v3973 = vadd.f32 %v3959, %v3972
    %3974 = vdwg.mxu0
    %v3975 = vmin.f32 %v3803, 20.0
    %v3976 = vmin.f32 %v3859, 20.0
    %v3977 = vmin.f32 %v3915, 20.0
    %v3978 = vmin.f32 %v3971, 20.0
    %v3979 = vmin.f32 %v3805, 20.0
    %v3980 = vmin.f32 %v3861, 20.0
    %v3981 = vmin.f32 %v3917, 20.0
    %v3982 = vmin.f32 %v3973, 20.0
    %vm3983 = vcmp.gt.f32.partialorder %v3803, 20.0
    %vm3984 = vcmp.gt.f32.partialorder %v3859, 20.0
    %vm3985 = vcmp.gt.f32.partialorder %v3915, 20.0
    %vm3986 = vcmp.gt.f32.partialorder %v3971, 20.0
    %vm3987 = vcmp.gt.f32.partialorder %v3805, 20.0
    %vm3988 = vcmp.gt.f32.partialorder %v3861, 20.0
    %vm3989 = vcmp.gt.f32.partialorder %v3917, 20.0
    %vm3990 = vcmp.gt.f32.partialorder %v3973, 20.0
    %v3991 = vmul.f32 %v3975, 1.442695
    %v3992 = vpow.pop %v3991
    %v3993 = vmul.f32 %v3976, 1.442695
    %v3994 = vpow.pop %v3993
    %v3995 = vmul.f32 %v3977, 1.442695
    %v3996 = vpow.pop %v3995
    %v3997 = vmul.f32 %v3978, 1.442695
    %v3998 = vpow.pop %v3997
    %v3999 = vmul.f32 %v3979, 1.442695
    %v4000 = vpow.pop %v3999
    %v4001 = vmul.f32 %v3980, 1.442695
    %v4002 = vpow.pop %v4001
    %v4003 = vmul.f32 %v3981, 1.442695
    %v4004 = vpow.pop %v4003
    %v4005 = vmul.f32 %v3982, 1.442695
    %v4006 = vpow.pop %v4005
    %v4007 = vadd.f32 %v3992, 1.0
    %v4008 = vlog2.pop %v4007
    %v4009 = vmul.f32 %v4008, 0.6931472
    %v4010 = vmul.f32 -0.5, %v3992
    %v4011 = vadd.f32 %v4010, 1.0
    %v4012 = vmul.f32 %v4011, %v3992
    %v4013 = vand.u32 2147483647, %v3992
    %vm4014 = vcmp.lt.f32.partialorder %v4013, 0.0004427343
    %v4015 = vsel %vm4014, %v4012, %v4009
    %v4016 = vadd.f32 %v3994, 1.0
    %v4017 = vlog2.pop %v4016
    %v4018 = vmul.f32 %v4017, 0.6931472
    %v4019 = vmul.f32 -0.5, %v3994
    %v4020 = vadd.f32 %v4019, 1.0
    %v4021 = vmul.f32 %v4020, %v3994
    %v4022 = vand.u32 2147483647, %v3994
    %vm4023 = vcmp.lt.f32.partialorder %v4022, 0.0004427343
    %v4024 = vsel %vm4023, %v4021, %v4018
    %v4025 = vadd.f32 %v3996, 1.0
    %v4026 = vlog2.pop %v4025
    %v4027 = vmul.f32 %v4026, 0.6931472
    %v4028 = vmul.f32 -0.5, %v3996
    %v4029 = vadd.f32 %v4028, 1.0
    %v4030 = vmul.f32 %v4029, %v3996
    %v4031 = vand.u32 2147483647, %v3996
    %vm4032 = vcmp.lt.f32.partialorder %v4031, 0.0004427343
    %v4033 = vsel %vm4032, %v4030, %v4027
    %v4034 = vadd.f32 %v3998, 1.0
    %v4035 = vlog2.pop %v4034
    %v4036 = vmul.f32 %v4035, 0.6931472
    %v4037 = vmul.f32 -0.5, %v3998
    %v4038 = vadd.f32 %v4037, 1.0
    %v4039 = vmul.f32 %v4038, %v3998
    %v4040 = vand.u32 2147483647, %v3998
    %vm4041 = vcmp.lt.f32.partialorder %v4040, 0.0004427343
    %v4042 = vsel %vm4041, %v4039, %v4036
    %v4043 = vadd.f32 %v4000, 1.0
    %v4044 = vlog2.pop %v4043
    %v4045 = vmul.f32 %v4044, 0.6931472
    %v4046 = vmul.f32 -0.5, %v4000
    %v4047 = vadd.f32 %v4046, 1.0
    %v4048 = vmul.f32 %v4047, %v4000
    %v4049 = vand.u32 2147483647, %v4000
    %vm4050 = vcmp.lt.f32.partialorder %v4049, 0.0004427343
    %v4051 = vsel %vm4050, %v4048, %v4045
    %v4052 = vadd.f32 %v4002, 1.0
    %v4053 = vlog2.pop %v4052
    %v4054 = vmul.f32 %v4053, 0.6931472
    %v4055 = vmul.f32 -0.5, %v4002
    %v4056 = vadd.f32 %v4055, 1.0
    %v4057 = vmul.f32 %v4056, %v4002
    %v4058 = vand.u32 2147483647, %v4002
    %vm4059 = vcmp.lt.f32.partialorder %v4058, 0.0004427343
    %v4060 = vsel %vm4059, %v4057, %v4054
    %v4061 = vadd.f32 %v4004, 1.0
    %v4062 = vlog2.pop %v4061
    %v4063 = vmul.f32 %v4062, 0.6931472
    %v4064 = vmul.f32 -0.5, %v4004
    %v4065 = vadd.f32 %v4064, 1.0
    %v4066 = vmul.f32 %v4065, %v4004
    %v4067 = vand.u32 2147483647, %v4004
    %vm4068 = vcmp.lt.f32.partialorder %v4067, 0.0004427343
    %v4069 = vsel %vm4068, %v4066, %v4063
    %v4070 = vadd.f32 %v4006, 1.0
    %v4071 = vlog2.pop %v4070
    %v4072 = vmul.f32 %v4071, 0.6931472
    %v4073 = vmul.f32 -0.5, %v4006
    %v4074 = vadd.f32 %v4073, 1.0
    %v4075 = vmul.f32 %v4074, %v4006
    %v4076 = vand.u32 2147483647, %v4006
    %vm4077 = vcmp.lt.f32.partialorder %v4076, 0.0004427343
    %v4078 = vsel %vm4077, %v4075, %v4072
    %v4079 = vsel %vm3983, %v3803, %v4015
    %v4080 = vsel %vm3984, %v3859, %v4024
    %v4081 = vsel %vm3985, %v3915, %v4033
    %v4082 = vsel %vm3986, %v3971, %v4042
    %v4083 = vsel %vm3987, %v3805, %v4051
    %v4084 = vsel %vm3988, %v3861, %v4060
    %v4085 = vsel %vm3989, %v3917, %v4069
    %v4086 = vsel %vm3990, %v3973, %v4078
    %v4087 = vpack.c.bf16 %v4080, %v4079
    %v4088 = vpack.c.bf16 %v4082, %v4081
    %v4089 = vpack.c.bf16 %v4084, %v4083
    %v4090 = vpack.c.bf16 %v4086, %v4085
    %v4091 = vunpack.c.l.bf16 %v4087
    %v4092 = vunpack.c.h.bf16 %v4087
    %v4093 = vunpack.c.l.bf16 %v4088
    %v4094 = vunpack.c.h.bf16 %v4088
    %v4095 = vunpack.c.l.bf16 %v4089
    %v4096 = vunpack.c.h.bf16 %v4089
    %v4097 = vunpack.c.l.bf16 %v4090
    %v4098 = vunpack.c.h.bf16 %v4090
    %v4099 = vld [vmem:[%s9] sm:$0xf]
    %v4101 = vperm.slane %v4099, 0
    %v4102 = vperm.slane %v4099, 1
    %v4103 = vperm.slane %v4099, 2
    %v4104 = vperm.slane %v4099, 3
    %v4109 = vmul.f32 %v4091, %v4101
    %v4110 = vmul.f32 %v4092, %v4102
    %v4111 = vmul.f32 %v4093, %v4103
    %v4112 = vmul.f32 %v4094, %v4104
    %v4113 = vmul.f32 %v4095, %v4101
    %v4114 = vmul.f32 %v4096, %v4102
    %v4115 = vmul.f32 %v4097, %v4103
    %v4116 = vmul.f32 %v4098, %v4104
    %v4117 = vadd.f32 %v4109, %v4110
    %v4118 = vadd.f32 %v4117, %v4111
    %v4119 = vadd.f32 %v4118, %v4112
    %4120 = vadd.xlane.f32.xlu0 %v4119
    %v4121 = vpop.xlane.xlu0 %4120
    %v4122 = vadd.f32 %v4113, %v4114
    %v4123 = vadd.f32 %v4122, %v4115
    %v4124 = vadd.f32 %v4123, %v4116
    %4125 = vadd.xlane.f32.xlu0 %v4124
    %v4126 = vpop.xlane.xlu0 %4125
    %v4127 = vld [vmem:[#allocation2] sm:$0x1]
    %v4129 = vperm.slane %v4127, 0
    %v4131 = vadd.f32 %v4121, %v4129
    %v4132 = vadd.f32 %v4126, %v4129
    %vm4133 = vcmask 7168
    %4134 = vst.msk [vmem:[%s11] sm:$0xff] %vm4133, %v4131
    %4135 = vst.msk [vmem:[%s11 + $0x8] sm:$0xff] %vm4133, %v4132
    // Predicated region
    $region62: #{fcn_neural_func_forward.1} parent=1 // pred_check
      _
    $region63: #{fcn_neural_func_forward.1} parent=1 // pred_check_branch
      %4137 = sbr.rel (0) target = $region65
    $region64: #{fcn_neural_func_forward.1} parent=1 // pred_region
      _
    $region65: #{fcn_neural_func_forward.1} parent=1 // pred_fallthru
      _
    // Predicated region
    $region66: #{fcn_neural_func_forward.1} parent=1 // pred_check
      _
    $region67: #{fcn_neural_func_forward.1} parent=1 // pred_check_branch
      %4139 = sbr.rel (0) target = $region69
    $region68: #{fcn_neural_func_forward.1} parent=1 // pred_region
      _
    $region69: #{fcn_neural_func_forward.1} parent=1 // pred_fallthru
      _
    %4140 = vsyncpa [#allocation4], 1
    %4141 = vsyncpa [#allocation6], 1
    %4142 = vsyncpa [#allocation9], 1

</llo_original>
